<compile_context>
chip_gen: v7x
topology: tpu7x:2x2x1
jax: 0.10.0
libtpu: 0.0.40
codegen_flags: <defaults>
</compile_context>

<pallas_src>
import jax
import jax.numpy as jnp
from jax.experimental import pallas as pl
from jax.experimental.pallas import tpu as pltpu


# ----------------------------------------------------------------------------
# Fused kernel (one grid step == one batch element; everything stays in VMEM)
# ----------------------------------------------------------------------------
def i_red_fused_kernel(
    pc_ref,                                            # (3, N) point cloud
    kw1_ref, ku1_ref, g1_ref,                          # VN layer 1 (kron-expanded)
    kw2_ref, ku2_ref, g2_ref,                          # VN layer 2 (kron-expanded)
    kre_ref,                                           # fused w_rot @ w_eq (kron)
    winv_ref, binv_ref,                                # invariant latent head
    gt_ref, w1g_ref, w1z_ref, b1_ref,                  # decoder layer 1
    w2_ref, b2_ref, w3_ref, b3_ref,                    # decoder layers 2/3
    recon_ref, painv_ref, rpinv_ref, rot_ref,          # outputs
):
    f32 = jnp.float32
    alpha = 0.2

    # ---------------- VNT encoder ----------------
    x = pc_ref[...]                                    # (3, N)
    t = jnp.mean(x, axis=1, keepdims=True)             # (3, 1) centroid == t_vec
    xc = x - t                                         # translation-invariant coords

    # Graph-feature-cross style per-point vector channels (rotation equivariant):
    # pair each point with the point N/2 away (128-lane aligned "roll" via concat).
    half = xc.shape[1] // 2
    xn = jnp.concatenate([xc[:, half:], xc[:, :half]], axis=1)
    diff = xn - xc
    cross = jnp.concatenate([
        xc[1:2, :] * xn[2:3, :] - xc[2:3, :] * xn[1:2, :],
        xc[2:3, :] * xn[0:1, :] - xc[0:1, :] * xn[2:3, :],
        xc[0:1, :] * xn[1:2, :] - xc[1:2, :] * xn[0:1, :],
    ], axis=0)
    # Grouped layout: row index = 3*channel + xyz component  -> (3*Ci, N)
    feat = jnp.concatenate([xc, diff, cross], axis=0)  # (9, N)

    def vn_layer(f_in, kw, ku, gsum):
        # kw = kron(W, I3), ku = kron(U, I3): one lane-dense matmul per VN linear.
        pre = jnp.dot(kw, f_in, preferred_element_type=f32)       # VN linear
        d = jnp.dot(ku, pre, preferred_element_type=f32)          # direction field
        # per-channel <f,d>, |d|^2 broadcast over the 3-row group via gsum matmul
        dot = jnp.dot(gsum, pre * d, preferred_element_type=f32)
        dd = jnp.dot(gsum, d * d, preferred_element_type=f32) + 1e-6
        coef = jnp.where(dot >= 0.0, 0.0, (1.0 - alpha) * dot / dd)
        return pre - coef * d                                     # VN leaky-ReLU

    f1 = vn_layer(feat, kw1_ref[...], ku1_ref[...], g1_ref[...])  # (3*C1, N)
    f2 = vn_layer(f1, kw2_ref[...], ku2_ref[...], g2_ref[...])    # (3*C2, N)
    fp = jnp.mean(f2, axis=1, keepdims=True)                      # (3*C2, 1) pooled eq feat

    # ---------------- SimpleRot head (6D Gram-Schmidt) ----------------
    ab = jnp.dot(kre_ref[...], fp, preferred_element_type=f32)    # (6, 1): two 3-vectors
    a = ab[0:3, :]
    b = ab[3:6, :]

    def _norm(v):
        return jnp.sqrt(jnp.sum(v * v, axis=0, keepdims=True)) + 1e-9

    r1 = a / _norm(a)
    b = b - jnp.sum(r1 * b, axis=0, keepdims=True) * r1
    r2 = b / _norm(b)
    r3 = jnp.concatenate([
        r1[1:2, :] * r2[2:3, :] - r1[2:3, :] * r2[1:2, :],
        r1[2:3, :] * r2[0:1, :] - r1[0:1, :] * r2[2:3, :],
        r1[0:1, :] * r2[1:2, :] - r1[1:2, :] * r2[0:1, :],
    ], axis=0)
    rot = jnp.concatenate([r1, r2, r3], axis=1)                   # (3, 3), columns r1,r2,r3

    # ---------------- invariant latent + per-point decoder ----------------
    # rotation/translation-invariant per-channel norms of the pooled VN features
    inv_feat = jnp.sqrt(jnp.dot(g2_ref[...], fp * fp,
                                preferred_element_type=f32) + 1e-12)   # (3*C2, 1)
    zpre = jnp.dot(winv_ref[...], inv_feat, preferred_element_type=f32) + binv_ref[...]
    z = jnp.where(zpre >= 0.0, zpre, alpha * zpre)                # (Z, 1) latent

    g = gt_ref[...]                                               # (3, M) point template
    h1 = jnp.maximum(
        jnp.dot(w1g_ref[...], g, preferred_element_type=f32)
        + jnp.dot(w1z_ref[...], z, preferred_element_type=f32)
        + b1_ref[...], 0.0)                                       # (H, M)
    h2 = jnp.maximum(
        jnp.dot(w2_ref[...], h1, preferred_element_type=f32) + b2_ref[...], 0.0)
    decT = jnp.tanh(
        jnp.dot(w3_ref[...], h2, preferred_element_type=f32) + b3_ref[...])   # (3, M)

    # ---------------- reconstruction (lane-dense outputs) ----------------
    def _rowdot(col, mat):        # col^T @ mat without materializing a transpose
        return jnp.sum(col * mat, axis=0, keepdims=True)

    # recon_pc  = (dec @ rot + t)^T      = rot^T @ dec^T + t_col
    recon_ref[...] = jnp.concatenate(
        [_rowdot(r1, decT), _rowdot(r2, decT), _rowdot(r3, decT)], axis=0) + t
    # pc_at_inv = ((pc^T - t) @ rot^T)^T = rot @ (pc - t_col)   (reuses in-VMEM xc)
    painv_ref[...] = jnp.dot(rot, xc, preferred_element_type=f32)
    rpinv_ref[...] = decT                                         # recon_pc_inv = dec^T
    rot_ref[...] = rot


# ----------------------------------------------------------------------------
# Wrapper: one pallas_call for the whole forward
# ----------------------------------------------------------------------------
_WEIGHT_ORDER = ("kw1", "ku1", "g1", "kw2", "ku2", "g2", "kre", "w_inv", "b_inv",
                 "dec_gT", "dec_w1g", "dec_w1z", "dec_b1", "dec_w2", "dec_b2",
                 "dec_w3", "dec_b3")


def i_red_forward(input_list, params):
    pc_full = input_list["pc_full"]                    # (B, 3, N)
    B, _, N = pc_full.shape
    M = params["dec_gT"].shape[1]

    weights = [params[k] for k in _WEIGHT_ORDER]

    def _wspec(w):
        return pl.BlockSpec(w.shape, lambda b: (0, 0))  # resident, fetched once

    recon_pc, pc_at_inv, recon_pc_inv, rot_mat = pl.pallas_call(
        i_red_fused_kernel,
        out_shape=(
            jax.ShapeDtypeStruct((B, 3, M), jnp.float32),   # recon_pc
            jax.ShapeDtypeStruct((B, 3, N), jnp.float32),   # pc_at_inv
            jax.ShapeDtypeStruct((B, 3, M), jnp.float32),   # recon_pc_inv
            jax.ShapeDtypeStruct((B, 3, 3), jnp.float32),   # rot
        ),
        grid=(B,),
        in_specs=[pl.BlockSpec((None, 3, N), lambda b: (b, 0, 0))]
                 + [_wspec(w) for w in weights],
        out_specs=(
            pl.BlockSpec((None, 3, M), lambda b: (b, 0, 0)),
            pl.BlockSpec((None, 3, N), lambda b: (b, 0, 0)),
            pl.BlockSpec((None, 3, M), lambda b: (b, 0, 0)),
            pl.BlockSpec((None, 3, 3), lambda b: (b, 0, 0)),
        ),
        compiler_params=pltpu.CompilerParams(dimension_semantics=("parallel",)),
    )(pc_full, *weights)

    pred_recon = {"pc": pc_full, "recon_pc": recon_pc, "pc_at_inv": pc_at_inv,
                  "recon_pc_inv": recon_pc_inv, "rot": rot_mat}
    # TODO(synk): partial_add_noise / fps / remove_knn / resample / randRT / can_rot /
    # dual branches need the augmented inputs; they are disabled in this config (all
    # opt flags False) and return empty dicts, exactly as the PyTorch module does.
    return (pred_recon, {}, {}, {}, {}, {}, {}, {})


# ----------------------------------------------------------------------------
# Deterministic synthetic weights (kernel-ready layouts, kron-expanded VN weights)
# ----------------------------------------------------------------------------
def make_params(key, C1=8, C2=16, Ceq=6, Z=32, H=64, M=256):
    ks = jax.random.split(key, 16)
    n = jax.random.normal
    I3 = jnp.eye(3, dtype=jnp.float32)

    def kron3(w):                     # VN linear W acting per xyz component
        return jnp.kron(w, I3)

    def gsum(c):                      # per-channel group-sum/broadcast over xyz
        return jnp.kron(jnp.eye(c, dtype=jnp.float32), jnp.ones((3, 3), jnp.float32))

    w1 = n(ks[0], (C1, 3), jnp.float32) * 0.6
    u1 = n(ks[1], (C1, C1), jnp.float32) * 0.35
    w2 = n(ks[2], (C2, C1), jnp.float32) * 0.35
    u2 = n(ks[3], (C2, C2), jnp.float32) * 0.25
    w_eq = n(ks[4], (Ceq, C2), jnp.float32) * 0.25
    w_rot = n(ks[5], (2, Ceq), jnp.float32) * 0.5

    return {
        # encoder (vector-neuron layers), Kronecker-expanded for single-dot VN linears
        "kw1": kron3(w1), "ku1": kron3(u1), "g1": gsum(C1),
        "kw2": kron3(w2), "ku2": kron3(u2), "g2": gsum(C2),
        # rotation head: w_rot and w_eq fused (eq_z is only consumed by SimpleRot here)
        "kre": kron3(w_rot @ w_eq),
        # invariant latent head
        "w_inv": n(ks[6], (Z, 3 * C2), jnp.float32) * 0.3,
        "b_inv": n(ks[7], (Z, 1), jnp.float32) * 0.01,
        # decoder (per-point MLP over a fixed template), channels-major layout
        "dec_gT":  n(ks[8], (3, M), jnp.float32) * 0.5,
        "dec_w1g": n(ks[9], (H, 3), jnp.float32) * 0.4,
        "dec_w1z": n(ks[10], (H, Z), jnp.float32) * 0.2,
        "dec_b1":  n(ks[11], (H, 1), jnp.float32) * 0.01,
        "dec_w2":  n(ks[12], (H, H), jnp.float32) * 0.15,
        "dec_b2":  n(ks[13], (H, 1), jnp.float32) * 0.01,
        "dec_w3":  n(ks[14], (3, H), jnp.float32) * 0.2,
        "dec_b3":  n(ks[15], (3, 1), jnp.float32) * 0.01,
    }


if __name__ == "__main__":
    B, N = 2, 256
    key = jax.random.PRNGKey(0)
    k_pc, k_par = jax.random.split(key)
    params = make_params(k_par, M=N)
    pc_full = jax.random.normal(k_pc, (B, 3, N), jnp.float32) * 0.5

    fwd = jax.jit(lambda x, p: i_red_forward({"pc_full": x}, p))
    outs = jax.block_until_ready(fwd(pc_full, params))

    pred_recon = outs[0]
    assert pred_recon["recon_pc"].shape == (B, 3, N)
    assert pred_recon["pc_at_inv"].shape == (B, 3, N)
    assert pred_recon["recon_pc_inv"].shape == (B, 3, N)
    assert pred_recon["rot"].shape == (B, 3, 3)
    assert bool(jnp.all(jnp.isfinite(pred_recon["recon_pc"])))
    assert bool(jnp.all(jnp.isfinite(pred_recon["pc_at_inv"])))
    # rotation matrices must be orthonormal (Gram-Schmidt head)
    rot = pred_recon["rot"]
    rtr = jnp.einsum("bij,bkj->bik", rot, rot)
    assert jnp.allclose(rtr, jnp.eye(3)[None], atol=1e-4)
    print("KERNEL_OK")
</pallas_src>

<mosaic_0001>
module attributes {stable_mosaic.version = 11 : i64} {
  func.func @i_red_fused_kernel(%arg0: i32, %arg1: memref<1x3x256xf32, #tpu.memory_space<vmem>>, %arg2: memref<24x9xf32, #tpu.memory_space<vmem>>, %arg3: memref<24x24xf32, #tpu.memory_space<vmem>>, %arg4: memref<24x24xf32, #tpu.memory_space<vmem>>, %arg5: memref<48x24xf32, #tpu.memory_space<vmem>>, %arg6: memref<48x48xf32, #tpu.memory_space<vmem>>, %arg7: memref<48x48xf32, #tpu.memory_space<vmem>>, %arg8: memref<6x48xf32, #tpu.memory_space<vmem>>, %arg9: memref<32x48xf32, #tpu.memory_space<vmem>>, %arg10: memref<32x1xf32, #tpu.memory_space<vmem>>, %arg11: memref<3x256xf32, #tpu.memory_space<vmem>>, %arg12: memref<64x3xf32, #tpu.memory_space<vmem>>, %arg13: memref<64x32xf32, #tpu.memory_space<vmem>>, %arg14: memref<64x1xf32, #tpu.memory_space<vmem>>, %arg15: memref<64x64xf32, #tpu.memory_space<vmem>>, %arg16: memref<64x1xf32, #tpu.memory_space<vmem>>, %arg17: memref<3x64xf32, #tpu.memory_space<vmem>>, %arg18: memref<3x1xf32, #tpu.memory_space<vmem>>, %arg19: memref<1x3x256xf32, #tpu.memory_space<vmem>>, %arg20: memref<1x3x256xf32, #tpu.memory_space<vmem>>, %arg21: memref<1x3x256xf32, #tpu.memory_space<vmem>>, %arg22: memref<1x3x3xf32, #tpu.memory_space<vmem>>) attributes {dimension_semantics = [#tpu.dimension_semantics<parallel>], iteration_bounds = array<i64: 2>, scalar_prefetch = 0 : i64, scratch_operands = 0 : i64, tpu.core_type = #tpu.core_type<tc>, window_params = [{transform_indices = @transform_0, window_bounds = array<i64: 1, 3, 256>}, {pipeline_mode = #tpu.pipeline_mode<synchronous>, transform_indices = @transform_1, window_bounds = array<i64: 24, 9>}, {pipeline_mode = #tpu.pipeline_mode<synchronous>, transform_indices = @transform_2, window_bounds = array<i64: 24, 24>}, {pipeline_mode = #tpu.pipeline_mode<synchronous>, transform_indices = @transform_3, window_bounds = array<i64: 24, 24>}, {pipeline_mode = #tpu.pipeline_mode<synchronous>, transform_indices = @transform_4, window_bounds = array<i64: 48, 24>}, {pipeline_mode = #tpu.pipeline_mode<synchronous>, transform_indices = @transform_5, window_bounds = array<i64: 48, 48>}, {pipeline_mode = #tpu.pipeline_mode<synchronous>, transform_indices = @transform_6, window_bounds = array<i64: 48, 48>}, {pipeline_mode = #tpu.pipeline_mode<synchronous>, transform_indices = @transform_7, window_bounds = array<i64: 6, 48>}, {pipeline_mode = #tpu.pipeline_mode<synchronous>, transform_indices = @transform_8, window_bounds = array<i64: 32, 48>}, {pipeline_mode = #tpu.pipeline_mode<synchronous>, transform_indices = @transform_9, window_bounds = array<i64: 32, 1>}, {pipeline_mode = #tpu.pipeline_mode<synchronous>, transform_indices = @transform_10, window_bounds = array<i64: 3, 256>}, {pipeline_mode = #tpu.pipeline_mode<synchronous>, transform_indices = @transform_11, window_bounds = array<i64: 64, 3>}, {pipeline_mode = #tpu.pipeline_mode<synchronous>, transform_indices = @transform_12, window_bounds = array<i64: 64, 32>}, {pipeline_mode = #tpu.pipeline_mode<synchronous>, transform_indices = @transform_13, window_bounds = array<i64: 64, 1>}, {pipeline_mode = #tpu.pipeline_mode<synchronous>, transform_indices = @transform_14, window_bounds = array<i64: 64, 64>}, {pipeline_mode = #tpu.pipeline_mode<synchronous>, transform_indices = @transform_15, window_bounds = array<i64: 64, 1>}, {pipeline_mode = #tpu.pipeline_mode<synchronous>, transform_indices = @transform_16, window_bounds = array<i64: 3, 64>}, {pipeline_mode = #tpu.pipeline_mode<synchronous>, transform_indices = @transform_17, window_bounds = array<i64: 3, 1>}, {transform_indices = @transform_18, window_bounds = array<i64: 1, 3, 256>}, {transform_indices = @transform_19, window_bounds = array<i64: 1, 3, 256>}, {transform_indices = @transform_20, window_bounds = array<i64: 1, 3, 256>}, {transform_indices = @transform_21, window_bounds = array<i64: 1, 3, 3>}]} {
    %c0 = arith.constant 0 : index
    %c0_0 = arith.constant 0 : index
    %c0_1 = arith.constant 0 : index
    %0 = vector.load %arg1[%c0, %c0_0, %c0_1] : memref<1x3x256xf32, #tpu.memory_space<vmem>>, vector<1x3x256xf32>
    %1 = vector.shape_cast %0 : vector<1x3x256xf32> to vector<3x256xf32>
    %cst = arith.constant dense<0.000000e+00> : vector<3xf32>
    %2 = vector.multi_reduction <add>, %1, %cst [1] : vector<3x256xf32> to vector<3xf32>
    %3 = vector.shape_cast %2 : vector<3xf32> to vector<3x1xf32>
    %cst_2 = arith.constant 2.560000e+02 : f32
    %4 = vector.broadcast %cst_2 : f32 to vector<3x1xf32>
    %5 = arith.divf %3, %4 : vector<3x1xf32>
    %6 = vector.broadcast %5 : vector<3x1xf32> to vector<3x256xf32>
    %7 = arith.subf %1, %6 : vector<3x256xf32>
    %8 = vector.extract_strided_slice %7 {offsets = [0, 128], sizes = [3, 128], strides = [1, 1]} : vector<3x256xf32> to vector<3x128xf32>
    %9 = vector.extract_strided_slice %7 {offsets = [0, 0], sizes = [3, 128], strides = [1, 1]} : vector<3x256xf32> to vector<3x128xf32>
    %10 = tpu.concatenate %8, %9 in 1 : vector<3x128xf32>, vector<3x128xf32> -> vector<3x256xf32>
    %11 = arith.subf %10, %7 : vector<3x256xf32>
    %12 = vector.extract_strided_slice %7 {offsets = [1, 0], sizes = [1, 256], strides = [1, 1]} : vector<3x256xf32> to vector<1x256xf32>
    %13 = vector.extract_strided_slice %10 {offsets = [2, 0], sizes = [1, 256], strides = [1, 1]} : vector<3x256xf32> to vector<1x256xf32>
    %14 = arith.mulf %12, %13 : vector<1x256xf32>
    %15 = vector.extract_strided_slice %7 {offsets = [2, 0], sizes = [1, 256], strides = [1, 1]} : vector<3x256xf32> to vector<1x256xf32>
    %16 = vector.extract_strided_slice %10 {offsets = [1, 0], sizes = [1, 256], strides = [1, 1]} : vector<3x256xf32> to vector<1x256xf32>
    %17 = arith.mulf %15, %16 : vector<1x256xf32>
    %18 = arith.subf %14, %17 : vector<1x256xf32>
    %19 = vector.extract_strided_slice %7 {offsets = [2, 0], sizes = [1, 256], strides = [1, 1]} : vector<3x256xf32> to vector<1x256xf32>
    %20 = vector.extract_strided_slice %10 {offsets = [0, 0], sizes = [1, 256], strides = [1, 1]} : vector<3x256xf32> to vector<1x256xf32>
    %21 = arith.mulf %19, %20 : vector<1x256xf32>
    %22 = vector.extract_strided_slice %7 {offsets = [0, 0], sizes = [1, 256], strides = [1, 1]} : vector<3x256xf32> to vector<1x256xf32>
    %23 = vector.extract_strided_slice %10 {offsets = [2, 0], sizes = [1, 256], strides = [1, 1]} : vector<3x256xf32> to vector<1x256xf32>
    %24 = arith.mulf %22, %23 : vector<1x256xf32>
    %25 = arith.subf %21, %24 : vector<1x256xf32>
    %26 = vector.extract_strided_slice %7 {offsets = [0, 0], sizes = [1, 256], strides = [1, 1]} : vector<3x256xf32> to vector<1x256xf32>
    %27 = vector.extract_strided_slice %10 {offsets = [1, 0], sizes = [1, 256], strides = [1, 1]} : vector<3x256xf32> to vector<1x256xf32>
    %28 = arith.mulf %26, %27 : vector<1x256xf32>
    %29 = vector.extract_strided_slice %7 {offsets = [1, 0], sizes = [1, 256], strides = [1, 1]} : vector<3x256xf32> to vector<1x256xf32>
    %30 = vector.extract_strided_slice %10 {offsets = [0, 0], sizes = [1, 256], strides = [1, 1]} : vector<3x256xf32> to vector<1x256xf32>
    %31 = arith.mulf %29, %30 : vector<1x256xf32>
    %32 = arith.subf %28, %31 : vector<1x256xf32>
    %33 = tpu.concatenate %18, %25, %32 in 0 : vector<1x256xf32>, vector<1x256xf32>, vector<1x256xf32> -> vector<3x256xf32>
    %34 = tpu.concatenate %7, %11, %33 in 0 : vector<3x256xf32>, vector<3x256xf32>, vector<3x256xf32> -> vector<9x256xf32>
    %c0_3 = arith.constant 0 : index
    %c0_4 = arith.constant 0 : index
    %35 = vector.load %arg2[%c0_3, %c0_4] : memref<24x9xf32, #tpu.memory_space<vmem>>, vector<24x9xf32>
    %c0_5 = arith.constant 0 : index
    %c0_6 = arith.constant 0 : index
    %36 = vector.load %arg3[%c0_5, %c0_6] : memref<24x24xf32, #tpu.memory_space<vmem>>, vector<24x24xf32>
    %c0_7 = arith.constant 0 : index
    %c0_8 = arith.constant 0 : index
    %37 = vector.load %arg4[%c0_7, %c0_8] : memref<24x24xf32, #tpu.memory_space<vmem>>, vector<24x24xf32>
    %cst_9 = arith.constant dense<0.000000e+00> : vector<24x256xf32>
    %38 = tpu.matmul %35, %34, %cst_9 {dimension_numbers = #tpu.dot_dimension_numbers<[1], [0], [0], [1], [0, 0, 1, 1], [], []>} : vector<24x9xf32>, vector<9x256xf32>, vector<24x256xf32> -> vector<24x256xf32>
    %cst_10 = arith.constant dense<0.000000e+00> : vector<24x256xf32>
    %39 = tpu.matmul %36, %38, %cst_10 {dimension_numbers = #tpu.dot_dimension_numbers<[1], [0], [0], [1], [0, 0, 1, 1], [], []>} : vector<24x24xf32>, vector<24x256xf32>, vector<24x256xf32> -> vector<24x256xf32>
    %40 = arith.mulf %38, %39 : vector<24x256xf32>
    %cst_11 = arith.constant dense<0.000000e+00> : vector<24x256xf32>
    %41 = tpu.matmul %37, %40, %cst_11 {dimension_numbers = #tpu.dot_dimension_numbers<[1], [0], [0], [1], [0, 0, 1, 1], [], []>} : vector<24x24xf32>, vector<24x256xf32>, vector<24x256xf32> -> vector<24x256xf32>
    %42 = arith.mulf %39, %39 : vector<24x256xf32>
    %cst_12 = arith.constant dense<0.000000e+00> : vector<24x256xf32>
    %43 = tpu.matmul %37, %42, %cst_12 {dimension_numbers = #tpu.dot_dimension_numbers<[1], [0], [0], [1], [0, 0, 1, 1], [], []>} : vector<24x24xf32>, vector<24x256xf32>, vector<24x256xf32> -> vector<24x256xf32>
    %cst_13 = arith.constant 9.99999997E-7 : f32
    %44 = vector.broadcast %cst_13 : f32 to vector<24x256xf32>
    %45 = arith.addf %43, %44 : vector<24x256xf32>
    %cst_14 = arith.constant 0.000000e+00 : f32
    %46 = vector.broadcast %cst_14 : f32 to vector<24x256xf32>
    %47 = arith.cmpf oge, %41, %46 : vector<24x256xf32>
    %cst_15 = arith.constant 8.000000e-01 : f32
    %48 = vector.broadcast %cst_15 : f32 to vector<24x256xf32>
    %49 = arith.mulf %48, %41 : vector<24x256xf32>
    %50 = arith.divf %49, %45 : vector<24x256xf32>
    %cst_16 = arith.constant 0.000000e+00 : f32
    %51 = vector.broadcast %cst_16 : f32 to vector<24x256xf32>
    %52 = arith.select %47, %51, %50 : vector<24x256xi1>, vector<24x256xf32>
    %53 = arith.mulf %52, %39 : vector<24x256xf32>
    %54 = arith.subf %38, %53 : vector<24x256xf32>
    %c0_17 = arith.constant 0 : index
    %c0_18 = arith.constant 0 : index
    %55 = vector.load %arg5[%c0_17, %c0_18] : memref<48x24xf32, #tpu.memory_space<vmem>>, vector<48x24xf32>
    %c0_19 = arith.constant 0 : index
    %c0_20 = arith.constant 0 : index
    %56 = vector.load %arg6[%c0_19, %c0_20] : memref<48x48xf32, #tpu.memory_space<vmem>>, vector<48x48xf32>
    %c0_21 = arith.constant 0 : index
    %c0_22 = arith.constant 0 : index
    %57 = vector.load %arg7[%c0_21, %c0_22] : memref<48x48xf32, #tpu.memory_space<vmem>>, vector<48x48xf32>
    %cst_23 = arith.constant dense<0.000000e+00> : vector<48x256xf32>
    %58 = tpu.matmul %55, %54, %cst_23 {dimension_numbers = #tpu.dot_dimension_numbers<[1], [0], [0], [1], [0, 0, 1, 1], [], []>} : vector<48x24xf32>, vector<24x256xf32>, vector<48x256xf32> -> vector<48x256xf32>
    %cst_24 = arith.constant dense<0.000000e+00> : vector<48x256xf32>
    %59 = tpu.matmul %56, %58, %cst_24 {dimension_numbers = #tpu.dot_dimension_numbers<[1], [0], [0], [1], [0, 0, 1, 1], [], []>} : vector<48x48xf32>, vector<48x256xf32>, vector<48x256xf32> -> vector<48x256xf32>
    %60 = arith.mulf %58, %59 : vector<48x256xf32>
    %cst_25 = arith.constant dense<0.000000e+00> : vector<48x256xf32>
    %61 = tpu.matmul %57, %60, %cst_25 {dimension_numbers = #tpu.dot_dimension_numbers<[1], [0], [0], [1], [0, 0, 1, 1], [], []>} : vector<48x48xf32>, vector<48x256xf32>, vector<48x256xf32> -> vector<48x256xf32>
    %62 = arith.mulf %59, %59 : vector<48x256xf32>
    %cst_26 = arith.constant dense<0.000000e+00> : vector<48x256xf32>
    %63 = tpu.matmul %57, %62, %cst_26 {dimension_numbers = #tpu.dot_dimension_numbers<[1], [0], [0], [1], [0, 0, 1, 1], [], []>} : vector<48x48xf32>, vector<48x256xf32>, vector<48x256xf32> -> vector<48x256xf32>
    %cst_27 = arith.constant 9.99999997E-7 : f32
    %64 = vector.broadcast %cst_27 : f32 to vector<48x256xf32>
    %65 = arith.addf %63, %64 : vector<48x256xf32>
    %cst_28 = arith.constant 0.000000e+00 : f32
    %66 = vector.broadcast %cst_28 : f32 to vector<48x256xf32>
    %67 = arith.cmpf oge, %61, %66 : vector<48x256xf32>
    %cst_29 = arith.constant 8.000000e-01 : f32
    %68 = vector.broadcast %cst_29 : f32 to vector<48x256xf32>
    %69 = arith.mulf %68, %61 : vector<48x256xf32>
    %70 = arith.divf %69, %65 : vector<48x256xf32>
    %cst_30 = arith.constant 0.000000e+00 : f32
    %71 = vector.broadcast %cst_30 : f32 to vector<48x256xf32>
    %72 = arith.select %67, %71, %70 : vector<48x256xi1>, vector<48x256xf32>
    %73 = arith.mulf %72, %59 : vector<48x256xf32>
    %74 = arith.subf %58, %73 : vector<48x256xf32>
    %cst_31 = arith.constant dense<0.000000e+00> : vector<48xf32>
    %75 = vector.multi_reduction <add>, %74, %cst_31 [1] : vector<48x256xf32> to vector<48xf32>
    %76 = vector.shape_cast %75 : vector<48xf32> to vector<48x1xf32>
    %cst_32 = arith.constant 2.560000e+02 : f32
    %77 = vector.broadcast %cst_32 : f32 to vector<48x1xf32>
    %78 = arith.divf %76, %77 : vector<48x1xf32>
    %c0_33 = arith.constant 0 : index
    %c0_34 = arith.constant 0 : index
    %79 = vector.load %arg8[%c0_33, %c0_34] : memref<6x48xf32, #tpu.memory_space<vmem>>, vector<6x48xf32>
    %cst_35 = arith.constant dense<0.000000e+00> : vector<6x1xf32>
    %80 = tpu.matmul %79, %78, %cst_35 {dimension_numbers = #tpu.dot_dimension_numbers<[1], [0], [0], [1], [0, 0, 1, 1], [], []>} : vector<6x48xf32>, vector<48x1xf32>, vector<6x1xf32> -> vector<6x1xf32>
    %81 = vector.extract_strided_slice %80 {offsets = [0, 0], sizes = [3, 1], strides = [1, 1]} : vector<6x1xf32> to vector<3x1xf32>
    %82 = vector.extract_strided_slice %80 {offsets = [3, 0], sizes = [3, 1], strides = [1, 1]} : vector<6x1xf32> to vector<3x1xf32>
    %83 = arith.mulf %81, %81 : vector<3x1xf32>
    %cst_36 = arith.constant dense<0.000000e+00> : vector<1xf32>
    %84 = vector.multi_reduction <add>, %83, %cst_36 [0] : vector<3x1xf32> to vector<1xf32>
    %85 = vector.shape_cast %84 : vector<1xf32> to vector<1x1xf32>
    %86 = math.sqrt %85 : vector<1x1xf32>
    %cst_37 = arith.constant 9.99999971E-10 : f32
    %87 = vector.broadcast %cst_37 : f32 to vector<1x1xf32>
    %88 = arith.addf %86, %87 : vector<1x1xf32>
    %89 = vector.broadcast %88 : vector<1x1xf32> to vector<3x1xf32>
    %90 = arith.divf %81, %89 : vector<3x1xf32>
    %91 = arith.mulf %90, %82 : vector<3x1xf32>
    %cst_38 = arith.constant dense<0.000000e+00> : vector<1xf32>
    %92 = vector.multi_reduction <add>, %91, %cst_38 [0] : vector<3x1xf32> to vector<1xf32>
    %93 = vector.shape_cast %92 : vector<1xf32> to vector<1x1xf32>
    %94 = vector.broadcast %93 : vector<1x1xf32> to vector<3x1xf32>
    %95 = arith.mulf %94, %90 : vector<3x1xf32>
    %96 = arith.subf %82, %95 : vector<3x1xf32>
    %97 = arith.mulf %96, %96 : vector<3x1xf32>
    %cst_39 = arith.constant dense<0.000000e+00> : vector<1xf32>
    %98 = vector.multi_reduction <add>, %97, %cst_39 [0] : vector<3x1xf32> to vector<1xf32>
    %99 = vector.shape_cast %98 : vector<1xf32> to vector<1x1xf32>
    %100 = math.sqrt %99 : vector<1x1xf32>
    %cst_40 = arith.constant 9.99999971E-10 : f32
    %101 = vector.broadcast %cst_40 : f32 to vector<1x1xf32>
    %102 = arith.addf %100, %101 : vector<1x1xf32>
    %103 = vector.broadcast %102 : vector<1x1xf32> to vector<3x1xf32>
    %104 = arith.divf %96, %103 : vector<3x1xf32>
    %105 = vector.extract_strided_slice %90 {offsets = [1, 0], sizes = [1, 1], strides = [1, 1]} : vector<3x1xf32> to vector<1x1xf32>
    %106 = vector.extract_strided_slice %104 {offsets = [2, 0], sizes = [1, 1], strides = [1, 1]} : vector<3x1xf32> to vector<1x1xf32>
    %107 = arith.mulf %105, %106 : vector<1x1xf32>
    %108 = vector.extract_strided_slice %90 {offsets = [2, 0], sizes = [1, 1], strides = [1, 1]} : vector<3x1xf32> to vector<1x1xf32>
    %109 = vector.extract_strided_slice %104 {offsets = [1, 0], sizes = [1, 1], strides = [1, 1]} : vector<3x1xf32> to vector<1x1xf32>
    %110 = arith.mulf %108, %109 : vector<1x1xf32>
    %111 = arith.subf %107, %110 : vector<1x1xf32>
    %112 = vector.extract_strided_slice %90 {offsets = [2, 0], sizes = [1, 1], strides = [1, 1]} : vector<3x1xf32> to vector<1x1xf32>
    %113 = vector.extract_strided_slice %104 {offsets = [0, 0], sizes = [1, 1], strides = [1, 1]} : vector<3x1xf32> to vector<1x1xf32>
    %114 = arith.mulf %112, %113 : vector<1x1xf32>
    %115 = vector.extract_strided_slice %90 {offsets = [0, 0], sizes = [1, 1], strides = [1, 1]} : vector<3x1xf32> to vector<1x1xf32>
    %116 = vector.extract_strided_slice %104 {offsets = [2, 0], sizes = [1, 1], strides = [1, 1]} : vector<3x1xf32> to vector<1x1xf32>
    %117 = arith.mulf %115, %116 : vector<1x1xf32>
    %118 = arith.subf %114, %117 : vector<1x1xf32>
    %119 = vector.extract_strided_slice %90 {offsets = [0, 0], sizes = [1, 1], strides = [1, 1]} : vector<3x1xf32> to vector<1x1xf32>
    %120 = vector.extract_strided_slice %104 {offsets = [1, 0], sizes = [1, 1], strides = [1, 1]} : vector<3x1xf32> to vector<1x1xf32>
    %121 = arith.mulf %119, %120 : vector<1x1xf32>
    %122 = vector.extract_strided_slice %90 {offsets = [1, 0], sizes = [1, 1], strides = [1, 1]} : vector<3x1xf32> to vector<1x1xf32>
    %123 = vector.extract_strided_slice %104 {offsets = [0, 0], sizes = [1, 1], strides = [1, 1]} : vector<3x1xf32> to vector<1x1xf32>
    %124 = arith.mulf %122, %123 : vector<1x1xf32>
    %125 = arith.subf %121, %124 : vector<1x1xf32>
    %126 = tpu.concatenate %111, %118, %125 in 0 : vector<1x1xf32>, vector<1x1xf32>, vector<1x1xf32> -> vector<3x1xf32>
    %127 = tpu.concatenate %90, %104, %126 in 1 : vector<3x1xf32>, vector<3x1xf32>, vector<3x1xf32> -> vector<3x3xf32>
    %c0_41 = arith.constant 0 : index
    %c0_42 = arith.constant 0 : index
    %128 = vector.load %arg7[%c0_41, %c0_42] : memref<48x48xf32, #tpu.memory_space<vmem>>, vector<48x48xf32>
    %129 = arith.mulf %78, %78 : vector<48x1xf32>
    %cst_43 = arith.constant dense<0.000000e+00> : vector<48x1xf32>
    %130 = tpu.matmul %128, %129, %cst_43 {dimension_numbers = #tpu.dot_dimension_numbers<[1], [0], [0], [1], [0, 0, 1, 1], [], []>} : vector<48x48xf32>, vector<48x1xf32>, vector<48x1xf32> -> vector<48x1xf32>
    %cst_44 = arith.constant 9.99999996E-13 : f32
    %131 = vector.broadcast %cst_44 : f32 to vector<48x1xf32>
    %132 = arith.addf %130, %131 : vector<48x1xf32>
    %133 = math.sqrt %132 : vector<48x1xf32>
    %c0_45 = arith.constant 0 : index
    %c0_46 = arith.constant 0 : index
    %134 = vector.load %arg9[%c0_45, %c0_46] : memref<32x48xf32, #tpu.memory_space<vmem>>, vector<32x48xf32>
    %cst_47 = arith.constant dense<0.000000e+00> : vector<32x1xf32>
    %135 = tpu.matmul %134, %133, %cst_47 {dimension_numbers = #tpu.dot_dimension_numbers<[1], [0], [0], [1], [0, 0, 1, 1], [], []>} : vector<32x48xf32>, vector<48x1xf32>, vector<32x1xf32> -> vector<32x1xf32>
    %c0_48 = arith.constant 0 : index
    %c0_49 = arith.constant 0 : index
    %136 = vector.load %arg10[%c0_48, %c0_49] : memref<32x1xf32, #tpu.memory_space<vmem>>, vector<32x1xf32>
    %137 = arith.addf %135, %136 : vector<32x1xf32>
    %cst_50 = arith.constant 0.000000e+00 : f32
    %138 = vector.broadcast %cst_50 : f32 to vector<32x1xf32>
    %139 = arith.cmpf oge, %137, %138 : vector<32x1xf32>
    %cst_51 = arith.constant 2.000000e-01 : f32
    %140 = vector.broadcast %cst_51 : f32 to vector<32x1xf32>
    %141 = arith.mulf %140, %137 : vector<32x1xf32>
    %142 = arith.select %139, %137, %141 : vector<32x1xi1>, vector<32x1xf32>
    %c0_52 = arith.constant 0 : index
    %c0_53 = arith.constant 0 : index
    %143 = vector.load %arg11[%c0_52, %c0_53] : memref<3x256xf32, #tpu.memory_space<vmem>>, vector<3x256xf32>
    %c0_54 = arith.constant 0 : index
    %c0_55 = arith.constant 0 : index
    %144 = vector.load %arg12[%c0_54, %c0_55] : memref<64x3xf32, #tpu.memory_space<vmem>>, vector<64x3xf32>
    %cst_56 = arith.constant dense<0.000000e+00> : vector<64x256xf32>
    %145 = tpu.matmul %144, %143, %cst_56 {dimension_numbers = #tpu.dot_dimension_numbers<[1], [0], [0], [1], [0, 0, 1, 1], [], []>} : vector<64x3xf32>, vector<3x256xf32>, vector<64x256xf32> -> vector<64x256xf32>
    %c0_57 = arith.constant 0 : index
    %c0_58 = arith.constant 0 : index
    %146 = vector.load %arg13[%c0_57, %c0_58] : memref<64x32xf32, #tpu.memory_space<vmem>>, vector<64x32xf32>
    %cst_59 = arith.constant dense<0.000000e+00> : vector<64x1xf32>
    %147 = tpu.matmul %146, %142, %cst_59 {dimension_numbers = #tpu.dot_dimension_numbers<[1], [0], [0], [1], [0, 0, 1, 1], [], []>} : vector<64x32xf32>, vector<32x1xf32>, vector<64x1xf32> -> vector<64x1xf32>
    %148 = vector.broadcast %147 : vector<64x1xf32> to vector<64x256xf32>
    %149 = arith.addf %145, %148 : vector<64x256xf32>
    %c0_60 = arith.constant 0 : index
    %c0_61 = arith.constant 0 : index
    %150 = vector.load %arg14[%c0_60, %c0_61] : memref<64x1xf32, #tpu.memory_space<vmem>>, vector<64x1xf32>
    %151 = vector.broadcast %150 : vector<64x1xf32> to vector<64x256xf32>
    %152 = arith.addf %149, %151 : vector<64x256xf32>
    %cst_62 = arith.constant 0.000000e+00 : f32
    %153 = vector.broadcast %cst_62 : f32 to vector<64x256xf32>
    %154 = arith.maximumf %152, %153 : vector<64x256xf32>
    %c0_63 = arith.constant 0 : index
    %c0_64 = arith.constant 0 : index
    %155 = vector.load %arg15[%c0_63, %c0_64] : memref<64x64xf32, #tpu.memory_space<vmem>>, vector<64x64xf32>
    %cst_65 = arith.constant dense<0.000000e+00> : vector<64x256xf32>
    %156 = tpu.matmul %155, %154, %cst_65 {dimension_numbers = #tpu.dot_dimension_numbers<[1], [0], [0], [1], [0, 0, 1, 1], [], []>} : vector<64x64xf32>, vector<64x256xf32>, vector<64x256xf32> -> vector<64x256xf32>
    %c0_66 = arith.constant 0 : index
    %c0_67 = arith.constant 0 : index
    %157 = vector.load %arg16[%c0_66, %c0_67] : memref<64x1xf32, #tpu.memory_space<vmem>>, vector<64x1xf32>
    %158 = vector.broadcast %157 : vector<64x1xf32> to vector<64x256xf32>
    %159 = arith.addf %156, %158 : vector<64x256xf32>
    %cst_68 = arith.constant 0.000000e+00 : f32
    %160 = vector.broadcast %cst_68 : f32 to vector<64x256xf32>
    %161 = arith.maximumf %159, %160 : vector<64x256xf32>
    %c0_69 = arith.constant 0 : index
    %c0_70 = arith.constant 0 : index
    %162 = vector.load %arg17[%c0_69, %c0_70] : memref<3x64xf32, #tpu.memory_space<vmem>>, vector<3x64xf32>
    %cst_71 = arith.constant dense<0.000000e+00> : vector<3x256xf32>
    %163 = tpu.matmul %162, %161, %cst_71 {dimension_numbers = #tpu.dot_dimension_numbers<[1], [0], [0], [1], [0, 0, 1, 1], [], []>} : vector<3x64xf32>, vector<64x256xf32>, vector<3x256xf32> -> vector<3x256xf32>
    %c0_72 = arith.constant 0 : index
    %c0_73 = arith.constant 0 : index
    %164 = vector.load %arg18[%c0_72, %c0_73] : memref<3x1xf32, #tpu.memory_space<vmem>>, vector<3x1xf32>
    %165 = vector.broadcast %164 : vector<3x1xf32> to vector<3x256xf32>
    %166 = arith.addf %163, %165 : vector<3x256xf32>
    %167 = math.tanh %166 : vector<3x256xf32>
    %168 = vector.broadcast %90 : vector<3x1xf32> to vector<3x256xf32>
    %169 = arith.mulf %168, %167 : vector<3x256xf32>
    %cst_74 = arith.constant dense<0.000000e+00> : vector<256xf32>
    %170 = vector.multi_reduction <add>, %169, %cst_74 [0] : vector<3x256xf32> to vector<256xf32>
    %171 = vector.shape_cast %170 : vector<256xf32> to vector<1x256xf32>
    %172 = vector.broadcast %104 : vector<3x1xf32> to vector<3x256xf32>
    %173 = arith.mulf %172, %167 : vector<3x256xf32>
    %cst_75 = arith.constant dense<0.000000e+00> : vector<256xf32>
    %174 = vector.multi_reduction <add>, %173, %cst_75 [0] : vector<3x256xf32> to vector<256xf32>
    %175 = vector.shape_cast %174 : vector<256xf32> to vector<1x256xf32>
    %176 = vector.broadcast %126 : vector<3x1xf32> to vector<3x256xf32>
    %177 = arith.mulf %176, %167 : vector<3x256xf32>
    %cst_76 = arith.constant dense<0.000000e+00> : vector<256xf32>
    %178 = vector.multi_reduction <add>, %177, %cst_76 [0] : vector<3x256xf32> to vector<256xf32>
    %179 = vector.shape_cast %178 : vector<256xf32> to vector<1x256xf32>
    %180 = tpu.concatenate %171, %175, %179 in 0 : vector<1x256xf32>, vector<1x256xf32>, vector<1x256xf32> -> vector<3x256xf32>
    %181 = vector.broadcast %5 : vector<3x1xf32> to vector<3x256xf32>
    %182 = arith.addf %180, %181 : vector<3x256xf32>
    %c0_77 = arith.constant 0 : index
    %c0_78 = arith.constant 0 : index
    %c0_79 = arith.constant 0 : index
    %183 = vector.load %arg19[%c0_77, %c0_78, %c0_79] : memref<1x3x256xf32, #tpu.memory_space<vmem>>, vector<1x3x256xf32>
    %184 = vector.shape_cast %183 : vector<1x3x256xf32> to vector<3x256xf32>
    %185 = vector.shape_cast %182 : vector<3x256xf32> to vector<1x3x256xf32>
    tpu.vector_store %arg19[%c0_77, %c0_78, %c0_79], %185 {strides = array<i32>} : memref<1x3x256xf32, #tpu.memory_space<vmem>>, vector<1x3x256xf32>,
    %cst_80 = arith.constant dense<0.000000e+00> : vector<3x256xf32>
    %186 = tpu.matmul %127, %7, %cst_80 {dimension_numbers = #tpu.dot_dimension_numbers<[1], [0], [0], [1], [0, 0, 1, 1], [], []>} : vector<3x3xf32>, vector<3x256xf32>, vector<3x256xf32> -> vector<3x256xf32>
    %c0_81 = arith.constant 0 : index
    %c0_82 = arith.constant 0 : index
    %c0_83 = arith.constant 0 : index
    %187 = vector.load %arg20[%c0_81, %c0_82, %c0_83] : memref<1x3x256xf32, #tpu.memory_space<vmem>>, vector<1x3x256xf32>
    %188 = vector.shape_cast %187 : vector<1x3x256xf32> to vector<3x256xf32>
    %189 = vector.shape_cast %186 : vector<3x256xf32> to vector<1x3x256xf32>
    tpu.vector_store %arg20[%c0_81, %c0_82, %c0_83], %189 {strides = array<i32>} : memref<1x3x256xf32, #tpu.memory_space<vmem>>, vector<1x3x256xf32>,
    %c0_84 = arith.constant 0 : index
    %c0_85 = arith.constant 0 : index
    %c0_86 = arith.constant 0 : index
    %190 = vector.load %arg21[%c0_84, %c0_85, %c0_86] : memref<1x3x256xf32, #tpu.memory_space<vmem>>, vector<1x3x256xf32>
    %191 = vector.shape_cast %190 : vector<1x3x256xf32> to vector<3x256xf32>
    %192 = vector.shape_cast %167 : vector<3x256xf32> to vector<1x3x256xf32>
    tpu.vector_store %arg21[%c0_84, %c0_85, %c0_86], %192 {strides = array<i32>} : memref<1x3x256xf32, #tpu.memory_space<vmem>>, vector<1x3x256xf32>,
    %c0_87 = arith.constant 0 : index
    %c0_88 = arith.constant 0 : index
    %c0_89 = arith.constant 0 : index
    %193 = vector.load %arg22[%c0_87, %c0_88, %c0_89] : memref<1x3x3xf32, #tpu.memory_space<vmem>>, vector<1x3x3xf32>
    %194 = vector.shape_cast %193 : vector<1x3x3xf32> to vector<3x3xf32>
    %195 = vector.shape_cast %127 : vector<3x3xf32> to vector<1x3x3xf32>
    tpu.vector_store %arg22[%c0_87, %c0_88, %c0_89], %195 {strides = array<i32>} : memref<1x3x3xf32, #tpu.memory_space<vmem>>, vector<1x3x3xf32>,
    return
  }
  func.func @transform_0(%arg0: i32) -> (i32, i32, i32) {
    %c0_i32 = arith.constant 0 : i32
    %c0_i32_0 = arith.constant 0 : i32
    %c0_i32_1 = arith.constant 0 : i32
    return %arg0, %c0_i32, %c0_i32_0 : i32, i32, i32
  }
  func.func @transform_1(%arg0: i32) -> (i32, i32) {
    %c0_i32 = arith.constant 0 : i32
    %c0_i32_0 = arith.constant 0 : i32
    %c0_i32_1 = arith.constant 0 : i32
    return %c0_i32, %c0_i32_0 : i32, i32
  }
  func.func @transform_2(%arg0: i32) -> (i32, i32) {
    %c0_i32 = arith.constant 0 : i32
    %c0_i32_0 = arith.constant 0 : i32
    %c0_i32_1 = arith.constant 0 : i32
    return %c0_i32, %c0_i32_0 : i32, i32
  }
  func.func @transform_3(%arg0: i32) -> (i32, i32) {
    %c0_i32 = arith.constant 0 : i32
    %c0_i32_0 = arith.constant 0 : i32
    %c0_i32_1 = arith.constant 0 : i32
    return %c0_i32, %c0_i32_0 : i32, i32
  }
  func.func @transform_4(%arg0: i32) -> (i32, i32) {
    %c0_i32 = arith.constant 0 : i32
    %c0_i32_0 = arith.constant 0 : i32
    %c0_i32_1 = arith.constant 0 : i32
    return %c0_i32, %c0_i32_0 : i32, i32
  }
  func.func @transform_5(%arg0: i32) -> (i32, i32) {
    %c0_i32 = arith.constant 0 : i32
    %c0_i32_0 = arith.constant 0 : i32
    %c0_i32_1 = arith.constant 0 : i32
    return %c0_i32, %c0_i32_0 : i32, i32
  }
  func.func @transform_6(%arg0: i32) -> (i32, i32) {
    %c0_i32 = arith.constant 0 : i32
    %c0_i32_0 = arith.constant 0 : i32
    %c0_i32_1 = arith.constant 0 : i32
    return %c0_i32, %c0_i32_0 : i32, i32
  }
  func.func @transform_7(%arg0: i32) -> (i32, i32) {
    %c0_i32 = arith.constant 0 : i32
    %c0_i32_0 = arith.constant 0 : i32
    %c0_i32_1 = arith.constant 0 : i32
    return %c0_i32, %c0_i32_0 : i32, i32
  }
  func.func @transform_8(%arg0: i32) -> (i32, i32) {
    %c0_i32 = arith.constant 0 : i32
    %c0_i32_0 = arith.constant 0 : i32
    %c0_i32_1 = arith.constant 0 : i32
    return %c0_i32, %c0_i32_0 : i32, i32
  }
  func.func @transform_9(%arg0: i32) -> (i32, i32) {
    %c0_i32 = arith.constant 0 : i32
    %c0_i32_0 = arith.constant 0 : i32
    %c0_i32_1 = arith.constant 0 : i32
    return %c0_i32, %c0_i32_0 : i32, i32
  }
  func.func @transform_10(%arg0: i32) -> (i32, i32) {
    %c0_i32 = arith.constant 0 : i32
    %c0_i32_0 = arith.constant 0 : i32
    %c0_i32_1 = arith.constant 0 : i32
    return %c0_i32, %c0_i32_0 : i32, i32
  }
  func.func @transform_11(%arg0: i32) -> (i32, i32) {
    %c0_i32 = arith.constant 0 : i32
    %c0_i32_0 = arith.constant 0 : i32
    %c0_i32_1 = arith.constant 0 : i32
    return %c0_i32, %c0_i32_0 : i32, i32
  }
  func.func @transform_12(%arg0: i32) -> (i32, i32) {
    %c0_i32 = arith.constant 0 : i32
    %c0_i32_0 = arith.constant 0 : i32
    %c0_i32_1 = arith.constant 0 : i32
    return %c0_i32, %c0_i32_0 : i32, i32
  }
  func.func @transform_13(%arg0: i32) -> (i32, i32) {
    %c0_i32 = arith.constant 0 : i32
    %c0_i32_0 = arith.constant 0 : i32
    %c0_i32_1 = arith.constant 0 : i32
    return %c0_i32, %c0_i32_0 : i32, i32
  }
  func.func @transform_14(%arg0: i32) -> (i32, i32) {
    %c0_i32 = arith.constant 0 : i32
    %c0_i32_0 = arith.constant 0 : i32
    %c0_i32_1 = arith.constant 0 : i32
    return %c0_i32, %c0_i32_0 : i32, i32
  }
  func.func @transform_15(%arg0: i32) -> (i32, i32) {
    %c0_i32 = arith.constant 0 : i32
    %c0_i32_0 = arith.constant 0 : i32
    %c0_i32_1 = arith.constant 0 : i32
    return %c0_i32, %c0_i32_0 : i32, i32
  }
  func.func @transform_16(%arg0: i32) -> (i32, i32) {
    %c0_i32 = arith.constant 0 : i32
    %c0_i32_0 = arith.constant 0 : i32
    %c0_i32_1 = arith.constant 0 : i32
    return %c0_i32, %c0_i32_0 : i32, i32
  }
  func.func @transform_17(%arg0: i32) -> (i32, i32) {
    %c0_i32 = arith.constant 0 : i32
    %c0_i32_0 = arith.constant 0 : i32
    %c0_i32_1 = arith.constant 0 : i32
    return %c0_i32, %c0_i32_0 : i32, i32
  }
  func.func @transform_18(%arg0: i32) -> (i32, i32, i32) {
    %c0_i32 = arith.constant 0 : i32
    %c0_i32_0 = arith.constant 0 : i32
    %c0_i32_1 = arith.constant 0 : i32
    return %arg0, %c0_i32, %c0_i32_0 : i32, i32, i32
  }
  func.func @transform_19(%arg0: i32) -> (i32, i32, i32) {
    %c0_i32 = arith.constant 0 : i32
    %c0_i32_0 = arith.constant 0 : i32
    %c0_i32_1 = arith.constant 0 : i32
    return %arg0, %c0_i32, %c0_i32_0 : i32, i32, i32
  }
  func.func @transform_20(%arg0: i32) -> (i32, i32, i32) {
    %c0_i32 = arith.constant 0 : i32
    %c0_i32_0 = arith.constant 0 : i32
    %c0_i32_1 = arith.constant 0 : i32
    return %arg0, %c0_i32, %c0_i32_0 : i32, i32, i32
  }
  func.func @transform_21(%arg0: i32) -> (i32, i32, i32) {
    %c0_i32 = arith.constant 0 : i32
    %c0_i32_0 = arith.constant 0 : i32
    %c0_i32_1 = arith.constant 0 : i32
    return %arg0, %c0_i32, %c0_i32_0 : i32, i32, i32
  }
}

</mosaic_0001>

<llo_original>
// kernel: _lambda_.1
$region0: #{_lambda_.1}
  #allocation0 [shape = 'u32[]', space=smem, size = 0x4, offset = 0x4, fixed_abs, tag = 'smem constant byte address 0x4 - core index']
  #allocation1 [shape = 'u32[144,128]{1,0:T(1,128)}', space=vmem, size = 0x12000, scoped, tag = 'internal scratch']
  %s0 = inlined_call_operand.vmem [shape: f32[2,3,256], index: 0, kind: input, shape index: {}]
  %s1 = inlined_call_operand.vmem [shape: f32[24,9], index: 1, kind: input, shape index: {}]
  %s2 = inlined_call_operand.vmem [shape: f32[24,24], index: 2, kind: input, shape index: {}]
  %s3 = inlined_call_operand.vmem [shape: f32[24,24], index: 3, kind: input, shape index: {}]
  %s4 = inlined_call_operand.vmem [shape: f32[48,24], index: 4, kind: input, shape index: {}]
  %s5 = inlined_call_operand.vmem [shape: f32[48,48], index: 5, kind: input, shape index: {}]
  %s6 = inlined_call_operand.vmem [shape: f32[48,48], index: 6, kind: input, shape index: {}]
  %s7 = inlined_call_operand.vmem [shape: f32[6,48], index: 7, kind: input, shape index: {}]
  %s8 = inlined_call_operand.vmem [shape: f32[32,48], index: 8, kind: input, shape index: {}]
  %s9 = inlined_call_operand.vmem [shape: f32[32,1], index: 9, kind: input, shape index: {}]
  %s10 = inlined_call_operand.vmem [shape: f32[3,256], index: 10, kind: input, shape index: {}]
  %s11 = inlined_call_operand.vmem [shape: f32[64,3], index: 11, kind: input, shape index: {}]
  %s12 = inlined_call_operand.vmem [shape: f32[64,32], index: 12, kind: input, shape index: {}]
  %s13 = inlined_call_operand.vmem [shape: f32[64,1], index: 13, kind: input, shape index: {}]
  %s14 = inlined_call_operand.vmem [shape: f32[64,64], index: 14, kind: input, shape index: {}]
  %s15 = inlined_call_operand.vmem [shape: f32[64,1], index: 15, kind: input, shape index: {}]
  %s16 = inlined_call_operand.vmem [shape: f32[3,64], index: 16, kind: input, shape index: {}]
  %s17 = inlined_call_operand.vmem [shape: f32[3,1], index: 17, kind: input, shape index: {}]
  %s18 = inlined_call_operand.vmem [shape: f32[2,3,256], index: 18, kind: output, shape index: {0}]
  %s19 = inlined_call_operand.vmem [shape: f32[2,3,256], index: 19, kind: output, shape index: {1}]
  %s20 = inlined_call_operand.vmem [shape: f32[2,3,256], index: 20, kind: output, shape index: {2}]
  %s21 = inlined_call_operand.vmem [shape: f32[2,3,3], index: 21, kind: output, shape index: {3}]
  %22 = xla_tuple %s18, %s19, %s20, %s21
  %s23 = sld [smem:[#allocation0]]
  $region129: #{_lambda_.1} parent=0
    _
  %s25 = ssub.s32 1, %s23
  %s26 = scalar_select 0, %s25, %s23
  loop: start=0, step=1, limit=4
  $region2: #{_lambda_.1} parent=0 // loop_pre_header
    _
  $region3: #{_lambda_.1} parent=0 // loop_header
    %s28 = sphi 0, %s32
    %p29 = scmp.ge.s32.totalorder %s28, 4
    %s38 = sphi 0, %s40
    %s41 = sphi 0, %s38
    %s42 = sphi 0, %s41
    %s58 = sphi 0, %s42
    %s62 = sphi 0, %s62
    %s64 = sphi 0, %s62
    %s65 = sphi 0, %s64
    %s79 = sphi 0, %s65
    %s83 = sphi 0, %s83
    %s85 = sphi 0, %s83
    %s86 = sphi 0, %s85
    %s100 = sphi 0, %s86
    %s104 = sphi 0, %s104
    %s106 = sphi 0, %s104
    %s107 = sphi 0, %s106
    %s121 = sphi 0, %s107
    %s125 = sphi 0, %s125
    %s127 = sphi 0, %s125
    %s128 = sphi 0, %s127
    %s142 = sphi 0, %s128
    %s146 = sphi 0, %s146
    %s148 = sphi 0, %s146
    %s149 = sphi 0, %s148
    %s163 = sphi 0, %s149
    %s167 = sphi 0, %s167
    %s169 = sphi 0, %s167
    %s170 = sphi 0, %s169
    %s184 = sphi 0, %s170
    %s188 = sphi 0, %s188
    %s190 = sphi 0, %s188
    %s191 = sphi 0, %s190
    %s205 = sphi 0, %s191
    %s209 = sphi 0, %s209
    %s211 = sphi 0, %s209
    %s212 = sphi 0, %s211
    %s226 = sphi 0, %s212
    %s230 = sphi 0, %s230
    %s232 = sphi 0, %s230
    %s233 = sphi 0, %s232
    %s247 = sphi 0, %s233
    %s251 = sphi 0, %s251
    %s253 = sphi 0, %s251
    %s254 = sphi 0, %s253
    %s268 = sphi 0, %s254
    %s272 = sphi 0, %s272
    %s274 = sphi 0, %s272
    %s275 = sphi 0, %s274
    %s289 = sphi 0, %s275
    %s293 = sphi 0, %s293
    %s295 = sphi 0, %s293
    %s296 = sphi 0, %s295
    %s310 = sphi 0, %s296
    %s314 = sphi 0, %s314
    %s316 = sphi 0, %s314
    %s317 = sphi 0, %s316
    %s331 = sphi 0, %s317
    %s335 = sphi 0, %s335
    %s337 = sphi 0, %s335
    %s338 = sphi 0, %s337
    %s352 = sphi 0, %s338
    %s356 = sphi 0, %s356
    %s358 = sphi 0, %s356
    %s359 = sphi 0, %s358
    %s373 = sphi 0, %s359
    %s377 = sphi 0, %s377
    %s379 = sphi 0, %s377
    %s380 = sphi 0, %s379
    %s394 = sphi 0, %s380
    %s398 = sphi 0, %s398
    %s400 = sphi 0, %s398
    %s401 = sphi 0, %s400
    %s415 = sphi 0, %s401
    %s421 = sphi 0, %s423
    %s424 = sphi 0, %s421
    %s425 = sphi 0, %s424
    %s441 = sphi 0, %s425
    %s447 = sphi 0, %s449
    %s450 = sphi 0, %s447
    %s451 = sphi 0, %s450
    %s467 = sphi 0, %s451
    %s473 = sphi 0, %s475
    %s476 = sphi 0, %s473
    %s477 = sphi 0, %s476
    %s493 = sphi 0, %s477
    %s499 = sphi 0, %s501
    %s502 = sphi 0, %s499
    %s503 = sphi 0, %s502
    %s519 = sphi 0, %s503
  $region4: #{_lambda_.1} parent=0 // loop_header_branch
    %31 = sbr.rel (%p29) target = $region8
  $region5: #{_lambda_.1} parent=0 // loop_body
    %s33 = ssub.s32 %s28, 1
    %s34 = ssub.s32 %s28, 2
    %s35 = sadd.s32 %s28, 1
    %s36 = ssub.s32 %s28, %s35
    %p37 = scmp.eq.s32.totalorder %s36, 0
    %s39 = sadd.s32 %s38, 1
    %s40 = scalar_select %p37, %s38, %s39
    %p43 = pneg %p37
    %p44 = scmp.eq.s32.totalorder %s28, 1
    %p45 = por %p43, %p44
    %p46 = scmp.ne.s32.totalorder %s38, %s41
    %p47 = scmp.eq.s32.totalorder %s28, 0
    %p48 = por %p46, %p47
    %p49 = scmp.ne.s32.totalorder %s38, %s41
    %p50 = scmp.eq.s32.totalorder %s33, 1
    %p51 = por %p49, %p50
    %p52 = scmp.ne.s32.totalorder %s41, %s42
    %p53 = scmp.eq.s32.totalorder %s33, 0
    %p54 = por %p52, %p53
    %p55 = scmp.ne.s32.totalorder %s41, %s42
    %p56 = scmp.eq.s32.totalorder %s34, 1
    %p57 = por %p55, %p56
    %p59 = scmp.ne.s32.totalorder %s42, %s58
    %p60 = scmp.eq.s32.totalorder %s34, 0
    %p61 = por %p59, %p60
    %s63 = sadd.s32 %s62, 1
    %p66 = scmp.eq.s32.totalorder %s28, 1
    %p67 = scmp.ne.s32.totalorder %s62, %s64
    %p68 = scmp.eq.s32.totalorder %s28, 0
    %p69 = por %p67, %p68
    %p70 = scmp.ne.s32.totalorder %s62, %s64
    %p71 = scmp.eq.s32.totalorder %s33, 1
    %p72 = por %p70, %p71
    %p73 = scmp.ne.s32.totalorder %s64, %s65
    %p74 = scmp.eq.s32.totalorder %s33, 0
    %p75 = por %p73, %p74
    %p76 = scmp.ne.s32.totalorder %s64, %s65
    %p77 = scmp.eq.s32.totalorder %s34, 1
    %p78 = por %p76, %p77
    %p80 = scmp.ne.s32.totalorder %s65, %s79
    %p81 = scmp.eq.s32.totalorder %s34, 0
    %p82 = por %p80, %p81
    %s84 = sadd.s32 %s83, 1
    %p87 = scmp.eq.s32.totalorder %s28, 1
    %p88 = scmp.ne.s32.totalorder %s83, %s85
    %p89 = scmp.eq.s32.totalorder %s28, 0
    %p90 = por %p88, %p89
    %p91 = scmp.ne.s32.totalorder %s83, %s85
    %p92 = scmp.eq.s32.totalorder %s33, 1
    %p93 = por %p91, %p92
    %p94 = scmp.ne.s32.totalorder %s85, %s86
    %p95 = scmp.eq.s32.totalorder %s33, 0
    %p96 = por %p94, %p95
    %p97 = scmp.ne.s32.totalorder %s85, %s86
    %p98 = scmp.eq.s32.totalorder %s34, 1
    %p99 = por %p97, %p98
    %p101 = scmp.ne.s32.totalorder %s86, %s100
    %p102 = scmp.eq.s32.totalorder %s34, 0
    %p103 = por %p101, %p102
    %s105 = sadd.s32 %s104, 1
    %p108 = scmp.eq.s32.totalorder %s28, 1
    %p109 = scmp.ne.s32.totalorder %s104, %s106
    %p110 = scmp.eq.s32.totalorder %s28, 0
    %p111 = por %p109, %p110
    %p112 = scmp.ne.s32.totalorder %s104, %s106
    %p113 = scmp.eq.s32.totalorder %s33, 1
    %p114 = por %p112, %p113
    %p115 = scmp.ne.s32.totalorder %s106, %s107
    %p116 = scmp.eq.s32.totalorder %s33, 0
    %p117 = por %p115, %p116
    %p118 = scmp.ne.s32.totalorder %s106, %s107
    %p119 = scmp.eq.s32.totalorder %s34, 1
    %p120 = por %p118, %p119
    %p122 = scmp.ne.s32.totalorder %s107, %s121
    %p123 = scmp.eq.s32.totalorder %s34, 0
    %p124 = por %p122, %p123
    %s126 = sadd.s32 %s125, 1
    %p129 = scmp.eq.s32.totalorder %s28, 1
    %p130 = scmp.ne.s32.totalorder %s125, %s127
    %p131 = scmp.eq.s32.totalorder %s28, 0
    %p132 = por %p130, %p131
    %p133 = scmp.ne.s32.totalorder %s125, %s127
    %p134 = scmp.eq.s32.totalorder %s33, 1
    %p135 = por %p133, %p134
    %p136 = scmp.ne.s32.totalorder %s127, %s128
    %p137 = scmp.eq.s32.totalorder %s33, 0
    %p138 = por %p136, %p137
    %p139 = scmp.ne.s32.totalorder %s127, %s128
    %p140 = scmp.eq.s32.totalorder %s34, 1
    %p141 = por %p139, %p140
    %p143 = scmp.ne.s32.totalorder %s128, %s142
    %p144 = scmp.eq.s32.totalorder %s34, 0
    %p145 = por %p143, %p144
    %s147 = sadd.s32 %s146, 1
    %p150 = scmp.eq.s32.totalorder %s28, 1
    %p151 = scmp.ne.s32.totalorder %s146, %s148
    %p152 = scmp.eq.s32.totalorder %s28, 0
    %p153 = por %p151, %p152
    %p154 = scmp.ne.s32.totalorder %s146, %s148
    %p155 = scmp.eq.s32.totalorder %s33, 1
    %p156 = por %p154, %p155
    %p157 = scmp.ne.s32.totalorder %s148, %s149
    %p158 = scmp.eq.s32.totalorder %s33, 0
    %p159 = por %p157, %p158
    %p160 = scmp.ne.s32.totalorder %s148, %s149
    %p161 = scmp.eq.s32.totalorder %s34, 1
    %p162 = por %p160, %p161
    %p164 = scmp.ne.s32.totalorder %s149, %s163
    %p165 = scmp.eq.s32.totalorder %s34, 0
    %p166 = por %p164, %p165
    %s168 = sadd.s32 %s167, 1
    %p171 = scmp.eq.s32.totalorder %s28, 1
    %p172 = scmp.ne.s32.totalorder %s167, %s169
    %p173 = scmp.eq.s32.totalorder %s28, 0
    %p174 = por %p172, %p173
    %p175 = scmp.ne.s32.totalorder %s167, %s169
    %p176 = scmp.eq.s32.totalorder %s33, 1
    %p177 = por %p175, %p176
    %p178 = scmp.ne.s32.totalorder %s169, %s170
    %p179 = scmp.eq.s32.totalorder %s33, 0
    %p180 = por %p178, %p179
    %p181 = scmp.ne.s32.totalorder %s169, %s170
    %p182 = scmp.eq.s32.totalorder %s34, 1
    %p183 = por %p181, %p182
    %p185 = scmp.ne.s32.totalorder %s170, %s184
    %p186 = scmp.eq.s32.totalorder %s34, 0
    %p187 = por %p185, %p186
    %s189 = sadd.s32 %s188, 1
    %p192 = scmp.eq.s32.totalorder %s28, 1
    %p193 = scmp.ne.s32.totalorder %s188, %s190
    %p194 = scmp.eq.s32.totalorder %s28, 0
    %p195 = por %p193, %p194
    %p196 = scmp.ne.s32.totalorder %s188, %s190
    %p197 = scmp.eq.s32.totalorder %s33, 1
    %p198 = por %p196, %p197
    %p199 = scmp.ne.s32.totalorder %s190, %s191
    %p200 = scmp.eq.s32.totalorder %s33, 0
    %p201 = por %p199, %p200
    %p202 = scmp.ne.s32.totalorder %s190, %s191
    %p203 = scmp.eq.s32.totalorder %s34, 1
    %p204 = por %p202, %p203
    %p206 = scmp.ne.s32.totalorder %s191, %s205
    %p207 = scmp.eq.s32.totalorder %s34, 0
    %p208 = por %p206, %p207
    %s210 = sadd.s32 %s209, 1
    %p213 = scmp.eq.s32.totalorder %s28, 1
    %p214 = scmp.ne.s32.totalorder %s209, %s211
    %p215 = scmp.eq.s32.totalorder %s28, 0
    %p216 = por %p214, %p215
    %p217 = scmp.ne.s32.totalorder %s209, %s211
    %p218 = scmp.eq.s32.totalorder %s33, 1
    %p219 = por %p217, %p218
    %p220 = scmp.ne.s32.totalorder %s211, %s212
    %p221 = scmp.eq.s32.totalorder %s33, 0
    %p222 = por %p220, %p221
    %p223 = scmp.ne.s32.totalorder %s211, %s212
    %p224 = scmp.eq.s32.totalorder %s34, 1
    %p225 = por %p223, %p224
    %p227 = scmp.ne.s32.totalorder %s212, %s226
    %p228 = scmp.eq.s32.totalorder %s34, 0
    %p229 = por %p227, %p228
    %s231 = sadd.s32 %s230, 1
    %p234 = scmp.eq.s32.totalorder %s28, 1
    %p235 = scmp.ne.s32.totalorder %s230, %s232
    %p236 = scmp.eq.s32.totalorder %s28, 0
    %p237 = por %p235, %p236
    %p238 = scmp.ne.s32.totalorder %s230, %s232
    %p239 = scmp.eq.s32.totalorder %s33, 1
    %p240 = por %p238, %p239
    %p241 = scmp.ne.s32.totalorder %s232, %s233
    %p242 = scmp.eq.s32.totalorder %s33, 0
    %p243 = por %p241, %p242
    %p244 = scmp.ne.s32.totalorder %s232, %s233
    %p245 = scmp.eq.s32.totalorder %s34, 1
    %p246 = por %p244, %p245
    %p248 = scmp.ne.s32.totalorder %s233, %s247
    %p249 = scmp.eq.s32.totalorder %s34, 0
    %p250 = por %p248, %p249
    %s252 = sadd.s32 %s251, 1
    %p255 = scmp.eq.s32.totalorder %s28, 1
    %p256 = scmp.ne.s32.totalorder %s251, %s253
    %p257 = scmp.eq.s32.totalorder %s28, 0
    %p258 = por %p256, %p257
    %p259 = scmp.ne.s32.totalorder %s251, %s253
    %p260 = scmp.eq.s32.totalorder %s33, 1
    %p261 = por %p259, %p260
    %p262 = scmp.ne.s32.totalorder %s253, %s254
    %p263 = scmp.eq.s32.totalorder %s33, 0
    %p264 = por %p262, %p263
    %p265 = scmp.ne.s32.totalorder %s253, %s254
    %p266 = scmp.eq.s32.totalorder %s34, 1
    %p267 = por %p265, %p266
    %p269 = scmp.ne.s32.totalorder %s254, %s268
    %p270 = scmp.eq.s32.totalorder %s34, 0
    %p271 = por %p269, %p270
    %s273 = sadd.s32 %s272, 1
    %p276 = scmp.eq.s32.totalorder %s28, 1
    %p277 = scmp.ne.s32.totalorder %s272, %s274
    %p278 = scmp.eq.s32.totalorder %s28, 0
    %p279 = por %p277, %p278
    %p280 = scmp.ne.s32.totalorder %s272, %s274
    %p281 = scmp.eq.s32.totalorder %s33, 1
    %p282 = por %p280, %p281
    %p283 = scmp.ne.s32.totalorder %s274, %s275
    %p284 = scmp.eq.s32.totalorder %s33, 0
    %p285 = por %p283, %p284
    %p286 = scmp.ne.s32.totalorder %s274, %s275
    %p287 = scmp.eq.s32.totalorder %s34, 1
    %p288 = por %p286, %p287
    %p290 = scmp.ne.s32.totalorder %s275, %s289
    %p291 = scmp.eq.s32.totalorder %s34, 0
    %p292 = por %p290, %p291
    %s294 = sadd.s32 %s293, 1
    %p297 = scmp.eq.s32.totalorder %s28, 1
    %p298 = scmp.ne.s32.totalorder %s293, %s295
    %p299 = scmp.eq.s32.totalorder %s28, 0
    %p300 = por %p298, %p299
    %p301 = scmp.ne.s32.totalorder %s293, %s295
    %p302 = scmp.eq.s32.totalorder %s33, 1
    %p303 = por %p301, %p302
    %p304 = scmp.ne.s32.totalorder %s295, %s296
    %p305 = scmp.eq.s32.totalorder %s33, 0
    %p306 = por %p304, %p305
    %p307 = scmp.ne.s32.totalorder %s295, %s296
    %p308 = scmp.eq.s32.totalorder %s34, 1
    %p309 = por %p307, %p308
    %p311 = scmp.ne.s32.totalorder %s296, %s310
    %p312 = scmp.eq.s32.totalorder %s34, 0
    %p313 = por %p311, %p312
    %s315 = sadd.s32 %s314, 1
    %p318 = scmp.eq.s32.totalorder %s28, 1
    %p319 = scmp.ne.s32.totalorder %s314, %s316
    %p320 = scmp.eq.s32.totalorder %s28, 0
    %p321 = por %p319, %p320
    %p322 = scmp.ne.s32.totalorder %s314, %s316
    %p323 = scmp.eq.s32.totalorder %s33, 1
    %p324 = por %p322, %p323
    %p325 = scmp.ne.s32.totalorder %s316, %s317
    %p326 = scmp.eq.s32.totalorder %s33, 0
    %p327 = por %p325, %p326
    %p328 = scmp.ne.s32.totalorder %s316, %s317
    %p329 = scmp.eq.s32.totalorder %s34, 1
    %p330 = por %p328, %p329
    %p332 = scmp.ne.s32.totalorder %s317, %s331
    %p333 = scmp.eq.s32.totalorder %s34, 0
    %p334 = por %p332, %p333
    %s336 = sadd.s32 %s335, 1
    %p339 = scmp.eq.s32.totalorder %s28, 1
    %p340 = scmp.ne.s32.totalorder %s335, %s337
    %p341 = scmp.eq.s32.totalorder %s28, 0
    %p342 = por %p340, %p341
    %p343 = scmp.ne.s32.totalorder %s335, %s337
    %p344 = scmp.eq.s32.totalorder %s33, 1
    %p345 = por %p343, %p344
    %p346 = scmp.ne.s32.totalorder %s337, %s338
    %p347 = scmp.eq.s32.totalorder %s33, 0
    %p348 = por %p346, %p347
    %p349 = scmp.ne.s32.totalorder %s337, %s338
    %p350 = scmp.eq.s32.totalorder %s34, 1
    %p351 = por %p349, %p350
    %p353 = scmp.ne.s32.totalorder %s338, %s352
    %p354 = scmp.eq.s32.totalorder %s34, 0
    %p355 = por %p353, %p354
    %s357 = sadd.s32 %s356, 1
    %p360 = scmp.eq.s32.totalorder %s28, 1
    %p361 = scmp.ne.s32.totalorder %s356, %s358
    %p362 = scmp.eq.s32.totalorder %s28, 0
    %p363 = por %p361, %p362
    %p364 = scmp.ne.s32.totalorder %s356, %s358
    %p365 = scmp.eq.s32.totalorder %s33, 1
    %p366 = por %p364, %p365
    %p367 = scmp.ne.s32.totalorder %s358, %s359
    %p368 = scmp.eq.s32.totalorder %s33, 0
    %p369 = por %p367, %p368
    %p370 = scmp.ne.s32.totalorder %s358, %s359
    %p371 = scmp.eq.s32.totalorder %s34, 1
    %p372 = por %p370, %p371
    %p374 = scmp.ne.s32.totalorder %s359, %s373
    %p375 = scmp.eq.s32.totalorder %s34, 0
    %p376 = por %p374, %p375
    %s378 = sadd.s32 %s377, 1
    %p381 = scmp.eq.s32.totalorder %s28, 1
    %p382 = scmp.ne.s32.totalorder %s377, %s379
    %p383 = scmp.eq.s32.totalorder %s28, 0
    %p384 = por %p382, %p383
    %p385 = scmp.ne.s32.totalorder %s377, %s379
    %p386 = scmp.eq.s32.totalorder %s33, 1
    %p387 = por %p385, %p386
    %p388 = scmp.ne.s32.totalorder %s379, %s380
    %p389 = scmp.eq.s32.totalorder %s33, 0
    %p390 = por %p388, %p389
    %p391 = scmp.ne.s32.totalorder %s379, %s380
    %p392 = scmp.eq.s32.totalorder %s34, 1
    %p393 = por %p391, %p392
    %p395 = scmp.ne.s32.totalorder %s380, %s394
    %p396 = scmp.eq.s32.totalorder %s34, 0
    %p397 = por %p395, %p396
    %s399 = sadd.s32 %s398, 1
    %p402 = scmp.eq.s32.totalorder %s28, 1
    %p403 = scmp.ne.s32.totalorder %s398, %s400
    %p404 = scmp.eq.s32.totalorder %s28, 0
    %p405 = por %p403, %p404
    %p406 = scmp.ne.s32.totalorder %s398, %s400
    %p407 = scmp.eq.s32.totalorder %s33, 1
    %p408 = por %p406, %p407
    %p409 = scmp.ne.s32.totalorder %s400, %s401
    %p410 = scmp.eq.s32.totalorder %s33, 0
    %p411 = por %p409, %p410
    %p412 = scmp.ne.s32.totalorder %s400, %s401
    %p413 = scmp.eq.s32.totalorder %s34, 1
    %p414 = por %p412, %p413
    %p416 = scmp.ne.s32.totalorder %s401, %s415
    %p417 = scmp.eq.s32.totalorder %s34, 0
    %p418 = por %p416, %p417
    %s419 = ssub.s32 %s28, %s35
    %p420 = scmp.eq.s32.totalorder %s419, 0
    %s422 = sadd.s32 %s421, 1
    %s423 = scalar_select %p420, %s421, %s422
    %p426 = pneg %p420
    %p427 = scmp.eq.s32.totalorder %s28, 1
    %p428 = por %p426, %p427
    %p429 = scmp.ne.s32.totalorder %s421, %s424
    %p430 = scmp.eq.s32.totalorder %s28, 0
    %p431 = por %p429, %p430
    %p432 = scmp.ne.s32.totalorder %s421, %s424
    %p433 = scmp.eq.s32.totalorder %s33, 1
    %p434 = por %p432, %p433
    %p435 = scmp.ne.s32.totalorder %s424, %s425
    %p436 = scmp.eq.s32.totalorder %s33, 0
    %p437 = por %p435, %p436
    %p438 = scmp.ne.s32.totalorder %s424, %s425
    %p439 = scmp.eq.s32.totalorder %s34, 1
    %p440 = por %p438, %p439
    %p442 = scmp.ne.s32.totalorder %s425, %s441
    %p443 = scmp.eq.s32.totalorder %s34, 0
    %p444 = por %p442, %p443
    %s445 = ssub.s32 %s28, %s35
    %p446 = scmp.eq.s32.totalorder %s445, 0
    %s448 = sadd.s32 %s447, 1
    %s449 = scalar_select %p446, %s447, %s448
    %p452 = pneg %p446
    %p453 = scmp.eq.s32.totalorder %s28, 1
    %p454 = por %p452, %p453
    %p455 = scmp.ne.s32.totalorder %s447, %s450
    %p456 = scmp.eq.s32.totalorder %s28, 0
    %p457 = por %p455, %p456
    %p458 = scmp.ne.s32.totalorder %s447, %s450
    %p459 = scmp.eq.s32.totalorder %s33, 1
    %p460 = por %p458, %p459
    %p461 = scmp.ne.s32.totalorder %s450, %s451
    %p462 = scmp.eq.s32.totalorder %s33, 0
    %p463 = por %p461, %p462
    %p464 = scmp.ne.s32.totalorder %s450, %s451
    %p465 = scmp.eq.s32.totalorder %s34, 1
    %p466 = por %p464, %p465
    %p468 = scmp.ne.s32.totalorder %s451, %s467
    %p469 = scmp.eq.s32.totalorder %s34, 0
    %p470 = por %p468, %p469
    %s471 = ssub.s32 %s28, %s35
    %p472 = scmp.eq.s32.totalorder %s471, 0
    %s474 = sadd.s32 %s473, 1
    %s475 = scalar_select %p472, %s473, %s474
    %p478 = pneg %p472
    %p479 = scmp.eq.s32.totalorder %s28, 1
    %p480 = por %p478, %p479
    %p481 = scmp.ne.s32.totalorder %s473, %s476
    %p482 = scmp.eq.s32.totalorder %s28, 0
    %p483 = por %p481, %p482
    %p484 = scmp.ne.s32.totalorder %s473, %s476
    %p485 = scmp.eq.s32.totalorder %s33, 1
    %p486 = por %p484, %p485
    %p487 = scmp.ne.s32.totalorder %s476, %s477
    %p488 = scmp.eq.s32.totalorder %s33, 0
    %p489 = por %p487, %p488
    %p490 = scmp.ne.s32.totalorder %s476, %s477
    %p491 = scmp.eq.s32.totalorder %s34, 1
    %p492 = por %p490, %p491
    %p494 = scmp.ne.s32.totalorder %s477, %s493
    %p495 = scmp.eq.s32.totalorder %s34, 0
    %p496 = por %p494, %p495
    %s497 = ssub.s32 %s28, %s35
    %p498 = scmp.eq.s32.totalorder %s497, 0
    %s500 = sadd.s32 %s499, 1
    %s501 = scalar_select %p498, %s499, %s500
    %p504 = pneg %p498
    %p505 = scmp.eq.s32.totalorder %s28, 1
    %p506 = por %p504, %p505
    %p507 = scmp.ne.s32.totalorder %s499, %s502
    %p508 = scmp.eq.s32.totalorder %s28, 0
    %p509 = por %p507, %p508
    %p510 = scmp.ne.s32.totalorder %s499, %s502
    %p511 = scmp.eq.s32.totalorder %s33, 1
    %p512 = por %p510, %p511
    %p513 = scmp.ne.s32.totalorder %s502, %s503
    %p514 = scmp.eq.s32.totalorder %s33, 0
    %p515 = por %p513, %p514
    %p516 = scmp.ne.s32.totalorder %s502, %s503
    %p517 = scmp.eq.s32.totalorder %s34, 1
    %p518 = por %p516, %p517
    %p520 = scmp.ne.s32.totalorder %s503, %s519
    %p521 = scmp.eq.s32.totalorder %s34, 0
    %p522 = por %p520, %p521
    %p523 = scmp.le.s32.totalorder 1, %s28
    %p524 = scmp.lt.s32.totalorder %s28, 3
    %p525 = pnand %p523, %p524
    %p526 = pneg %p525
    // Predicated region
    $region9: #{_lambda_.1} parent=5 // pred_check
      _
    $region10: #{_lambda_.1} parent=5 // pred_check_branch
      %528 = sbr.rel (%p525) target = $region12
    $region11: #{_lambda_.1} parent=5 // pred_region
      %s529 = ssub.s32 %s28, 1
      // Predicated region
      $region13: #{_lambda_.1} parent=11 // pred_check
        %p530 = pneg %p75
      $region14: #{_lambda_.1} parent=11 // pred_check_branch
        %532 = sbr.rel (%p530) target = $region16
      $region15: #{_lambda_.1} parent=11 // pred_region
        _
      $region16: #{_lambda_.1} parent=11 // pred_fallthru
        _
      // Predicated region
      $region17: #{_lambda_.1} parent=11 // pred_check
        %p533 = pneg %p96
      $region18: #{_lambda_.1} parent=11 // pred_check_branch
        %535 = sbr.rel (%p533) target = $region20
      $region19: #{_lambda_.1} parent=11 // pred_region
        _
      $region20: #{_lambda_.1} parent=11 // pred_fallthru
        _
      // Predicated region
      $region21: #{_lambda_.1} parent=11 // pred_check
        %p536 = pneg %p117
      $region22: #{_lambda_.1} parent=11 // pred_check_branch
        %538 = sbr.rel (%p536) target = $region24
      $region23: #{_lambda_.1} parent=11 // pred_region
        _
      $region24: #{_lambda_.1} parent=11 // pred_fallthru
        _
      // Predicated region
      $region25: #{_lambda_.1} parent=11 // pred_check
        %p539 = pneg %p138
      $region26: #{_lambda_.1} parent=11 // pred_check_branch
        %541 = sbr.rel (%p539) target = $region28
      $region27: #{_lambda_.1} parent=11 // pred_region
        _
      $region28: #{_lambda_.1} parent=11 // pred_fallthru
        _
      // Predicated region
      $region29: #{_lambda_.1} parent=11 // pred_check
        %p542 = pneg %p159
      $region30: #{_lambda_.1} parent=11 // pred_check_branch
        %544 = sbr.rel (%p542) target = $region32
      $region31: #{_lambda_.1} parent=11 // pred_region
        _
      $region32: #{_lambda_.1} parent=11 // pred_fallthru
        _
      // Predicated region
      $region33: #{_lambda_.1} parent=11 // pred_check
        %p545 = pneg %p180
      $region34: #{_lambda_.1} parent=11 // pred_check_branch
        %547 = sbr.rel (%p545) target = $region36
      $region35: #{_lambda_.1} parent=11 // pred_region
        _
      $region36: #{_lambda_.1} parent=11 // pred_fallthru
        _
      // Predicated region
      $region37: #{_lambda_.1} parent=11 // pred_check
        %p548 = pneg %p201
      $region38: #{_lambda_.1} parent=11 // pred_check_branch
        %550 = sbr.rel (%p548) target = $region40
      $region39: #{_lambda_.1} parent=11 // pred_region
        _
      $region40: #{_lambda_.1} parent=11 // pred_fallthru
        _
      // Predicated region
      $region41: #{_lambda_.1} parent=11 // pred_check
        %p551 = pneg %p222
      $region42: #{_lambda_.1} parent=11 // pred_check_branch
        %553 = sbr.rel (%p551) target = $region44
      $region43: #{_lambda_.1} parent=11 // pred_region
        _
      $region44: #{_lambda_.1} parent=11 // pred_fallthru
        _
      // Predicated region
      $region45: #{_lambda_.1} parent=11 // pred_check
        %p554 = pneg %p243
      $region46: #{_lambda_.1} parent=11 // pred_check_branch
        %556 = sbr.rel (%p554) target = $region48
      $region47: #{_lambda_.1} parent=11 // pred_region
        _
      $region48: #{_lambda_.1} parent=11 // pred_fallthru
        _
      // Predicated region
      $region49: #{_lambda_.1} parent=11 // pred_check
        %p557 = pneg %p264
      $region50: #{_lambda_.1} parent=11 // pred_check_branch
        %559 = sbr.rel (%p557) target = $region52
      $region51: #{_lambda_.1} parent=11 // pred_region
        _
      $region52: #{_lambda_.1} parent=11 // pred_fallthru
        _
      // Predicated region
      $region53: #{_lambda_.1} parent=11 // pred_check
        %p560 = pneg %p285
      $region54: #{_lambda_.1} parent=11 // pred_check_branch
        %562 = sbr.rel (%p560) target = $region56
      $region55: #{_lambda_.1} parent=11 // pred_region
        _
      $region56: #{_lambda_.1} parent=11 // pred_fallthru
        _
      // Predicated region
      $region57: #{_lambda_.1} parent=11 // pred_check
        %p563 = pneg %p306
      $region58: #{_lambda_.1} parent=11 // pred_check_branch
        %565 = sbr.rel (%p563) target = $region60
      $region59: #{_lambda_.1} parent=11 // pred_region
        _
      $region60: #{_lambda_.1} parent=11 // pred_fallthru
        _
      // Predicated region
      $region61: #{_lambda_.1} parent=11 // pred_check
        %p566 = pneg %p327
      $region62: #{_lambda_.1} parent=11 // pred_check_branch
        %568 = sbr.rel (%p566) target = $region64
      $region63: #{_lambda_.1} parent=11 // pred_region
        _
      $region64: #{_lambda_.1} parent=11 // pred_fallthru
        _
      // Predicated region
      $region65: #{_lambda_.1} parent=11 // pred_check
        %p569 = pneg %p348
      $region66: #{_lambda_.1} parent=11 // pred_check_branch
        %571 = sbr.rel (%p569) target = $region68
      $region67: #{_lambda_.1} parent=11 // pred_region
        _
      $region68: #{_lambda_.1} parent=11 // pred_fallthru
        _
      // Predicated region
      $region69: #{_lambda_.1} parent=11 // pred_check
        %p572 = pneg %p369
      $region70: #{_lambda_.1} parent=11 // pred_check_branch
        %574 = sbr.rel (%p572) target = $region72
      $region71: #{_lambda_.1} parent=11 // pred_region
        _
      $region72: #{_lambda_.1} parent=11 // pred_fallthru
        _
      // Predicated region
      $region73: #{_lambda_.1} parent=11 // pred_check
        %p575 = pneg %p390
      $region74: #{_lambda_.1} parent=11 // pred_check_branch
        %577 = sbr.rel (%p575) target = $region76
      $region75: #{_lambda_.1} parent=11 // pred_region
        _
      $region76: #{_lambda_.1} parent=11 // pred_fallthru
        _
      // Predicated region
      $region77: #{_lambda_.1} parent=11 // pred_check
        %p578 = pneg %p411
      $region78: #{_lambda_.1} parent=11 // pred_check_branch
        %580 = sbr.rel (%p578) target = $region80
      $region79: #{_lambda_.1} parent=11 // pred_region
        _
      $region80: #{_lambda_.1} parent=11 // pred_fallthru
        _
    $region12: #{_lambda_.1} parent=5 // pred_fallthru
      _
    %p581 = scmp.lt.s32.totalorder %s28, 2
    // Predicated region
    $region81: #{_lambda_.1} parent=5 // pred_check
      %p582 = pneg %p581
    $region82: #{_lambda_.1} parent=5 // pred_check_branch
      %584 = sbr.rel (%p582) target = $region84
    $region83: #{_lambda_.1} parent=5 // pred_region
      // Predicated region
      $region85: #{_lambda_.1} parent=83 // pred_check
        %p585 = pneg %p48
      $region86: #{_lambda_.1} parent=83 // pred_check_branch
        %587 = sbr.rel (%p585) target = $region88
      $region87: #{_lambda_.1} parent=83 // pred_region
        %p588 = scmp.lt.s32.totalorder %s28, 1
        %s589 = scalar_select %p588, %s28, 1
        %s590 = smul.addr %s589, 2
        %s591 = smul.addr %s590, 4
        %s592 = scalar_lea.vmem %s0, %s591
      $region88: #{_lambda_.1} parent=83 // pred_fallthru
        _
    $region84: #{_lambda_.1} parent=5 // pred_fallthru
      _
    %p593 = scmp.le.s32.totalorder 1, %s28
    %p594 = scmp.lt.s32.totalorder %s28, 3
    %p595 = pnand %p593, %p594
    %p596 = pneg %p595
    // Predicated region
    $region89: #{_lambda_.1} parent=5 // pred_check
      _
    $region90: #{_lambda_.1} parent=5 // pred_check_branch
      %598 = sbr.rel (%p595) target = $region92
    $region91: #{_lambda_.1} parent=5 // pred_region
      %s599 = ssub.s32 %s28, 1
      %p600 = scmp.lt.s32.totalorder %s33, 1
      %s601 = scalar_select %p600, %s33, 1
      %s602 = smul.addr %s601, 2
      %s603 = smul.addr %s602, 4
      %s604 = scalar_lea.vmem %s0, %s603
      %p605 = pneg %p54
      %p606 = pneg %p51
      %p607 = pneg %p75
      %p608 = pneg %p72
      %p609 = pneg %p96
      %p610 = pneg %p93
      %p611 = pneg %p117
      %p612 = pneg %p114
      %p613 = pneg %p138
      %p614 = pneg %p135
      %p615 = pneg %p159
      %p616 = pneg %p156
      %p617 = pneg %p180
      %p618 = pneg %p177
      %p619 = pneg %p201
      %p620 = pneg %p198
      %p621 = pneg %p222
      %p622 = pneg %p219
      %p623 = pneg %p243
      %p624 = pneg %p240
      %p625 = pneg %p264
      %p626 = pneg %p261
      %p627 = pneg %p285
      %p628 = pneg %p282
      %p629 = pneg %p306
      %p630 = pneg %p303
      %p631 = pneg %p327
      %p632 = pneg %p324
      %p633 = pneg %p348
      %p634 = pneg %p345
      %p635 = pneg %p369
      %p636 = pneg %p366
      %p637 = pneg %p390
      %p638 = pneg %p387
      %p639 = pneg %p411
      %p640 = pneg %p408
      %p641 = pneg %p437
      %p642 = pneg %p434
      %p643 = scmp.lt.s32.totalorder %s33, 1
      %s644 = scalar_select %p643, %s33, 1
      %s645 = smul.addr %s644, 2
      %s646 = smul.addr %s645, 4
      %s647 = scalar_lea.vmem %s18, %s646
      %p648 = pneg %p463
      %p649 = pneg %p460
      %p650 = scmp.lt.s32.totalorder %s33, 1
      %s651 = scalar_select %p650, %s33, 1
      %s652 = smul.addr %s651, 2
      %s653 = smul.addr %s652, 4
      %s654 = scalar_lea.vmem %s19, %s653
      %p655 = pneg %p489
      %p656 = pneg %p486
      %p657 = scmp.lt.s32.totalorder %s33, 1
      %s658 = scalar_select %p657, %s33, 1
      %s659 = smul.addr %s658, 2
      %s660 = smul.addr %s659, 4
      %s661 = scalar_lea.vmem %s20, %s660
      %p662 = pneg %p515
      %p663 = pneg %p512
      %p664 = scmp.lt.s32.totalorder %s33, 1
      %s665 = scalar_select %p664, %s33, 1
      %s666 = smul.addr %s665, 4
      %s667 = scalar_lea.vmem %s21, %s666
      %p668 = scmp.lt.s32.totalorder %s33, 1
      %s669 = scalar_select %p668, %s33, 1
      %s670 = smul.addr %s669, 2
      %s671 = smul.addr %s670, 4
      %s672 = scalar_lea.vmem %s0, %s671
      %p673 = scmp.lt.s32.totalorder %s33, 1
      %s674 = scalar_select %p673, %s33, 1
      %s675 = smul.addr %s674, 2
      %s676 = smul.addr %s675, 4
      %s677 = scalar_lea.vmem %s18, %s676
      %p678 = scmp.lt.s32.totalorder %s33, 1
      %s679 = scalar_select %p678, %s33, 1
      %s680 = smul.addr %s679, 2
      %s681 = smul.addr %s680, 4
      %s682 = scalar_lea.vmem %s19, %s681
      %p683 = scmp.lt.s32.totalorder %s33, 1
      %s684 = scalar_select %p683, %s33, 1
      %s685 = smul.addr %s684, 2
      %s686 = smul.addr %s685, 4
      %s687 = scalar_lea.vmem %s20, %s686
      %p688 = scmp.lt.s32.totalorder %s33, 1
      %s689 = scalar_select %p688, %s33, 1
      %s690 = smul.addr %s689, 4
      %s691 = scalar_lea.vmem %s21, %s690
      %v692 = vld [vmem:[%s672] sm:$0x77]
      %v694 = vcombine.high %v692, %v692
      %vm696 = vcmask 1042432
      %v697 = vsel %vm696, %v692, 0.0
      %v698 = vsel %vm696, %v694, 0.0
      %v699 = vadd.f32 %v697, %v698
      %700 = vadd.xlane.f32.xlu0 %v699
      %v701 = vpop.xlane.xlu0 %700
      %v702 = vrcp.pop 256.0
      %v703 = vmul.f32 %v701, %v702
      %v706 = vunpack.c.l.s4 839922192
      %v707 = vunpack.c.0.s8 %v706
      %v708 = vlaneseq
      %v709 = vshrl.u32 %v708, 7
      %v710 = vsub.s32 %v707, %v709
      %v711 = vrot.slane %v703, %v710
      %v713 = vsub.f32 %v692, %v711
      %v715 = vcombine.high %v713, %v713
      %v717 = vsub.f32 %v715, %v713
      %v718 = vsub.f32 %v713, %v715
      %v719 = vcombine.low %v715, %v713
      %v720 = vrot.slane %v719, 5
      %v721 = vrot.slane %v720, 4
      %v723 = vmul.f32 %v713, %v721
      %v724 = vrot.slane %v719, 7
      %v726 = vmul.f32 %v713, %v724
      %v728 = vrot.slane %v726, 5
      %v729 = vrot.slane %v728, 4
      %v731 = vsub.f32 %v723, %v729
      %v732 = vrot.slane %v719, 6
      %v734 = vmul.f32 %v713, %v732
      %v735 = vrot.slane %v732, 4
      %v737 = vmul.f32 %v713, %v735
      %v739 = vrot.slane %v737, 6
      %v741 = vsub.f32 %v734, %v739
      %v743 = vlaneseq
      %v744 = vshrl.u32 %v743, 7
      %v745 = vsub.s32 1, %v744
      %v746 = vrot.slane %v731, %v745
      %v747 = vlaneseq
      %v748 = vshrl.u32 %v747, 7
      %v749 = vsub.s32 5, %v748
      %v750 = vrot.slane %v731, %v749
      %v754 = vlaneseq
      %v755 = vshrl.u32 %v754, 7
      %v756 = vsub.s32 2, %v755
      %v757 = vrot.slane %v741, %v756
      %v758 = vlaneseq
      %v759 = vshrl.u32 %v758, 7
      %v760 = vsub.s32 6, %v759
      %v761 = vrot.slane %v741, %v760
      %v764 = vlaneseq
      %v765 = vshrl.u32 %v764, 7
      %v766 = vsub.s32 0, %v765
      %v767 = vrot.slane %v731, %v766
      %v768 = vlaneseq
      %v769 = vshrl.u32 %v768, 7
      %v770 = vsub.s32 4, %v769
      %v771 = vrot.slane %v731, %v770
      %vm774 = vcmask 1040384
      %v775 = vsel %vm774, %v746, %v757
      %v776 = vsel %vm774, %v750, %v761
      %vm777 = vcmask 1041408
      %v778 = vsel %vm777, %v775, %v767
      %v779 = vsel %vm777, %v776, %v771
      %v782 = vrot.slane %v717, 5
      %v783 = vrot.slane %v718, 5
      %v788 = vrot.slane %v778, 2
      %v789 = vrot.slane %v779, 2
      %v792 = vsel %vm696, %v713, %v782
      %v793 = vsel %vm696, %v715, %v783
      %vm794 = vcmask 1045504
      %v795 = vsel %vm794, %v792, %v788
      %v796 = vsel %vm794, %v793, %v789
      %v797 = vld [vmem:[%s1] sm:$0xff]
      %v798 = vld [vmem:[%s1 + $0x8] sm:$0xff]
      %v799 = vld [vmem:[%s1 + $0x10] sm:$0xff]
      %v800 = vld [vmem:[%s2] sm:$0xff]
      %v801 = vld [vmem:[%s2 + $0x8] sm:$0xff]
      %v802 = vld [vmem:[%s2 + $0x10] sm:$0xff]
      %v803 = vld [vmem:[%s3] sm:$0xff]
      %v804 = vld [vmem:[%s3 + $0x8] sm:$0xff]
      %v805 = vld [vmem:[%s3 + $0x10] sm:$0xff]
      %vm806 = vcmask 72704
      %v808 = vsel %vm806, %v797, 0
      %v811 = vsel %vm806, %v798, 0
      %v814 = vsel %vm806, %v799, 0
      %v816 = vsel %vm774, %v788, 0
      %v818 = vsel %vm774, %v789, 0
      %820 = vmatprep.subr.mxu0 %v796
      %821 = vmatpush1.msra.mxu0 %v795
      %822 = vmatprep.subr.mxu0 %v818
      %823 = vmatpush1.msra.mxu0 %v816
      %824 = vmatprep.subr.mxu0 0.0
      %825 = vmatpush1.msra.mxu0 0.0
      %826 = vmatprep.subr.mxu0 0.0
      %827 = vmatpush1.msra.mxu0 0.0
      %828 = vmatprep.subr.mxu0 0.0
      %829 = vmatpush1.msra.mxu0 0.0
      %830 = vmatprep.subr.mxu0 0.0
      %831 = vmatpush1.msra.mxu0 0.0
      %832 = vmatprep.subr.mxu0 0.0
      %833 = vmatpush1.msra.mxu0 0.0
      %834 = vmatprep.subr.mxu0 0.0
      %835 = vmatpush1.msra.mxu0 0.0
      %836 = vmatprep.subr.mxu0 0.0
      %837 = vmatpush1.msra.mxu0 0.0
      %838 = vmatprep.subr.mxu0 0.0
      %839 = vmatpush1.msra.mxu0 0.0
      %840 = vmatprep.subr.mxu0 0.0
      %841 = vmatpush1.msra.mxu0 0.0
      %842 = vmatprep.subr.mxu0 0.0
      %843 = vmatpush1.msra.mxu0 0.0
      %844 = vmatprep.subr.mxu0 0.0
      %845 = vmatpush1.msra.mxu0 0.0
      %846 = vmatprep.subr.mxu0 0.0
      %847 = vmatpush1.msra.mxu0 0.0
      %848 = vmatprep.subr.mxu0 0.0
      %849 = vmatpush1.msra.mxu0 0.0
      %850 = vmatprep.subr.mxu0 0.0
      %851 = vmatpush1.msra.mxu0 0.0
      %852 = vmatprep.subr.mxu0 0.0
      %853 = vmatpush1.msra.mxu0 0.0
      %854 = vmatprep.subr.mxu0 0.0
      %855 = vmatpush1.msra.mxu0 0.0
      %856 = vmatprep.subr.mxu0 0.0
      %857 = vmatpush1.msra.mxu0 0.0
      %858 = vmatprep.subr.mxu0 0.0
      %859 = vmatpush1.msra.mxu0 0.0
      %860 = vmatprep.subr.mxu0 0.0
      %861 = vmatpush1.msra.mxu0 0.0
      %862 = vmatprep.subr.mxu0 0.0
      %863 = vmatpush1.msra.mxu0 0.0
      %864 = vmatprep.subr.mxu0 0.0
      %865 = vmatpush1.msra.mxu0 0.0
      %866 = vmatprep.subr.mxu0 0.0
      %867 = vmatpush1.msra.mxu0 0.0
      %868 = vmatprep.subr.mxu0 0.0
      %869 = vmatpush1.msra.mxu0 0.0
      %870 = vmatprep.subr.mxu0 0.0
      %871 = vmatpush1.msra.mxu0 0.0
      %872 = vmatprep.subr.mxu0 0.0
      %873 = vmatpush1.msra.mxu0 0.0
      %874 = vmatprep.subr.mxu0 0.0
      %875 = vmatpush1.msra.mxu0 0.0
      %876 = vmatprep.subr.mxu0 0.0
      %877 = vmatpush1.msra.mxu0 0.0
      %878 = vmatprep.subr.mxu0 0.0
      %879 = vmatpush1.msra.mxu0 0.0
      %880 = vmatprep.subr.mxu0 0.0
      %881 = vmatpush1.msra.mxu0 0.0
      %882 = vmatprep.subr.mxu0 0.0
      %883 = vmatpush1.msra.mxu0 0.0
      %884 = vmatprep.mubr.f32.mxu0 0.0
      %885 = vmatmul.mubr.f32.gmra.mrb[0].mxu0 %v808
      %v886 = vpop.f32.mrb[0].mxu0
      %v887 = vadd.f32 0.0, %v886
      %v888 = vpop.f32.mrb[0].mxu0
      %v889 = vadd.f32 0.0, %v888
      %890 = vmatprep.mubr.f32.mxu0 0.0
      %891 = vmatmul.mubr.f32.gmra.mrb[0].mxu0 %v811
      %v892 = vpop.f32.mrb[0].mxu0
      %v893 = vadd.f32 0.0, %v892
      %v894 = vpop.f32.mrb[0].mxu0
      %v895 = vadd.f32 0.0, %v894
      %896 = vmatprep.mubr.f32.mxu0 0.0
      %897 = vmatmul.mubr.f32.gmra.mrb[0].mxu0 %v814
      %v898 = vpop.f32.mrb[0].mxu0
      %v899 = vadd.f32 0.0, %v898
      %v900 = vpop.f32.mrb[0].mxu0
      %v901 = vadd.f32 0.0, %v900
      %902 = vdwg.mxu0
      %vm903 = vcmask 195584
      %v905 = vsel %vm903, %v800, 0
      %v908 = vsel %vm903, %v801, 0
      %v911 = vsel %vm903, %v802, 0
      %913 = vmatprep.subr.mxu0 %v889
      %914 = vmatpush1.msra.mxu0 %v887
      %915 = vmatprep.subr.mxu0 %v895
      %916 = vmatpush1.msra.mxu0 %v893
      %917 = vmatprep.subr.mxu0 %v901
      %918 = vmatpush1.msra.mxu0 %v899
      %919 = vmatprep.subr.mxu0 0.0
      %920 = vmatpush1.msra.mxu0 0.0
      %921 = vmatprep.subr.mxu0 0.0
      %922 = vmatpush1.msra.mxu0 0.0
      %923 = vmatprep.subr.mxu0 0.0
      %924 = vmatpush1.msra.mxu0 0.0
      %925 = vmatprep.subr.mxu0 0.0
      %926 = vmatpush1.msra.mxu0 0.0
      %927 = vmatprep.subr.mxu0 0.0
      %928 = vmatpush1.msra.mxu0 0.0
      %929 = vmatprep.subr.mxu0 0.0
      %930 = vmatpush1.msra.mxu0 0.0
      %931 = vmatprep.subr.mxu0 0.0
      %932 = vmatpush1.msra.mxu0 0.0
      %933 = vmatprep.subr.mxu0 0.0
      %934 = vmatpush1.msra.mxu0 0.0
      %935 = vmatprep.subr.mxu0 0.0
      %936 = vmatpush1.msra.mxu0 0.0
      %937 = vmatprep.subr.mxu0 0.0
      %938 = vmatpush1.msra.mxu0 0.0
      %939 = vmatprep.subr.mxu0 0.0
      %940 = vmatpush1.msra.mxu0 0.0
      %941 = vmatprep.subr.mxu0 0.0
      %942 = vmatpush1.msra.mxu0 0.0
      %943 = vmatprep.subr.mxu0 0.0
      %944 = vmatpush1.msra.mxu0 0.0
      %945 = vmatprep.subr.mxu0 0.0
      %946 = vmatpush1.msra.mxu0 0.0
      %947 = vmatprep.subr.mxu0 0.0
      %948 = vmatpush1.msra.mxu0 0.0
      %949 = vmatprep.subr.mxu0 0.0
      %950 = vmatpush1.msra.mxu0 0.0
      %951 = vmatprep.subr.mxu0 0.0
      %952 = vmatpush1.msra.mxu0 0.0
      %953 = vmatprep.subr.mxu0 0.0
      %954 = vmatpush1.msra.mxu0 0.0
      %955 = vmatprep.subr.mxu0 0.0
      %956 = vmatpush1.msra.mxu0 0.0
      %957 = vmatprep.subr.mxu0 0.0
      %958 = vmatpush1.msra.mxu0 0.0
      %959 = vmatprep.subr.mxu0 0.0
      %960 = vmatpush1.msra.mxu0 0.0
      %961 = vmatprep.subr.mxu0 0.0
      %962 = vmatpush1.msra.mxu0 0.0
      %963 = vmatprep.subr.mxu0 0.0
      %964 = vmatpush1.msra.mxu0 0.0
      %965 = vmatprep.subr.mxu0 0.0
      %966 = vmatpush1.msra.mxu0 0.0
      %967 = vmatprep.subr.mxu0 0.0
      %968 = vmatpush1.msra.mxu0 0.0
      %969 = vmatprep.subr.mxu0 0.0
      %970 = vmatpush1.msra.mxu0 0.0
      %971 = vmatprep.subr.mxu0 0.0
      %972 = vmatpush1.msra.mxu0 0.0
      %973 = vmatprep.subr.mxu0 0.0
      %974 = vmatpush1.msra.mxu0 0.0
      %975 = vmatprep.subr.mxu0 0.0
      %976 = vmatpush1.msra.mxu0 0.0
      %977 = vmatprep.mubr.f32.mxu0 0.0
      %978 = vmatmul.mubr.f32.gmra.mrb[0].mxu0 %v905
      %v979 = vpop.f32.mrb[0].mxu0
      %v980 = vadd.f32 0.0, %v979
      %v981 = vpop.f32.mrb[0].mxu0
      %v982 = vadd.f32 0.0, %v981
      %983 = vmatprep.mubr.f32.mxu0 0.0
      %984 = vmatmul.mubr.f32.gmra.mrb[0].mxu0 %v908
      %v985 = vpop.f32.mrb[0].mxu0
      %v986 = vadd.f32 0.0, %v985
      %v987 = vpop.f32.mrb[0].mxu0
      %v988 = vadd.f32 0.0, %v987
      %989 = vmatprep.mubr.f32.mxu0 0.0
      %990 = vmatmul.mubr.f32.gmra.mrb[0].mxu0 %v911
      %v991 = vpop.f32.mrb[0].mxu0
      %v992 = vadd.f32 0.0, %v991
      %v993 = vpop.f32.mrb[0].mxu0
      %v994 = vadd.f32 0.0, %v993
      %995 = vdwg.mxu0
      %v996 = vmul.f32 %v887, %v980
      %v997 = vmul.f32 %v889, %v982
      %v998 = vmul.f32 %v893, %v986
      %v999 = vmul.f32 %v895, %v988
      %v1000 = vmul.f32 %v899, %v992
      %v1001 = vmul.f32 %v901, %v994
      %v1003 = vsel %vm903, %v803, 0
      %v1006 = vsel %vm903, %v804, 0
      %v1009 = vsel %vm903, %v805, 0
      %1011 = vmatprep.subr.mxu0 %v997
      %1012 = vmatpush1.msra.mxu0 %v996
      %1013 = vmatprep.subr.mxu0 %v999
      %1014 = vmatpush1.msra.mxu0 %v998
      %1015 = vmatprep.subr.mxu0 %v1001
      %1016 = vmatpush1.msra.mxu0 %v1000
      %1017 = vmatprep.subr.mxu0 0.0
      %1018 = vmatpush1.msra.mxu0 0.0
      %1019 = vmatprep.subr.mxu0 0.0
      %1020 = vmatpush1.msra.mxu0 0.0
      %1021 = vmatprep.subr.mxu0 0.0
      %1022 = vmatpush1.msra.mxu0 0.0
      %1023 = vmatprep.subr.mxu0 0.0
      %1024 = vmatpush1.msra.mxu0 0.0
      %1025 = vmatprep.subr.mxu0 0.0
      %1026 = vmatpush1.msra.mxu0 0.0
      %1027 = vmatprep.subr.mxu0 0.0
      %1028 = vmatpush1.msra.mxu0 0.0
      %1029 = vmatprep.subr.mxu0 0.0
      %1030 = vmatpush1.msra.mxu0 0.0
      %1031 = vmatprep.subr.mxu0 0.0
      %1032 = vmatpush1.msra.mxu0 0.0
      %1033 = vmatprep.subr.mxu0 0.0
      %1034 = vmatpush1.msra.mxu0 0.0
      %1035 = vmatprep.subr.mxu0 0.0
      %1036 = vmatpush1.msra.mxu0 0.0
      %1037 = vmatprep.subr.mxu0 0.0
      %1038 = vmatpush1.msra.mxu0 0.0
      %1039 = vmatprep.subr.mxu0 0.0
      %1040 = vmatpush1.msra.mxu0 0.0
      %1041 = vmatprep.subr.mxu0 0.0
      %1042 = vmatpush1.msra.mxu0 0.0
      %1043 = vmatprep.subr.mxu0 0.0
      %1044 = vmatpush1.msra.mxu0 0.0
      %1045 = vmatprep.subr.mxu0 0.0
      %1046 = vmatpush1.msra.mxu0 0.0
      %1047 = vmatprep.subr.mxu0 0.0
      %1048 = vmatpush1.msra.mxu0 0.0
      %1049 = vmatprep.subr.mxu0 0.0
      %1050 = vmatpush1.msra.mxu0 0.0
      %1051 = vmatprep.subr.mxu0 0.0
      %1052 = vmatpush1.msra.mxu0 0.0
      %1053 = vmatprep.subr.mxu0 0.0
      %1054 = vmatpush1.msra.mxu0 0.0
      %1055 = vmatprep.subr.mxu0 0.0
      %1056 = vmatpush1.msra.mxu0 0.0
      %1057 = vmatprep.subr.mxu0 0.0
      %1058 = vmatpush1.msra.mxu0 0.0
      %1059 = vmatprep.subr.mxu0 0.0
      %1060 = vmatpush1.msra.mxu0 0.0
      %1061 = vmatprep.subr.mxu0 0.0
      %1062 = vmatpush1.msra.mxu0 0.0
      %1063 = vmatprep.subr.mxu0 0.0
      %1064 = vmatpush1.msra.mxu0 0.0
      %1065 = vmatprep.subr.mxu0 0.0
      %1066 = vmatpush1.msra.mxu0 0.0
      %1067 = vmatprep.subr.mxu0 0.0
      %1068 = vmatpush1.msra.mxu0 0.0
      %1069 = vmatprep.subr.mxu0 0.0
      %1070 = vmatpush1.msra.mxu0 0.0
      %1071 = vmatprep.subr.mxu0 0.0
      %1072 = vmatpush1.msra.mxu0 0.0
      %1073 = vmatprep.subr.mxu0 0.0
      %1074 = vmatpush1.msra.mxu0 0.0
      %1075 = vmatprep.mubr.f32.mxu0 0.0
      %1076 = vmatmul.mubr.f32.gmra.mrb[0].mxu0 %v1003
      %v1077 = vpop.f32.mrb[0].mxu0
      %v1078 = vadd.f32 0.0, %v1077
      %v1079 = vpop.f32.mrb[0].mxu0
      %v1080 = vadd.f32 0.0, %v1079
      %1081 = vmatprep.mubr.f32.mxu0 0.0
      %1082 = vmatmul.mubr.f32.gmra.mrb[0].mxu0 %v1006
      %v1083 = vpop.f32.mrb[0].mxu0
      %v1084 = vadd.f32 0.0, %v1083
      %v1085 = vpop.f32.mrb[0].mxu0
      %v1086 = vadd.f32 0.0, %v1085
      %1087 = vmatprep.mubr.f32.mxu0 0.0
      %1088 = vmatmul.mubr.f32.gmra.mrb[0].mxu0 %v1009
      %v1089 = vpop.f32.mrb[0].mxu0
      %v1090 = vadd.f32 0.0, %v1089
      %v1091 = vpop.f32.mrb[0].mxu0
      %v1092 = vadd.f32 0.0, %v1091
      %1093 = vdwg.mxu0
      %v1094 = vmul.f32 %v980, %v980
      %v1095 = vmul.f32 %v982, %v982
      %v1096 = vmul.f32 %v986, %v986
      %v1097 = vmul.f32 %v988, %v988
      %v1098 = vmul.f32 %v992, %v992
      %v1099 = vmul.f32 %v994, %v994
      %1100 = vmatprep.subr.mxu0 %v1095
      %1101 = vmatpush1.msra.mxu0 %v1094
      %1102 = vmatprep.subr.mxu0 %v1097
      %1103 = vmatpush1.msra.mxu0 %v1096
      %1104 = vmatprep.subr.mxu0 %v1099
      %1105 = vmatpush1.msra.mxu0 %v1098
      %1106 = vmatprep.subr.mxu0 0.0
      %1107 = vmatpush1.msra.mxu0 0.0
      %1108 = vmatprep.subr.mxu0 0.0
      %1109 = vmatpush1.msra.mxu0 0.0
      %1110 = vmatprep.subr.mxu0 0.0
      %1111 = vmatpush1.msra.mxu0 0.0
      %1112 = vmatprep.subr.mxu0 0.0
      %1113 = vmatpush1.msra.mxu0 0.0
      %1114 = vmatprep.subr.mxu0 0.0
      %1115 = vmatpush1.msra.mxu0 0.0
      %1116 = vmatprep.subr.mxu0 0.0
      %1117 = vmatpush1.msra.mxu0 0.0
      %1118 = vmatprep.subr.mxu0 0.0
      %1119 = vmatpush1.msra.mxu0 0.0
      %1120 = vmatprep.subr.mxu0 0.0
      %1121 = vmatpush1.msra.mxu0 0.0
      %1122 = vmatprep.subr.mxu0 0.0
      %1123 = vmatpush1.msra.mxu0 0.0
      %1124 = vmatprep.subr.mxu0 0.0
      %1125 = vmatpush1.msra.mxu0 0.0
      %1126 = vmatprep.subr.mxu0 0.0
      %1127 = vmatpush1.msra.mxu0 0.0
      %1128 = vmatprep.subr.mxu0 0.0
      %1129 = vmatpush1.msra.mxu0 0.0
      %1130 = vmatprep.subr.mxu0 0.0
      %1131 = vmatpush1.msra.mxu0 0.0
      %1132 = vmatprep.subr.mxu0 0.0
      %1133 = vmatpush1.msra.mxu0 0.0
      %1134 = vmatprep.subr.mxu0 0.0
      %1135 = vmatpush1.msra.mxu0 0.0
      %1136 = vmatprep.subr.mxu0 0.0
      %1137 = vmatpush1.msra.mxu0 0.0
      %1138 = vmatprep.subr.mxu0 0.0
      %1139 = vmatpush1.msra.mxu0 0.0
      %1140 = vmatprep.subr.mxu0 0.0
      %1141 = vmatpush1.msra.mxu0 0.0
      %1142 = vmatprep.subr.mxu0 0.0
      %1143 = vmatpush1.msra.mxu0 0.0
      %1144 = vmatprep.subr.mxu0 0.0
      %1145 = vmatpush1.msra.mxu0 0.0
      %1146 = vmatprep.subr.mxu0 0.0
      %1147 = vmatpush1.msra.mxu0 0.0
      %1148 = vmatprep.subr.mxu0 0.0
      %1149 = vmatpush1.msra.mxu0 0.0
      %1150 = vmatprep.subr.mxu0 0.0
      %1151 = vmatpush1.msra.mxu0 0.0
      %1152 = vmatprep.subr.mxu0 0.0
      %1153 = vmatpush1.msra.mxu0 0.0
      %1154 = vmatprep.subr.mxu0 0.0
      %1155 = vmatpush1.msra.mxu0 0.0
      %1156 = vmatprep.subr.mxu0 0.0
      %1157 = vmatpush1.msra.mxu0 0.0
      %1158 = vmatprep.subr.mxu0 0.0
      %1159 = vmatpush1.msra.mxu0 0.0
      %1160 = vmatprep.subr.mxu0 0.0
      %1161 = vmatpush1.msra.mxu0 0.0
      %1162 = vmatprep.subr.mxu0 0.0
      %1163 = vmatpush1.msra.mxu0 0.0
      %1164 = vmatprep.mubr.f32.mxu0 0.0
      %1165 = vmatmul.mubr.f32.gmra.mrb[0].mxu0 %v1003
      %v1166 = vpop.f32.mrb[0].mxu0
      %v1167 = vadd.f32 1e-06, %v1166
      %v1168 = vpop.f32.mrb[0].mxu0
      %v1169 = vadd.f32 1e-06, %v1168
      %1170 = vmatprep.mubr.f32.mxu0 0.0
      %1171 = vmatmul.mubr.f32.gmra.mrb[0].mxu0 %v1006
      %v1172 = vpop.f32.mrb[0].mxu0
      %v1173 = vadd.f32 1e-06, %v1172
      %v1174 = vpop.f32.mrb[0].mxu0
      %v1175 = vadd.f32 1e-06, %v1174
      %1176 = vmatprep.mubr.f32.mxu0 0.0
      %1177 = vmatmul.mubr.f32.gmra.mrb[0].mxu0 %v1009
      %v1178 = vpop.f32.mrb[0].mxu0
      %v1179 = vadd.f32 1e-06, %v1178
      %v1180 = vpop.f32.mrb[0].mxu0
      %v1181 = vadd.f32 1e-06, %v1180
      %1182 = vdwg.mxu0
      %vm1183 = vcmp.ge.f32.partialorder %v1078, 0.0
      %vm1184 = vcmp.ge.f32.partialorder %v1080, 0.0
      %vm1185 = vcmp.ge.f32.partialorder %v1084, 0.0
      %vm1186 = vcmp.ge.f32.partialorder %v1086, 0.0
      %vm1187 = vcmp.ge.f32.partialorder %v1090, 0.0
      %vm1188 = vcmp.ge.f32.partialorder %v1092, 0.0
      %v1189 = vmul.f32 %v1078, 0.8
      %v1190 = vmul.f32 %v1080, 0.8
      %v1191 = vmul.f32 %v1084, 0.8
      %v1192 = vmul.f32 %v1086, 0.8
      %v1193 = vmul.f32 %v1090, 0.8
      %v1194 = vmul.f32 %v1092, 0.8
      %v1195 = vrcp.pop %v1167
      %v1196 = vmul.f32 %v1189, %v1195
      %v1197 = vrcp.pop %v1169
      %v1198 = vmul.f32 %v1190, %v1197
      %v1199 = vrcp.pop %v1173
      %v1200 = vmul.f32 %v1191, %v1199
      %v1201 = vrcp.pop %v1175
      %v1202 = vmul.f32 %v1192, %v1201
      %v1203 = vrcp.pop %v1179
      %v1204 = vmul.f32 %v1193, %v1203
      %v1205 = vrcp.pop %v1181
      %v1206 = vmul.f32 %v1194, %v1205
      %v1207 = vsel %vm1183, 0.0, %v1196
      %v1208 = vsel %vm1184, 0.0, %v1198
      %v1209 = vsel %vm1185, 0.0, %v1200
      %v1210 = vsel %vm1186, 0.0, %v1202
      %v1211 = vsel %vm1187, 0.0, %v1204
      %v1212 = vsel %vm1188, 0.0, %v1206
      %v1213 = vmul.f32 %v1207, %v980
      %v1214 = vmul.f32 %v1208, %v982
      %v1215 = vmul.f32 %v1209, %v986
      %v1216 = vmul.f32 %v1210, %v988
      %v1217 = vmul.f32 %v1211, %v992
      %v1218 = vmul.f32 %v1212, %v994
      %v1219 = vsub.f32 %v887, %v1213
      %v1220 = vsub.f32 %v889, %v1214
      %v1221 = vsub.f32 %v893, %v1215
      %v1222 = vsub.f32 %v895, %v1216
      %v1223 = vsub.f32 %v899, %v1217
      %v1224 = vsub.f32 %v901, %v1218
      %v1225 = vld [vmem:[%s4] sm:$0xff]
      %v1226 = vld [vmem:[%s4 + $0x8] sm:$0xff]
      %v1227 = vld [vmem:[%s4 + $0x10] sm:$0xff]
      %v1228 = vld [vmem:[%s4 + $0x18] sm:$0xff]
      %v1229 = vld [vmem:[%s4 + $0x20] sm:$0xff]
      %v1230 = vld [vmem:[%s4 + $0x28] sm:$0xff]
      %v1231 = vld [vmem:[%s5] sm:$0xff]
      %v1232 = vld [vmem:[%s5 + $0x8] sm:$0xff]
      %v1233 = vld [vmem:[%s5 + $0x10] sm:$0xff]
      %v1234 = vld [vmem:[%s5 + $0x18] sm:$0xff]
      %v1235 = vld [vmem:[%s5 + $0x20] sm:$0xff]
      %v1236 = vld [vmem:[%s5 + $0x28] sm:$0xff]
      %v1237 = vld [vmem:[%s6] sm:$0xff]
      %v1238 = vld [vmem:[%s6 + $0x8] sm:$0xff]
      %v1239 = vld [vmem:[%s6 + $0x10] sm:$0xff]
      %v1240 = vld [vmem:[%s6 + $0x18] sm:$0xff]
      %v1241 = vld [vmem:[%s6 + $0x20] sm:$0xff]
      %v1242 = vld [vmem:[%s6 + $0x28] sm:$0xff]
      %v1244 = vsel %vm903, %v1225, 0
      %v1247 = vsel %vm903, %v1226, 0
      %v1250 = vsel %vm903, %v1227, 0
      %v1253 = vsel %vm903, %v1228, 0
      %v1256 = vsel %vm903, %v1229, 0
      %v1259 = vsel %vm903, %v1230, 0
      %1261 = vmatprep.subr.mxu0 %v1220
      %1262 = vmatpush1.msra.mxu0 %v1219
      %1263 = vmatprep.subr.mxu0 %v1222
      %1264 = vmatpush1.msra.mxu0 %v1221
      %1265 = vmatprep.subr.mxu0 %v1224
      %1266 = vmatpush1.msra.mxu0 %v1223
      %1267 = vmatprep.subr.mxu0 0.0
      %1268 = vmatpush1.msra.mxu0 0.0
      %1269 = vmatprep.subr.mxu0 0.0
      %1270 = vmatpush1.msra.mxu0 0.0
      %1271 = vmatprep.subr.mxu0 0.0
      %1272 = vmatpush1.msra.mxu0 0.0
      %1273 = vmatprep.subr.mxu0 0.0
      %1274 = vmatpush1.msra.mxu0 0.0
      %1275 = vmatprep.subr.mxu0 0.0
      %1276 = vmatpush1.msra.mxu0 0.0
      %1277 = vmatprep.subr.mxu0 0.0
      %1278 = vmatpush1.msra.mxu0 0.0
      %1279 = vmatprep.subr.mxu0 0.0
      %1280 = vmatpush1.msra.mxu0 0.0
      %1281 = vmatprep.subr.mxu0 0.0
      %1282 = vmatpush1.msra.mxu0 0.0
      %1283 = vmatprep.subr.mxu0 0.0
      %1284 = vmatpush1.msra.mxu0 0.0
      %1285 = vmatprep.subr.mxu0 0.0
      %1286 = vmatpush1.msra.mxu0 0.0
      %1287 = vmatprep.subr.mxu0 0.0
      %1288 = vmatpush1.msra.mxu0 0.0
      %1289 = vmatprep.subr.mxu0 0.0
      %1290 = vmatpush1.msra.mxu0 0.0
      %1291 = vmatprep.subr.mxu0 0.0
      %1292 = vmatpush1.msra.mxu0 0.0
      %1293 = vmatprep.subr.mxu0 0.0
      %1294 = vmatpush1.msra.mxu0 0.0
      %1295 = vmatprep.subr.mxu0 0.0
      %1296 = vmatpush1.msra.mxu0 0.0
      %1297 = vmatprep.subr.mxu0 0.0
      %1298 = vmatpush1.msra.mxu0 0.0
      %1299 = vmatprep.subr.mxu0 0.0
      %1300 = vmatpush1.msra.mxu0 0.0
      %1301 = vmatprep.subr.mxu0 0.0
      %1302 = vmatpush1.msra.mxu0 0.0
      %1303 = vmatprep.subr.mxu0 0.0
      %1304 = vmatpush1.msra.mxu0 0.0
      %1305 = vmatprep.subr.mxu0 0.0
      %1306 = vmatpush1.msra.mxu0 0.0
      %1307 = vmatprep.subr.mxu0 0.0
      %1308 = vmatpush1.msra.mxu0 0.0
      %1309 = vmatprep.subr.mxu0 0.0
      %1310 = vmatpush1.msra.mxu0 0.0
      %1311 = vmatprep.subr.mxu0 0.0
      %1312 = vmatpush1.msra.mxu0 0.0
      %1313 = vmatprep.subr.mxu0 0.0
      %1314 = vmatpush1.msra.mxu0 0.0
      %1315 = vmatprep.subr.mxu0 0.0
      %1316 = vmatpush1.msra.mxu0 0.0
      %1317 = vmatprep.subr.mxu0 0.0
      %1318 = vmatpush1.msra.mxu0 0.0
      %1319 = vmatprep.subr.mxu0 0.0
      %1320 = vmatpush1.msra.mxu0 0.0
      %1321 = vmatprep.subr.mxu0 0.0
      %1322 = vmatpush1.msra.mxu0 0.0
      %1323 = vmatprep.subr.mxu0 0.0
      %1324 = vmatpush1.msra.mxu0 0.0
      %1325 = vmatprep.mubr.f32.mxu0 0.0
      %1326 = vmatmul.mubr.f32.gmra.mrb[0].mxu0 %v1244
      %v1327 = vpop.f32.mrb[0].mxu0
      %v1328 = vadd.f32 0.0, %v1327
      %v1329 = vpop.f32.mrb[0].mxu0
      %v1330 = vadd.f32 0.0, %v1329
      %1331 = vmatprep.mubr.f32.mxu0 0.0
      %1332 = vmatmul.mubr.f32.gmra.mrb[0].mxu0 %v1247
      %v1333 = vpop.f32.mrb[0].mxu0
      %v1334 = vadd.f32 0.0, %v1333
      %v1335 = vpop.f32.mrb[0].mxu0
      %v1336 = vadd.f32 0.0, %v1335
      %1337 = vmatprep.mubr.f32.mxu0 0.0
      %1338 = vmatmul.mubr.f32.gmra.mrb[0].mxu0 %v1250
      %v1339 = vpop.f32.mrb[0].mxu0
      %v1340 = vadd.f32 0.0, %v1339
      %v1341 = vpop.f32.mrb[0].mxu0
      %v1342 = vadd.f32 0.0, %v1341
      %1343 = vmatprep.mubr.f32.mxu0 0.0
      %1344 = vmatmul.mubr.f32.gmra.mrb[0].mxu0 %v1253
      %v1345 = vpop.f32.mrb[0].mxu0
      %v1346 = vadd.f32 0.0, %v1345
      %v1347 = vpop.f32.mrb[0].mxu0
      %v1348 = vadd.f32 0.0, %v1347
      %1349 = vmatprep.mubr.f32.mxu0 0.0
      %1350 = vmatmul.mubr.f32.gmra.mrb[0].mxu0 %v1256
      %v1351 = vpop.f32.mrb[0].mxu0
      %v1352 = vadd.f32 0.0, %v1351
      %v1353 = vpop.f32.mrb[0].mxu0
      %v1354 = vadd.f32 0.0, %v1353
      %1355 = vmatprep.mubr.f32.mxu0 0.0
      %1356 = vmatmul.mubr.f32.gmra.mrb[0].mxu0 %v1259
      %v1357 = vpop.f32.mrb[0].mxu0
      %v1358 = vadd.f32 0.0, %v1357
      %v1359 = vpop.f32.mrb[0].mxu0
      %v1360 = vadd.f32 0.0, %v1359
      %1361 = vdwg.mxu0
      %vm1362 = vcmask 392192
      %v1364 = vsel %vm1362, %v1231, 0
      %v1367 = vsel %vm1362, %v1232, 0
      %v1370 = vsel %vm1362, %v1233, 0
      %v1373 = vsel %vm1362, %v1234, 0
      %v1376 = vsel %vm1362, %v1235, 0
      %v1379 = vsel %vm1362, %v1236, 0
      %1381 = vmatprep.subr.mxu0 %v1330
      %1382 = vmatpush1.msra.mxu0 %v1328
      %1383 = vmatprep.subr.mxu0 %v1336
      %1384 = vmatpush1.msra.mxu0 %v1334
      %1385 = vmatprep.subr.mxu0 %v1342
      %1386 = vmatpush1.msra.mxu0 %v1340
      %1387 = vmatprep.subr.mxu0 %v1348
      %1388 = vmatpush1.msra.mxu0 %v1346
      %1389 = vmatprep.subr.mxu0 %v1354
      %1390 = vmatpush1.msra.mxu0 %v1352
      %1391 = vmatprep.subr.mxu0 %v1360
      %1392 = vmatpush1.msra.mxu0 %v1358
      %1393 = vmatprep.subr.mxu0 0.0
      %1394 = vmatpush1.msra.mxu0 0.0
      %1395 = vmatprep.subr.mxu0 0.0
      %1396 = vmatpush1.msra.mxu0 0.0
      %1397 = vmatprep.subr.mxu0 0.0
      %1398 = vmatpush1.msra.mxu0 0.0
      %1399 = vmatprep.subr.mxu0 0.0
      %1400 = vmatpush1.msra.mxu0 0.0
      %1401 = vmatprep.subr.mxu0 0.0
      %1402 = vmatpush1.msra.mxu0 0.0
      %1403 = vmatprep.subr.mxu0 0.0
      %1404 = vmatpush1.msra.mxu0 0.0
      %1405 = vmatprep.subr.mxu0 0.0
      %1406 = vmatpush1.msra.mxu0 0.0
      %1407 = vmatprep.subr.mxu0 0.0
      %1408 = vmatpush1.msra.mxu0 0.0
      %1409 = vmatprep.subr.mxu0 0.0
      %1410 = vmatpush1.msra.mxu0 0.0
      %1411 = vmatprep.subr.mxu0 0.0
      %1412 = vmatpush1.msra.mxu0 0.0
      %1413 = vmatprep.subr.mxu0 0.0
      %1414 = vmatpush1.msra.mxu0 0.0
      %1415 = vmatprep.subr.mxu0 0.0
      %1416 = vmatpush1.msra.mxu0 0.0
      %1417 = vmatprep.subr.mxu0 0.0
      %1418 = vmatpush1.msra.mxu0 0.0
      %1419 = vmatprep.subr.mxu0 0.0
      %1420 = vmatpush1.msra.mxu0 0.0
      %1421 = vmatprep.subr.mxu0 0.0
      %1422 = vmatpush1.msra.mxu0 0.0
      %1423 = vmatprep.subr.mxu0 0.0
      %1424 = vmatpush1.msra.mxu0 0.0
      %1425 = vmatprep.subr.mxu0 0.0
      %1426 = vmatpush1.msra.mxu0 0.0
      %1427 = vmatprep.subr.mxu0 0.0
      %1428 = vmatpush1.msra.mxu0 0.0
      %1429 = vmatprep.subr.mxu0 0.0
      %1430 = vmatpush1.msra.mxu0 0.0
      %1431 = vmatprep.subr.mxu0 0.0
      %1432 = vmatpush1.msra.mxu0 0.0
      %1433 = vmatprep.subr.mxu0 0.0
      %1434 = vmatpush1.msra.mxu0 0.0
      %1435 = vmatprep.subr.mxu0 0.0
      %1436 = vmatpush1.msra.mxu0 0.0
      %1437 = vmatprep.subr.mxu0 0.0
      %1438 = vmatpush1.msra.mxu0 0.0
      %1439 = vmatprep.subr.mxu0 0.0
      %1440 = vmatpush1.msra.mxu0 0.0
      %1441 = vmatprep.subr.mxu0 0.0
      %1442 = vmatpush1.msra.mxu0 0.0
      %1443 = vmatprep.subr.mxu0 0.0
      %1444 = vmatpush1.msra.mxu0 0.0
      %1445 = vmatprep.mubr.f32.mxu0 0.0
      %1446 = vmatmul.mubr.f32.gmra.mrb[0].mxu0 %v1364
      %v1447 = vpop.f32.mrb[0].mxu0
      %v1448 = vadd.f32 0.0, %v1447
      %v1449 = vpop.f32.mrb[0].mxu0
      %v1450 = vadd.f32 0.0, %v1449
      %1451 = vmatprep.mubr.f32.mxu0 0.0
      %1452 = vmatmul.mubr.f32.gmra.mrb[0].mxu0 %v1367
      %v1453 = vpop.f32.mrb[0].mxu0
      %v1454 = vadd.f32 0.0, %v1453
      %v1455 = vpop.f32.mrb[0].mxu0
      %v1456 = vadd.f32 0.0, %v1455
      %1457 = vmatprep.mubr.f32.mxu0 0.0
      %1458 = vmatmul.mubr.f32.gmra.mrb[0].mxu0 %v1370
      %v1459 = vpop.f32.mrb[0].mxu0
      %v1460 = vadd.f32 0.0, %v1459
      %v1461 = vpop.f32.mrb[0].mxu0
      %v1462 = vadd.f32 0.0, %v1461
      %1463 = vmatprep.mubr.f32.mxu0 0.0
      %1464 = vmatmul.mubr.f32.gmra.mrb[0].mxu0 %v1373
      %v1465 = vpop.f32.mrb[0].mxu0
      %v1466 = vadd.f32 0.0, %v1465
      %v1467 = vpop.f32.mrb[0].mxu0
      %v1468 = vadd.f32 0.0, %v1467
      %1469 = vmatprep.mubr.f32.mxu0 0.0
      %1470 = vmatmul.mubr.f32.gmra.mrb[0].mxu0 %v1376
      %v1471 = vpop.f32.mrb[0].mxu0
      %v1472 = vadd.f32 0.0, %v1471
      %v1473 = vpop.f32.mrb[0].mxu0
      %v1474 = vadd.f32 0.0, %v1473
      %1475 = vmatprep.mubr.f32.mxu0 0.0
      %1476 = vmatmul.mubr.f32.gmra.mrb[0].mxu0 %v1379
      %v1477 = vpop.f32.mrb[0].mxu0
      %v1478 = vadd.f32 0.0, %v1477
      %v1479 = vpop.f32.mrb[0].mxu0
      %v1480 = vadd.f32 0.0, %v1479
      %1481 = vdwg.mxu0
      %v1482 = vmul.f32 %v1328, %v1448
      %v1483 = vmul.f32 %v1330, %v1450
      %v1484 = vmul.f32 %v1334, %v1454
      %v1485 = vmul.f32 %v1336, %v1456
      %v1486 = vmul.f32 %v1340, %v1460
      %v1487 = vmul.f32 %v1342, %v1462
      %v1488 = vmul.f32 %v1346, %v1466
      %v1489 = vmul.f32 %v1348, %v1468
      %v1490 = vmul.f32 %v1352, %v1472
      %v1491 = vmul.f32 %v1354, %v1474
      %v1492 = vmul.f32 %v1358, %v1478
      %v1493 = vmul.f32 %v1360, %v1480
      %v1495 = vsel %vm1362, %v1237, 0
      %v1498 = vsel %vm1362, %v1238, 0
      %v1501 = vsel %vm1362, %v1239, 0
      %v1504 = vsel %vm1362, %v1240, 0
      %v1507 = vsel %vm1362, %v1241, 0
      %v1510 = vsel %vm1362, %v1242, 0
      %1512 = vmatprep.subr.mxu0 %v1483
      %1513 = vmatpush1.msra.mxu0 %v1482
      %1514 = vmatprep.subr.mxu0 %v1485
      %1515 = vmatpush1.msra.mxu0 %v1484
      %1516 = vmatprep.subr.mxu0 %v1487
      %1517 = vmatpush1.msra.mxu0 %v1486
      %1518 = vmatprep.subr.mxu0 %v1489
      %1519 = vmatpush1.msra.mxu0 %v1488
      %1520 = vmatprep.subr.mxu0 %v1491
      %1521 = vmatpush1.msra.mxu0 %v1490
      %1522 = vmatprep.subr.mxu0 %v1493
      %1523 = vmatpush1.msra.mxu0 %v1492
      %1524 = vmatprep.subr.mxu0 0.0
      %1525 = vmatpush1.msra.mxu0 0.0
      %1526 = vmatprep.subr.mxu0 0.0
      %1527 = vmatpush1.msra.mxu0 0.0
      %1528 = vmatprep.subr.mxu0 0.0
      %1529 = vmatpush1.msra.mxu0 0.0
      %1530 = vmatprep.subr.mxu0 0.0
      %1531 = vmatpush1.msra.mxu0 0.0
      %1532 = vmatprep.subr.mxu0 0.0
      %1533 = vmatpush1.msra.mxu0 0.0
      %1534 = vmatprep.subr.mxu0 0.0
      %1535 = vmatpush1.msra.mxu0 0.0
      %1536 = vmatprep.subr.mxu0 0.0
      %1537 = vmatpush1.msra.mxu0 0.0
      %1538 = vmatprep.subr.mxu0 0.0
      %1539 = vmatpush1.msra.mxu0 0.0
      %1540 = vmatprep.subr.mxu0 0.0
      %1541 = vmatpush1.msra.mxu0 0.0
      %1542 = vmatprep.subr.mxu0 0.0
      %1543 = vmatpush1.msra.mxu0 0.0
      %1544 = vmatprep.subr.mxu0 0.0
      %1545 = vmatpush1.msra.mxu0 0.0
      %1546 = vmatprep.subr.mxu0 0.0
      %1547 = vmatpush1.msra.mxu0 0.0
      %1548 = vmatprep.subr.mxu0 0.0
      %1549 = vmatpush1.msra.mxu0 0.0
      %1550 = vmatprep.subr.mxu0 0.0
      %1551 = vmatpush1.msra.mxu0 0.0
      %1552 = vmatprep.subr.mxu0 0.0
      %1553 = vmatpush1.msra.mxu0 0.0
      %1554 = vmatprep.subr.mxu0 0.0
      %1555 = vmatpush1.msra.mxu0 0.0
      %1556 = vmatprep.subr.mxu0 0.0
      %1557 = vmatpush1.msra.mxu0 0.0
      %1558 = vmatprep.subr.mxu0 0.0
      %1559 = vmatpush1.msra.mxu0 0.0
      %1560 = vmatprep.subr.mxu0 0.0
      %1561 = vmatpush1.msra.mxu0 0.0
      %1562 = vmatprep.subr.mxu0 0.0
      %1563 = vmatpush1.msra.mxu0 0.0
      %1564 = vmatprep.subr.mxu0 0.0
      %1565 = vmatpush1.msra.mxu0 0.0
      %1566 = vmatprep.subr.mxu0 0.0
      %1567 = vmatpush1.msra.mxu0 0.0
      %1568 = vmatprep.subr.mxu0 0.0
      %1569 = vmatpush1.msra.mxu0 0.0
      %1570 = vmatprep.subr.mxu0 0.0
      %1571 = vmatpush1.msra.mxu0 0.0
      %1572 = vmatprep.subr.mxu0 0.0
      %1573 = vmatpush1.msra.mxu0 0.0
      %1574 = vmatprep.subr.mxu0 0.0
      %1575 = vmatpush1.msra.mxu0 0.0
      %1576 = vmatprep.mubr.f32.mxu0 0.0
      %1577 = vmatmul.mubr.f32.gmra.mrb[0].mxu0 %v1495
      %v1578 = vpop.f32.mrb[0].mxu0
      %v1579 = vadd.f32 0.0, %v1578
      %v1580 = vpop.f32.mrb[0].mxu0
      %v1581 = vadd.f32 0.0, %v1580
      %1582 = vmatprep.mubr.f32.mxu0 0.0
      %1583 = vmatmul.mubr.f32.gmra.mrb[0].mxu0 %v1498
      %v1584 = vpop.f32.mrb[0].mxu0
      %v1585 = vadd.f32 0.0, %v1584
      %v1586 = vpop.f32.mrb[0].mxu0
      %v1587 = vadd.f32 0.0, %v1586
      %1588 = vmatprep.mubr.f32.mxu0 0.0
      %1589 = vmatmul.mubr.f32.gmra.mrb[0].mxu0 %v1501
      %v1590 = vpop.f32.mrb[0].mxu0
      %v1591 = vadd.f32 0.0, %v1590
      %v1592 = vpop.f32.mrb[0].mxu0
      %v1593 = vadd.f32 0.0, %v1592
      %1594 = vmatprep.mubr.f32.mxu0 0.0
      %1595 = vmatmul.mubr.f32.gmra.mrb[0].mxu0 %v1504
      %v1596 = vpop.f32.mrb[0].mxu0
      %v1597 = vadd.f32 0.0, %v1596
      %v1598 = vpop.f32.mrb[0].mxu0
      %v1599 = vadd.f32 0.0, %v1598
      %1600 = vmatprep.mubr.f32.mxu0 0.0
      %1601 = vmatmul.mubr.f32.gmra.mrb[0].mxu0 %v1507
      %v1602 = vpop.f32.mrb[0].mxu0
      %v1603 = vadd.f32 0.0, %v1602
      %v1604 = vpop.f32.mrb[0].mxu0
      %v1605 = vadd.f32 0.0, %v1604
      %1606 = vmatprep.mubr.f32.mxu0 0.0
      %1607 = vmatmul.mubr.f32.gmra.mrb[0].mxu0 %v1510
      %v1608 = vpop.f32.mrb[0].mxu0
      %v1609 = vadd.f32 0.0, %v1608
      %v1610 = vpop.f32.mrb[0].mxu0
      %v1611 = vadd.f32 0.0, %v1610
      %1612 = vdwg.mxu0
      %v1613 = vmul.f32 %v1448, %v1448
      %v1614 = vmul.f32 %v1450, %v1450
      %v1615 = vmul.f32 %v1454, %v1454
      %v1616 = vmul.f32 %v1456, %v1456
      %v1617 = vmul.f32 %v1460, %v1460
      %v1618 = vmul.f32 %v1462, %v1462
      %v1619 = vmul.f32 %v1466, %v1466
      %v1620 = vmul.f32 %v1468, %v1468
      %v1621 = vmul.f32 %v1472, %v1472
      %v1622 = vmul.f32 %v1474, %v1474
      %v1623 = vmul.f32 %v1478, %v1478
      %v1624 = vmul.f32 %v1480, %v1480
      %1625 = vmatprep.subr.mxu0 %v1614
      %1626 = vmatpush1.msra.mxu0 %v1613
      %1627 = vmatprep.subr.mxu0 %v1616
      %1628 = vmatpush1.msra.mxu0 %v1615
      %1629 = vmatprep.subr.mxu0 %v1618
      %1630 = vmatpush1.msra.mxu0 %v1617
      %1631 = vmatprep.subr.mxu0 %v1620
      %1632 = vmatpush1.msra.mxu0 %v1619
      %1633 = vmatprep.subr.mxu0 %v1622
      %1634 = vmatpush1.msra.mxu0 %v1621
      %1635 = vmatprep.subr.mxu0 %v1624
      %1636 = vmatpush1.msra.mxu0 %v1623
      %1637 = vmatprep.subr.mxu0 0.0
      %1638 = vmatpush1.msra.mxu0 0.0
      %1639 = vmatprep.subr.mxu0 0.0
      %1640 = vmatpush1.msra.mxu0 0.0
      %1641 = vmatprep.subr.mxu0 0.0
      %1642 = vmatpush1.msra.mxu0 0.0
      %1643 = vmatprep.subr.mxu0 0.0
      %1644 = vmatpush1.msra.mxu0 0.0
      %1645 = vmatprep.subr.mxu0 0.0
      %1646 = vmatpush1.msra.mxu0 0.0
      %1647 = vmatprep.subr.mxu0 0.0
      %1648 = vmatpush1.msra.mxu0 0.0
      %1649 = vmatprep.subr.mxu0 0.0
      %1650 = vmatpush1.msra.mxu0 0.0
      %1651 = vmatprep.subr.mxu0 0.0
      %1652 = vmatpush1.msra.mxu0 0.0
      %1653 = vmatprep.subr.mxu0 0.0
      %1654 = vmatpush1.msra.mxu0 0.0
      %1655 = vmatprep.subr.mxu0 0.0
      %1656 = vmatpush1.msra.mxu0 0.0
      %1657 = vmatprep.subr.mxu0 0.0
      %1658 = vmatpush1.msra.mxu0 0.0
      %1659 = vmatprep.subr.mxu0 0.0
      %1660 = vmatpush1.msra.mxu0 0.0
      %1661 = vmatprep.subr.mxu0 0.0
      %1662 = vmatpush1.msra.mxu0 0.0
      %1663 = vmatprep.subr.mxu0 0.0
      %1664 = vmatpush1.msra.mxu0 0.0
      %1665 = vmatprep.subr.mxu0 0.0
      %1666 = vmatpush1.msra.mxu0 0.0
      %1667 = vmatprep.subr.mxu0 0.0
      %1668 = vmatpush1.msra.mxu0 0.0
      %1669 = vmatprep.subr.mxu0 0.0
      %1670 = vmatpush1.msra.mxu0 0.0
      %1671 = vmatprep.subr.mxu0 0.0
      %1672 = vmatpush1.msra.mxu0 0.0
      %1673 = vmatprep.subr.mxu0 0.0
      %1674 = vmatpush1.msra.mxu0 0.0
      %1675 = vmatprep.subr.mxu0 0.0
      %1676 = vmatpush1.msra.mxu0 0.0
      %1677 = vmatprep.subr.mxu0 0.0
      %1678 = vmatpush1.msra.mxu0 0.0
      %1679 = vmatprep.subr.mxu0 0.0
      %1680 = vmatpush1.msra.mxu0 0.0
      %1681 = vmatprep.subr.mxu0 0.0
      %1682 = vmatpush1.msra.mxu0 0.0
      %1683 = vmatprep.subr.mxu0 0.0
      %1684 = vmatpush1.msra.mxu0 0.0
      %1685 = vmatprep.subr.mxu0 0.0
      %1686 = vmatpush1.msra.mxu0 0.0
      %1687 = vmatprep.subr.mxu0 0.0
      %1688 = vmatpush1.msra.mxu0 0.0
      %1689 = vmatprep.mubr.f32.mxu0 0.0
      %1690 = vmatmul.mubr.f32.gmra.mrb[0].mxu0 %v1495
      %v1691 = vpop.f32.mrb[0].mxu0
      %v1692 = vadd.f32 1e-06, %v1691
      %v1693 = vpop.f32.mrb[0].mxu0
      %v1694 = vadd.f32 1e-06, %v1693
      %1695 = vmatprep.mubr.f32.mxu0 0.0
      %1696 = vmatmul.mubr.f32.gmra.mrb[0].mxu0 %v1498
      %v1697 = vpop.f32.mrb[0].mxu0
      %v1698 = vadd.f32 1e-06, %v1697
      %v1699 = vpop.f32.mrb[0].mxu0
      %v1700 = vadd.f32 1e-06, %v1699
      %1701 = vmatprep.mubr.f32.mxu0 0.0
      %1702 = vmatmul.mubr.f32.gmra.mrb[0].mxu0 %v1501
      %v1703 = vpop.f32.mrb[0].mxu0
      %v1704 = vadd.f32 1e-06, %v1703
      %v1705 = vpop.f32.mrb[0].mxu0
      %v1706 = vadd.f32 1e-06, %v1705
      %1707 = vmatprep.mubr.f32.mxu0 0.0
      %1708 = vmatmul.mubr.f32.gmra.mrb[0].mxu0 %v1504
      %v1709 = vpop.f32.mrb[0].mxu0
      %v1710 = vadd.f32 1e-06, %v1709
      %v1711 = vpop.f32.mrb[0].mxu0
      %v1712 = vadd.f32 1e-06, %v1711
      %1713 = vmatprep.mubr.f32.mxu0 0.0
      %1714 = vmatmul.mubr.f32.gmra.mrb[0].mxu0 %v1507
      %v1715 = vpop.f32.mrb[0].mxu0
      %v1716 = vadd.f32 1e-06, %v1715
      %v1717 = vpop.f32.mrb[0].mxu0
      %v1718 = vadd.f32 1e-06, %v1717
      %1719 = vmatprep.mubr.f32.mxu0 0.0
      %1720 = vmatmul.mubr.f32.gmra.mrb[0].mxu0 %v1510
      %v1721 = vpop.f32.mrb[0].mxu0
      %v1722 = vadd.f32 1e-06, %v1721
      %v1723 = vpop.f32.mrb[0].mxu0
      %v1724 = vadd.f32 1e-06, %v1723
      %1725 = vdwg.mxu0
      %vm1726 = vcmp.ge.f32.partialorder %v1579, 0.0
      %vm1727 = vcmp.ge.f32.partialorder %v1581, 0.0
      %vm1728 = vcmp.ge.f32.partialorder %v1585, 0.0
      %vm1729 = vcmp.ge.f32.partialorder %v1587, 0.0
      %vm1730 = vcmp.ge.f32.partialorder %v1591, 0.0
      %vm1731 = vcmp.ge.f32.partialorder %v1593, 0.0
      %vm1732 = vcmp.ge.f32.partialorder %v1597, 0.0
      %vm1733 = vcmp.ge.f32.partialorder %v1599, 0.0
      %vm1734 = vcmp.ge.f32.partialorder %v1603, 0.0
      %vm1735 = vcmp.ge.f32.partialorder %v1605, 0.0
      %vm1736 = vcmp.ge.f32.partialorder %v1609, 0.0
      %vm1737 = vcmp.ge.f32.partialorder %v1611, 0.0
      %v1738 = vmul.f32 %v1579, 0.8
      %v1739 = vmul.f32 %v1581, 0.8
      %v1740 = vmul.f32 %v1585, 0.8
      %v1741 = vmul.f32 %v1587, 0.8
      %v1742 = vmul.f32 %v1591, 0.8
      %v1743 = vmul.f32 %v1593, 0.8
      %v1744 = vmul.f32 %v1597, 0.8
      %v1745 = vmul.f32 %v1599, 0.8
      %v1746 = vmul.f32 %v1603, 0.8
      %v1747 = vmul.f32 %v1605, 0.8
      %v1748 = vmul.f32 %v1609, 0.8
      %v1749 = vmul.f32 %v1611, 0.8
      %v1750 = vrcp.pop %v1692
      %v1751 = vmul.f32 %v1738, %v1750
      %v1752 = vrcp.pop %v1694
      %v1753 = vmul.f32 %v1739, %v1752
      %v1754 = vrcp.pop %v1698
      %v1755 = vmul.f32 %v1740, %v1754
      %v1756 = vrcp.pop %v1700
      %v1757 = vmul.f32 %v1741, %v1756
      %v1758 = vrcp.pop %v1704
      %v1759 = vmul.f32 %v1742, %v1758
      %v1760 = vrcp.pop %v1706
      %v1761 = vmul.f32 %v1743, %v1760
      %v1762 = vrcp.pop %v1710
      %v1763 = vmul.f32 %v1744, %v1762
      %v1764 = vrcp.pop %v1712
      %v1765 = vmul.f32 %v1745, %v1764
      %v1766 = vrcp.pop %v1716
      %v1767 = vmul.f32 %v1746, %v1766
      %v1768 = vrcp.pop %v1718
      %v1769 = vmul.f32 %v1747, %v1768
      %v1770 = vrcp.pop %v1722
      %v1771 = vmul.f32 %v1748, %v1770
      %v1772 = vrcp.pop %v1724
      %v1773 = vmul.f32 %v1749, %v1772
      %v1774 = vsel %vm1726, 0.0, %v1751
      %v1775 = vsel %vm1727, 0.0, %v1753
      %v1776 = vsel %vm1728, 0.0, %v1755
      %v1777 = vsel %vm1729, 0.0, %v1757
      %v1778 = vsel %vm1730, 0.0, %v1759
      %v1779 = vsel %vm1731, 0.0, %v1761
      %v1780 = vsel %vm1732, 0.0, %v1763
      %v1781 = vsel %vm1733, 0.0, %v1765
      %v1782 = vsel %vm1734, 0.0, %v1767
      %v1783 = vsel %vm1735, 0.0, %v1769
      %v1784 = vsel %vm1736, 0.0, %v1771
      %v1785 = vsel %vm1737, 0.0, %v1773
      %v1786 = vmul.f32 %v1774, %v1448
      %v1787 = vmul.f32 %v1775, %v1450
      %v1788 = vmul.f32 %v1776, %v1454
      %v1789 = vmul.f32 %v1777, %v1456
      %v1790 = vmul.f32 %v1778, %v1460
      %v1791 = vmul.f32 %v1779, %v1462
      %v1792 = vmul.f32 %v1780, %v1466
      %v1793 = vmul.f32 %v1781, %v1468
      %v1794 = vmul.f32 %v1782, %v1472
      %v1795 = vmul.f32 %v1783, %v1474
      %v1796 = vmul.f32 %v1784, %v1478
      %v1797 = vmul.f32 %v1785, %v1480
      %v1798 = vsub.f32 %v1328, %v1786
      %v1799 = vsub.f32 %v1330, %v1787
      %v1800 = vsub.f32 %v1334, %v1788
      %v1801 = vsub.f32 %v1336, %v1789
      %v1802 = vsub.f32 %v1340, %v1790
      %v1803 = vsub.f32 %v1342, %v1791
      %v1804 = vsub.f32 %v1346, %v1792
      %v1805 = vsub.f32 %v1348, %v1793
      %v1806 = vsub.f32 %v1352, %v1794
      %v1807 = vsub.f32 %v1354, %v1795
      %v1808 = vsub.f32 %v1358, %v1796
      %v1809 = vsub.f32 %v1360, %v1797
      %v1810 = vadd.f32 %v1798, %v1799
      %1811 = vadd.xlane.f32.xlu0 %v1810
      %v1812 = vpop.xlane.xlu0 %1811
      %v1813 = vadd.f32 %v1800, %v1801
      %1814 = vadd.xlane.f32.xlu0 %v1813
      %v1815 = vpop.xlane.xlu0 %1814
      %v1816 = vadd.f32 %v1802, %v1803
      %1817 = vadd.xlane.f32.xlu0 %v1816
      %v1818 = vpop.xlane.xlu0 %1817
      %v1819 = vadd.f32 %v1804, %v1805
      %1820 = vadd.xlane.f32.xlu0 %v1819
      %v1821 = vpop.xlane.xlu0 %1820
      %v1822 = vadd.f32 %v1806, %v1807
      %1823 = vadd.xlane.f32.xlu0 %v1822
      %v1824 = vpop.xlane.xlu0 %1823
      %v1825 = vadd.f32 %v1808, %v1809
      %1826 = vadd.xlane.f32.xlu0 %v1825
      %v1827 = vpop.xlane.xlu0 %1826
      %v1828 = vmul.f32 %v1812, %v702
      %v1829 = vmul.f32 %v1815, %v702
      %v1830 = vmul.f32 %v1818, %v702
      %v1831 = vmul.f32 %v1821, %v702
      %v1832 = vmul.f32 %v1824, %v702
      %v1833 = vmul.f32 %v1827, %v702
      %v1834 = vld [vmem:[%s7] sm:$0x3f]
      %v1836 = vsel %vm1362, %v1834, 0
      %1838 = vmatprep.subr.mxu0 0.0
      %1839 = vmatpush1.msra.mxu0 %v1828
      %1840 = vmatprep.subr.mxu0 0.0
      %1841 = vmatpush1.msra.mxu0 %v1829
      %1842 = vmatprep.subr.mxu0 0.0
      %1843 = vmatpush1.msra.mxu0 %v1830
      %1844 = vmatprep.subr.mxu0 0.0
      %1845 = vmatpush1.msra.mxu0 %v1831
      %1846 = vmatprep.subr.mxu0 0.0
      %1847 = vmatpush1.msra.mxu0 %v1832
      %1848 = vmatprep.subr.mxu0 0.0
      %1849 = vmatpush1.msra.mxu0 %v1833
      %1850 = vmatprep.subr.mxu0 0.0
      %1851 = vmatpush1.msra.mxu0 0.0
      %1852 = vmatprep.subr.mxu0 0.0
      %1853 = vmatpush1.msra.mxu0 0.0
      %1854 = vmatprep.subr.mxu0 0.0
      %1855 = vmatpush1.msra.mxu0 0.0
      %1856 = vmatprep.subr.mxu0 0.0
      %1857 = vmatpush1.msra.mxu0 0.0
      %1858 = vmatprep.subr.mxu0 0.0
      %1859 = vmatpush1.msra.mxu0 0.0
      %1860 = vmatprep.subr.mxu0 0.0
      %1861 = vmatpush1.msra.mxu0 0.0
      %1862 = vmatprep.subr.mxu0 0.0
      %1863 = vmatpush1.msra.mxu0 0.0
      %1864 = vmatprep.subr.mxu0 0.0
      %1865 = vmatpush1.msra.mxu0 0.0
      %1866 = vmatprep.subr.mxu0 0.0
      %1867 = vmatpush1.msra.mxu0 0.0
      %1868 = vmatprep.subr.mxu0 0.0
      %1869 = vmatpush1.msra.mxu0 0.0
      %1870 = vmatprep.subr.mxu0 0.0
      %1871 = vmatpush1.msra.mxu0 0.0
      %1872 = vmatprep.subr.mxu0 0.0
      %1873 = vmatpush1.msra.mxu0 0.0
      %1874 = vmatprep.subr.mxu0 0.0
      %1875 = vmatpush1.msra.mxu0 0.0
      %1876 = vmatprep.subr.mxu0 0.0
      %1877 = vmatpush1.msra.mxu0 0.0
      %1878 = vmatprep.subr.mxu0 0.0
      %1879 = vmatpush1.msra.mxu0 0.0
      %1880 = vmatprep.subr.mxu0 0.0
      %1881 = vmatpush1.msra.mxu0 0.0
      %1882 = vmatprep.subr.mxu0 0.0
      %1883 = vmatpush1.msra.mxu0 0.0
      %1884 = vmatprep.subr.mxu0 0.0
      %1885 = vmatpush1.msra.mxu0 0.0
      %1886 = vmatprep.subr.mxu0 0.0
      %1887 = vmatpush1.msra.mxu0 0.0
      %1888 = vmatprep.subr.mxu0 0.0
      %1889 = vmatpush1.msra.mxu0 0.0
      %1890 = vmatprep.subr.mxu0 0.0
      %1891 = vmatpush1.msra.mxu0 0.0
      %1892 = vmatprep.subr.mxu0 0.0
      %1893 = vmatpush1.msra.mxu0 0.0
      %1894 = vmatprep.subr.mxu0 0.0
      %1895 = vmatpush1.msra.mxu0 0.0
      %1896 = vmatprep.subr.mxu0 0.0
      %1897 = vmatpush1.msra.mxu0 0.0
      %1898 = vmatprep.subr.mxu0 0.0
      %1899 = vmatpush1.msra.mxu0 0.0
      %1900 = vmatprep.subr.mxu0 0.0
      %1901 = vmatpush1.msra.mxu0 0.0
      %1902 = vmatprep.mubr.f32.mxu0 0.0
      %1903 = vmatmul.mubr.f32.gmra.mrb[0].mxu0 %v1836
      %v1904 = vpop.f32.mrb[0].mxu0
      %v1905 = vadd.f32 0.0, %v1904
      %v1906 = vpop.f32.mrb[0].mxu0
      %1907 = vdwg.mxu0
      %v1908 = vmul.f32 %v1905, %v1905
      %vm1909 = vcmask 2048
      %v1910 = vsel %vm1909, %v1908, 0.0
      %v1911 = vrot.slane %v1910, 4
      %v1912 = vadd.f32 %v1910, %v1911
      %v1913 = vrot.slane %v1912, 2
      %v1914 = vadd.f32 %v1912, %v1913
      %v1915 = vrot.slane %v1914, 1
      %v1916 = vadd.f32 %v1914, %v1915
      %v1917 = vrsqrt.pop %v1916
      %v1918 = vmul.f32 %v1916, %v1917
      %vm1919 = vcmp.eq.f32.partialorder %v1916, inf
      %v1920 = vsel %vm1919, %v1916, %v1918
      %vm1921 = vcmp.eq.f32.partialorder %v1916, 0.0
      %v1922 = vand.u32 %v1916, 2147483648
      %v1923 = vsel %vm1921, %v1922, %v1920
      %v1924 = vadd.f32 %v1923, 1e-09
      %v1925 = vrcp.pop %v1924
      %v1926 = vmul.f32 %v1905, %v1925
      %v1928 = vrot.slane %v1905, 3
      %v1930 = vmul.f32 %v1926, %v1928
      %v1931 = vsel %vm1909, %v1930, 0.0
      %v1932 = vrot.slane %v1931, 4
      %v1933 = vadd.f32 %v1931, %v1932
      %v1934 = vrot.slane %v1933, 2
      %v1935 = vadd.f32 %v1933, %v1934
      %v1936 = vrot.slane %v1935, 1
      %v1937 = vadd.f32 %v1935, %v1936
      %v1938 = vmul.f32 %v1937, %v1926
      %v1940 = vrot.slane %v1938, 5
      %v1942 = vsub.f32 %v1905, %v1940
      %v1943 = vmul.f32 %v1942, %v1942
      %v1945 = vrot.slane %v1943, 3
      %v1947 = vsel %vm1909, %v1945, 0.0
      %v1948 = vrot.slane %v1947, 4
      %v1949 = vadd.f32 %v1947, %v1948
      %v1950 = vrot.slane %v1949, 2
      %v1951 = vadd.f32 %v1949, %v1950
      %v1952 = vrot.slane %v1951, 1
      %v1953 = vadd.f32 %v1951, %v1952
      %v1954 = vrsqrt.pop %v1953
      %v1955 = vmul.f32 %v1953, %v1954
      %vm1956 = vcmp.eq.f32.partialorder %v1953, inf
      %v1957 = vsel %vm1956, %v1953, %v1955
      %vm1958 = vcmp.eq.f32.partialorder %v1953, 0.0
      %v1959 = vand.u32 %v1953, 2147483648
      %v1960 = vsel %vm1958, %v1959, %v1957
      %v1961 = vadd.f32 %v1960, 1e-09
      %v1962 = vrcp.pop %v1961
      %v1963 = vmul.f32 %v1942, %v1962
      %v1965 = vrot.slane %v1963, 4
      %v1967 = vmul.f32 %v1926, %v1965
      %v1968 = vrot.slane %v1963, 2
      %v1970 = vmul.f32 %v1926, %v1968
      %v1972 = vrot.slane %v1970, 1
      %v1974 = vsub.f32 %v1967, %v1972
      %v1975 = vrot.slane %v1963, 1
      %v1977 = vmul.f32 %v1926, %v1975
      %v1978 = vrot.slane %v1963, 5
      %v1980 = vmul.f32 %v1926, %v1978
      %v1982 = vrot.slane %v1980, 6
      %v1984 = vsub.f32 %v1977, %v1982
      %v1986 = vrot.slane %v1974, 1
      %v1989 = vrot.slane %v1984, 1
      %v1991 = vrot.slane %v1974, 6
      %v1993 = vsel %vm774, %v1986, %v1989
      %v1994 = vsel %vm777, %v1993, %v1991
      %v1995 = vrot.slane %v1963, 3
      %1996 = vrot.lane.b32.xlu0 %v1995, 1
      %v1997 = vpop.permute.xlu0 %1996
      %2000 = vrot.lane.b32.xlu0 %v1994, 2
      %v2001 = vpop.permute.xlu0 %2000
      %vm2003 = vcmask 7168
      %v2004 = vsel %vm2003, %v1926, %v1997
      %vm2005 = vcmask 15360
      %v2006 = vsel %vm2005, %v2004, %v2001
      %v2007 = vmul.f32 %v1828, %v1828
      %v2008 = vmul.f32 %v1829, %v1829
      %v2009 = vmul.f32 %v1830, %v1830
      %v2010 = vmul.f32 %v1831, %v1831
      %v2011 = vmul.f32 %v1832, %v1832
      %v2012 = vmul.f32 %v1833, %v1833
      %2013 = vmatprep.subr.mxu0 0.0
      %2014 = vmatpush1.msra.mxu0 %v2007
      %2015 = vmatprep.subr.mxu0 0.0
      %2016 = vmatpush1.msra.mxu0 %v2008
      %2017 = vmatprep.subr.mxu0 0.0
      %2018 = vmatpush1.msra.mxu0 %v2009
      %2019 = vmatprep.subr.mxu0 0.0
      %2020 = vmatpush1.msra.mxu0 %v2010
      %2021 = vmatprep.subr.mxu0 0.0
      %2022 = vmatpush1.msra.mxu0 %v2011
      %2023 = vmatprep.subr.mxu0 0.0
      %2024 = vmatpush1.msra.mxu0 %v2012
      %2025 = vmatprep.subr.mxu0 0.0
      %2026 = vmatpush1.msra.mxu0 0.0
      %2027 = vmatprep.subr.mxu0 0.0
      %2028 = vmatpush1.msra.mxu0 0.0
      %2029 = vmatprep.subr.mxu0 0.0
      %2030 = vmatpush1.msra.mxu0 0.0
      %2031 = vmatprep.subr.mxu0 0.0
      %2032 = vmatpush1.msra.mxu0 0.0
      %2033 = vmatprep.subr.mxu0 0.0
      %2034 = vmatpush1.msra.mxu0 0.0
      %2035 = vmatprep.subr.mxu0 0.0
      %2036 = vmatpush1.msra.mxu0 0.0
      %2037 = vmatprep.subr.mxu0 0.0
      %2038 = vmatpush1.msra.mxu0 0.0
      %2039 = vmatprep.subr.mxu0 0.0
      %2040 = vmatpush1.msra.mxu0 0.0
      %2041 = vmatprep.subr.mxu0 0.0
      %2042 = vmatpush1.msra.mxu0 0.0
      %2043 = vmatprep.subr.mxu0 0.0
      %2044 = vmatpush1.msra.mxu0 0.0
      %2045 = vmatprep.subr.mxu0 0.0
      %2046 = vmatpush1.msra.mxu0 0.0
      %2047 = vmatprep.subr.mxu0 0.0
      %2048 = vmatpush1.msra.mxu0 0.0
      %2049 = vmatprep.subr.mxu0 0.0
      %2050 = vmatpush1.msra.mxu0 0.0
      %2051 = vmatprep.subr.mxu0 0.0
      %2052 = vmatpush1.msra.mxu0 0.0
      %2053 = vmatprep.subr.mxu0 0.0
      %2054 = vmatpush1.msra.mxu0 0.0
      %2055 = vmatprep.subr.mxu0 0.0
      %2056 = vmatpush1.msra.mxu0 0.0
      %2057 = vmatprep.subr.mxu0 0.0
      %2058 = vmatpush1.msra.mxu0 0.0
      %2059 = vmatprep.subr.mxu0 0.0
      %2060 = vmatpush1.msra.mxu0 0.0
      %2061 = vmatprep.subr.mxu0 0.0
      %2062 = vmatpush1.msra.mxu0 0.0
      %2063 = vmatprep.subr.mxu0 0.0
      %2064 = vmatpush1.msra.mxu0 0.0
      %2065 = vmatprep.subr.mxu0 0.0
      %2066 = vmatpush1.msra.mxu0 0.0
      %2067 = vmatprep.subr.mxu0 0.0
      %2068 = vmatpush1.msra.mxu0 0.0
      %2069 = vmatprep.subr.mxu0 0.0
      %2070 = vmatpush1.msra.mxu0 0.0
      %2071 = vmatprep.subr.mxu0 0.0
      %2072 = vmatpush1.msra.mxu0 0.0
      %2073 = vmatprep.subr.mxu0 0.0
      %2074 = vmatpush1.msra.mxu0 0.0
      %2075 = vmatprep.subr.mxu0 0.0
      %2076 = vmatpush1.msra.mxu0 0.0
      %2077 = vmatprep.mubr.f32.mxu0 0.0
      %2078 = vmatmul.mubr.f32.gmra.mrb[0].mxu0 %v1495
      %v2079 = vpop.f32.mrb[0].mxu0
      %v2080 = vadd.f32 1e-12, %v2079
      %v2081 = vpop.f32.mrb[0].mxu0
      %2082 = vmatprep.mubr.f32.mxu0 0.0
      %2083 = vmatmul.mubr.f32.gmra.mrb[0].mxu0 %v1498
      %v2084 = vpop.f32.mrb[0].mxu0
      %v2085 = vadd.f32 1e-12, %v2084
      %v2086 = vpop.f32.mrb[0].mxu0
      %2087 = vmatprep.mubr.f32.mxu0 0.0
      %2088 = vmatmul.mubr.f32.gmra.mrb[0].mxu0 %v1501
      %v2089 = vpop.f32.mrb[0].mxu0
      %v2090 = vadd.f32 1e-12, %v2089
      %v2091 = vpop.f32.mrb[0].mxu0
      %2092 = vmatprep.mubr.f32.mxu0 0.0
      %2093 = vmatmul.mubr.f32.gmra.mrb[0].mxu0 %v1504
      %v2094 = vpop.f32.mrb[0].mxu0
      %v2095 = vadd.f32 1e-12, %v2094
      %v2096 = vpop.f32.mrb[0].mxu0
      %2097 = vmatprep.mubr.f32.mxu0 0.0
      %2098 = vmatmul.mubr.f32.gmra.mrb[0].mxu0 %v1507
      %v2099 = vpop.f32.mrb[0].mxu0
      %v2100 = vadd.f32 1e-12, %v2099
      %v2101 = vpop.f32.mrb[0].mxu0
      %2102 = vmatprep.mubr.f32.mxu0 0.0
      %2103 = vmatmul.mubr.f32.gmra.mrb[0].mxu0 %v1510
      %v2104 = vpop.f32.mrb[0].mxu0
      %v2105 = vadd.f32 1e-12, %v2104
      %v2106 = vpop.f32.mrb[0].mxu0
      %2107 = vdwg.mxu0
      %v2108 = vrsqrt.pop %v2080
      %v2109 = vmul.f32 %v2080, %v2108
      %vm2110 = vcmp.eq.f32.partialorder %v2080, inf
      %v2111 = vsel %vm2110, %v2080, %v2109
      %vm2112 = vcmp.eq.f32.partialorder %v2080, 0.0
      %v2113 = vand.u32 %v2080, 2147483648
      %v2114 = vsel %vm2112, %v2113, %v2111
      %v2115 = vrsqrt.pop %v2085
      %v2116 = vmul.f32 %v2085, %v2115
      %vm2117 = vcmp.eq.f32.partialorder %v2085, inf
      %v2118 = vsel %vm2117, %v2085, %v2116
      %vm2119 = vcmp.eq.f32.partialorder %v2085, 0.0
      %v2120 = vand.u32 %v2085, 2147483648
      %v2121 = vsel %vm2119, %v2120, %v2118
      %v2122 = vrsqrt.pop %v2090
      %v2123 = vmul.f32 %v2090, %v2122
      %vm2124 = vcmp.eq.f32.partialorder %v2090, inf
      %v2125 = vsel %vm2124, %v2090, %v2123
      %vm2126 = vcmp.eq.f32.partialorder %v2090, 0.0
      %v2127 = vand.u32 %v2090, 2147483648
      %v2128 = vsel %vm2126, %v2127, %v2125
      %v2129 = vrsqrt.pop %v2095
      %v2130 = vmul.f32 %v2095, %v2129
      %vm2131 = vcmp.eq.f32.partialorder %v2095, inf
      %v2132 = vsel %vm2131, %v2095, %v2130
      %vm2133 = vcmp.eq.f32.partialorder %v2095, 0.0
      %v2134 = vand.u32 %v2095, 2147483648
      %v2135 = vsel %vm2133, %v2134, %v2132
      %v2136 = vrsqrt.pop %v2100
      %v2137 = vmul.f32 %v2100, %v2136
      %vm2138 = vcmp.eq.f32.partialorder %v2100, inf
      %v2139 = vsel %vm2138, %v2100, %v2137
      %vm2140 = vcmp.eq.f32.partialorder %v2100, 0.0
      %v2141 = vand.u32 %v2100, 2147483648
      %v2142 = vsel %vm2140, %v2141, %v2139
      %v2143 = vrsqrt.pop %v2105
      %v2144 = vmul.f32 %v2105, %v2143
      %vm2145 = vcmp.eq.f32.partialorder %v2105, inf
      %v2146 = vsel %vm2145, %v2105, %v2144
      %vm2147 = vcmp.eq.f32.partialorder %v2105, 0.0
      %v2148 = vand.u32 %v2105, 2147483648
      %v2149 = vsel %vm2147, %v2148, %v2146
      %v2150 = vld [vmem:[%s8] sm:$0xff]
      %v2151 = vld [vmem:[%s8 + $0x8] sm:$0xff]
      %v2152 = vld [vmem:[%s8 + $0x10] sm:$0xff]
      %v2153 = vld [vmem:[%s8 + $0x18] sm:$0xff]
      %v2154 = vld [vmem:[%s9] sm:$0xff]
      %v2155 = vld [vmem:[%s9 + $0x8] sm:$0xff]
      %v2156 = vld [vmem:[%s9 + $0x10] sm:$0xff]
      %v2157 = vld [vmem:[%s9 + $0x18] sm:$0xff]
      %v2159 = vsel %vm1362, %v2150, 0
      %v2162 = vsel %vm1362, %v2151, 0
      %v2165 = vsel %vm1362, %v2152, 0
      %v2168 = vsel %vm1362, %v2153, 0
      %2170 = vmatprep.subr.mxu0 0.0
      %2171 = vmatpush1.msra.mxu0 %v2114
      %2172 = vmatprep.subr.mxu0 0.0
      %2173 = vmatpush1.msra.mxu0 %v2121
      %2174 = vmatprep.subr.mxu0 0.0
      %2175 = vmatpush1.msra.mxu0 %v2128
      %2176 = vmatprep.subr.mxu0 0.0
      %2177 = vmatpush1.msra.mxu0 %v2135
      %2178 = vmatprep.subr.mxu0 0.0
      %2179 = vmatpush1.msra.mxu0 %v2142
      %2180 = vmatprep.subr.mxu0 0.0
      %2181 = vmatpush1.msra.mxu0 %v2149
      %2182 = vmatprep.subr.mxu0 0.0
      %2183 = vmatpush1.msra.mxu0 0.0
      %2184 = vmatprep.subr.mxu0 0.0
      %2185 = vmatpush1.msra.mxu0 0.0
      %2186 = vmatprep.subr.mxu0 0.0
      %2187 = vmatpush1.msra.mxu0 0.0
      %2188 = vmatprep.subr.mxu0 0.0
      %2189 = vmatpush1.msra.mxu0 0.0
      %2190 = vmatprep.subr.mxu0 0.0
      %2191 = vmatpush1.msra.mxu0 0.0
      %2192 = vmatprep.subr.mxu0 0.0
      %2193 = vmatpush1.msra.mxu0 0.0
      %2194 = vmatprep.subr.mxu0 0.0
      %2195 = vmatpush1.msra.mxu0 0.0
      %2196 = vmatprep.subr.mxu0 0.0
      %2197 = vmatpush1.msra.mxu0 0.0
      %2198 = vmatprep.subr.mxu0 0.0
      %2199 = vmatpush1.msra.mxu0 0.0
      %2200 = vmatprep.subr.mxu0 0.0
      %2201 = vmatpush1.msra.mxu0 0.0
      %2202 = vmatprep.subr.mxu0 0.0
      %2203 = vmatpush1.msra.mxu0 0.0
      %2204 = vmatprep.subr.mxu0 0.0
      %2205 = vmatpush1.msra.mxu0 0.0
      %2206 = vmatprep.subr.mxu0 0.0
      %2207 = vmatpush1.msra.mxu0 0.0
      %2208 = vmatprep.subr.mxu0 0.0
      %2209 = vmatpush1.msra.mxu0 0.0
      %2210 = vmatprep.subr.mxu0 0.0
      %2211 = vmatpush1.msra.mxu0 0.0
      %2212 = vmatprep.subr.mxu0 0.0
      %2213 = vmatpush1.msra.mxu0 0.0
      %2214 = vmatprep.subr.mxu0 0.0
      %2215 = vmatpush1.msra.mxu0 0.0
      %2216 = vmatprep.subr.mxu0 0.0
      %2217 = vmatpush1.msra.mxu0 0.0
      %2218 = vmatprep.subr.mxu0 0.0
      %2219 = vmatpush1.msra.mxu0 0.0
      %2220 = vmatprep.subr.mxu0 0.0
      %2221 = vmatpush1.msra.mxu0 0.0
      %2222 = vmatprep.subr.mxu0 0.0
      %2223 = vmatpush1.msra.mxu0 0.0
      %2224 = vmatprep.subr.mxu0 0.0
      %2225 = vmatpush1.msra.mxu0 0.0
      %2226 = vmatprep.subr.mxu0 0.0
      %2227 = vmatpush1.msra.mxu0 0.0
      %2228 = vmatprep.subr.mxu0 0.0
      %2229 = vmatpush1.msra.mxu0 0.0
      %2230 = vmatprep.subr.mxu0 0.0
      %2231 = vmatpush1.msra.mxu0 0.0
      %2232 = vmatprep.subr.mxu0 0.0
      %2233 = vmatpush1.msra.mxu0 0.0
      %2234 = vmatprep.mubr.f32.mxu0 0.0
      %2235 = vmatmul.mubr.f32.gmra.mrb[0].mxu0 %v2159
      %v2236 = vpop.f32.mrb[0].mxu0
      %v2237 = vadd.f32 %v2154, %v2236
      %v2238 = vpop.f32.mrb[0].mxu0
      %2239 = vmatprep.mubr.f32.mxu0 0.0
      %2240 = vmatmul.mubr.f32.gmra.mrb[0].mxu0 %v2162
      %v2241 = vpop.f32.mrb[0].mxu0
      %v2242 = vadd.f32 %v2155, %v2241
      %v2243 = vpop.f32.mrb[0].mxu0
      %2244 = vmatprep.mubr.f32.mxu0 0.0
      %2245 = vmatmul.mubr.f32.gmra.mrb[0].mxu0 %v2165
      %v2246 = vpop.f32.mrb[0].mxu0
      %v2247 = vadd.f32 %v2156, %v2246
      %v2248 = vpop.f32.mrb[0].mxu0
      %2249 = vmatprep.mubr.f32.mxu0 0.0
      %2250 = vmatmul.mubr.f32.gmra.mrb[0].mxu0 %v2168
      %v2251 = vpop.f32.mrb[0].mxu0
      %v2252 = vadd.f32 %v2157, %v2251
      %v2253 = vpop.f32.mrb[0].mxu0
      %2254 = vdwg.mxu0
      %vm2255 = vcmp.ge.f32.partialorder %v2237, 0.0
      %vm2256 = vcmp.ge.f32.partialorder %v2242, 0.0
      %vm2257 = vcmp.ge.f32.partialorder %v2247, 0.0
      %vm2258 = vcmp.ge.f32.partialorder %v2252, 0.0
      %v2259 = vmul.f32 %v2237, 0.2
      %v2260 = vmul.f32 %v2242, 0.2
      %v2261 = vmul.f32 %v2247, 0.2
      %v2262 = vmul.f32 %v2252, 0.2
      %v2263 = vsel %vm2255, %v2237, %v2259
      %v2264 = vsel %vm2256, %v2242, %v2260
      %v2265 = vsel %vm2257, %v2247, %v2261
      %v2266 = vsel %vm2258, %v2252, %v2262
      %v2267 = vld [vmem:[%s10] sm:$0x77]
      %v2268 = vld [vmem:[%s11] sm:$0xff]
      %v2269 = vld [vmem:[%s11 + $0x8] sm:$0xff]
      %v2270 = vld [vmem:[%s11 + $0x10] sm:$0xff]
      %v2271 = vld [vmem:[%s11 + $0x18] sm:$0xff]
      %v2272 = vld [vmem:[%s11 + $0x20] sm:$0xff]
      %v2273 = vld [vmem:[%s11 + $0x28] sm:$0xff]
      %v2274 = vld [vmem:[%s11 + $0x30] sm:$0xff]
      %v2275 = vld [vmem:[%s11 + $0x38] sm:$0xff]
      %v2276 = vld [vmem:[%s12] sm:$0xff]
      %v2277 = vld [vmem:[%s12 + $0x8] sm:$0xff]
      %v2278 = vld [vmem:[%s12 + $0x10] sm:$0xff]
      %v2279 = vld [vmem:[%s12 + $0x18] sm:$0xff]
      %v2280 = vld [vmem:[%s12 + $0x20] sm:$0xff]
      %v2281 = vld [vmem:[%s12 + $0x28] sm:$0xff]
      %v2282 = vld [vmem:[%s12 + $0x30] sm:$0xff]
      %v2283 = vld [vmem:[%s12 + $0x38] sm:$0xff]
      %vm2284 = vcmask 261120
      %v2286 = vsel %vm2284, %v2276, 0
      %v2289 = vsel %vm2284, %v2277, 0
      %v2292 = vsel %vm2284, %v2278, 0
      %v2295 = vsel %vm2284, %v2279, 0
      %v2298 = vsel %vm2284, %v2280, 0
      %v2301 = vsel %vm2284, %v2281, 0
      %v2304 = vsel %vm2284, %v2282, 0
      %v2307 = vsel %vm2284, %v2283, 0
      %2309 = vmatprep.subr.mxu0 0.0
      %2310 = vmatpush1.msra.mxu0 %v2263
      %2311 = vmatprep.subr.mxu0 0.0
      %2312 = vmatpush1.msra.mxu0 %v2264
      %2313 = vmatprep.subr.mxu0 0.0
      %2314 = vmatpush1.msra.mxu0 %v2265
      %2315 = vmatprep.subr.mxu0 0.0
      %2316 = vmatpush1.msra.mxu0 %v2266
      %2317 = vmatprep.subr.mxu0 0.0
      %2318 = vmatpush1.msra.mxu0 0.0
      %2319 = vmatprep.subr.mxu0 0.0
      %2320 = vmatpush1.msra.mxu0 0.0
      %2321 = vmatprep.subr.mxu0 0.0
      %2322 = vmatpush1.msra.mxu0 0.0
      %2323 = vmatprep.subr.mxu0 0.0
      %2324 = vmatpush1.msra.mxu0 0.0
      %2325 = vmatprep.subr.mxu0 0.0
      %2326 = vmatpush1.msra.mxu0 0.0
      %2327 = vmatprep.subr.mxu0 0.0
      %2328 = vmatpush1.msra.mxu0 0.0
      %2329 = vmatprep.subr.mxu0 0.0
      %2330 = vmatpush1.msra.mxu0 0.0
      %2331 = vmatprep.subr.mxu0 0.0
      %2332 = vmatpush1.msra.mxu0 0.0
      %2333 = vmatprep.subr.mxu0 0.0
      %2334 = vmatpush1.msra.mxu0 0.0
      %2335 = vmatprep.subr.mxu0 0.0
      %2336 = vmatpush1.msra.mxu0 0.0
      %2337 = vmatprep.subr.mxu0 0.0
      %2338 = vmatpush1.msra.mxu0 0.0
      %2339 = vmatprep.subr.mxu0 0.0
      %2340 = vmatpush1.msra.mxu0 0.0
      %2341 = vmatprep.subr.mxu0 0.0
      %2342 = vmatpush1.msra.mxu0 0.0
      %2343 = vmatprep.subr.mxu0 0.0
      %2344 = vmatpush1.msra.mxu0 0.0
      %2345 = vmatprep.subr.mxu0 0.0
      %2346 = vmatpush1.msra.mxu0 0.0
      %2347 = vmatprep.subr.mxu0 0.0
      %2348 = vmatpush1.msra.mxu0 0.0
      %2349 = vmatprep.subr.mxu0 0.0
      %2350 = vmatpush1.msra.mxu0 0.0
      %2351 = vmatprep.subr.mxu0 0.0
      %2352 = vmatpush1.msra.mxu0 0.0
      %2353 = vmatprep.subr.mxu0 0.0
      %2354 = vmatpush1.msra.mxu0 0.0
      %2355 = vmatprep.subr.mxu0 0.0
      %2356 = vmatpush1.msra.mxu0 0.0
      %2357 = vmatprep.subr.mxu0 0.0
      %2358 = vmatpush1.msra.mxu0 0.0
      %2359 = vmatprep.subr.mxu0 0.0
      %2360 = vmatpush1.msra.mxu0 0.0
      %2361 = vmatprep.subr.mxu0 0.0
      %2362 = vmatpush1.msra.mxu0 0.0
      %2363 = vmatprep.subr.mxu0 0.0
      %2364 = vmatpush1.msra.mxu0 0.0
      %2365 = vmatprep.subr.mxu0 0.0
      %2366 = vmatpush1.msra.mxu0 0.0
      %2367 = vmatprep.subr.mxu0 0.0
      %2368 = vmatpush1.msra.mxu0 0.0
      %2369 = vmatprep.subr.mxu0 0.0
      %2370 = vmatpush1.msra.mxu0 0.0
      %2371 = vmatprep.subr.mxu0 0.0
      %2372 = vmatpush1.msra.mxu0 0.0
      %2373 = vmatprep.mubr.f32.mxu0 0.0
      %2374 = vmatmul.mubr.f32.gmra.mrb[0].mxu0 %v2286
      %v2375 = vpop.f32.mrb[0].mxu0
      %v2376 = vadd.f32 0.0, %v2375
      %v2377 = vpop.f32.mrb[0].mxu0
      %2378 = vmatprep.mubr.f32.mxu0 0.0
      %2379 = vmatmul.mubr.f32.gmra.mrb[0].mxu0 %v2289
      %v2380 = vpop.f32.mrb[0].mxu0
      %v2381 = vadd.f32 0.0, %v2380
      %v2382 = vpop.f32.mrb[0].mxu0
      %2383 = vmatprep.mubr.f32.mxu0 0.0
      %2384 = vmatmul.mubr.f32.gmra.mrb[0].mxu0 %v2292
      %v2385 = vpop.f32.mrb[0].mxu0
      %v2386 = vadd.f32 0.0, %v2385
      %v2387 = vpop.f32.mrb[0].mxu0
      %2388 = vmatprep.mubr.f32.mxu0 0.0
      %2389 = vmatmul.mubr.f32.gmra.mrb[0].mxu0 %v2295
      %v2390 = vpop.f32.mrb[0].mxu0
      %v2391 = vadd.f32 0.0, %v2390
      %v2392 = vpop.f32.mrb[0].mxu0
      %2393 = vmatprep.mubr.f32.mxu0 0.0
      %2394 = vmatmul.mubr.f32.gmra.mrb[0].mxu0 %v2298
      %v2395 = vpop.f32.mrb[0].mxu0
      %v2396 = vadd.f32 0.0, %v2395
      %v2397 = vpop.f32.mrb[0].mxu0
      %2398 = vmatprep.mubr.f32.mxu0 0.0
      %2399 = vmatmul.mubr.f32.gmra.mrb[0].mxu0 %v2301
      %v2400 = vpop.f32.mrb[0].mxu0
      %v2401 = vadd.f32 0.0, %v2400
      %v2402 = vpop.f32.mrb[0].mxu0
      %2403 = vmatprep.mubr.f32.mxu0 0.0
      %2404 = vmatmul.mubr.f32.gmra.mrb[0].mxu0 %v2304
      %v2405 = vpop.f32.mrb[0].mxu0
      %v2406 = vadd.f32 0.0, %v2405
      %v2407 = vpop.f32.mrb[0].mxu0
      %2408 = vmatprep.mubr.f32.mxu0 0.0
      %2409 = vmatmul.mubr.f32.gmra.mrb[0].mxu0 %v2307
      %v2410 = vpop.f32.mrb[0].mxu0
      %v2411 = vadd.f32 0.0, %v2410
      %v2412 = vpop.f32.mrb[0].mxu0
      %2413 = vdwg.mxu0
      %2415 = vset.pattern.permute.xlu0 0
      %2416 = vperm.xlu0 %2415, %v2376
      %v2417 = vpop.permute.xlu0 %2416
      %2420 = vset.pattern.permute.xlu0 0
      %2421 = vperm.xlu0 %2420, %v2381
      %v2422 = vpop.permute.xlu0 %2421
      %2425 = vset.pattern.permute.xlu0 0
      %2426 = vperm.xlu0 %2425, %v2386
      %v2427 = vpop.permute.xlu0 %2426
      %2430 = vset.pattern.permute.xlu0 0
      %2431 = vperm.xlu0 %2430, %v2391
      %v2432 = vpop.permute.xlu0 %2431
      %2435 = vset.pattern.permute.xlu0 0
      %2436 = vperm.xlu0 %2435, %v2396
      %v2437 = vpop.permute.xlu0 %2436
      %2440 = vset.pattern.permute.xlu0 0
      %2441 = vperm.xlu0 %2440, %v2401
      %v2442 = vpop.permute.xlu0 %2441
      %2445 = vset.pattern.permute.xlu0 0
      %2446 = vperm.xlu0 %2445, %v2406
      %v2447 = vpop.permute.xlu0 %2446
      %2450 = vset.pattern.permute.xlu0 0
      %2451 = vperm.xlu0 %2450, %v2411
      %v2452 = vpop.permute.xlu0 %2451
      %v2455 = vcombine.high %v2267, %v2267
      %vm2456 = vcmask 23552
      %v2458 = vsel %vm2456, %v2268, 0
      %v2461 = vsel %vm2456, %v2269, 0
      %v2464 = vsel %vm2456, %v2270, 0
      %v2467 = vsel %vm2456, %v2271, 0
      %v2470 = vsel %vm2456, %v2272, 0
      %v2473 = vsel %vm2456, %v2273, 0
      %v2476 = vsel %vm2456, %v2274, 0
      %v2479 = vsel %vm2456, %v2275, 0
      %v2481 = vsel %vm696, %v2267, 0
      %v2483 = vsel %vm696, %v2455, 0
      %2485 = vmatprep.subr.mxu0 %v2483
      %2486 = vmatpush1.msra.mxu0 %v2481
      %2487 = vmatprep.subr.mxu0 0.0
      %2488 = vmatpush1.msra.mxu0 0.0
      %2489 = vmatprep.subr.mxu0 0.0
      %2490 = vmatpush1.msra.mxu0 0.0
      %2491 = vmatprep.subr.mxu0 0.0
      %2492 = vmatpush1.msra.mxu0 0.0
      %2493 = vmatprep.subr.mxu0 0.0
      %2494 = vmatpush1.msra.mxu0 0.0
      %2495 = vmatprep.subr.mxu0 0.0
      %2496 = vmatpush1.msra.mxu0 0.0
      %2497 = vmatprep.subr.mxu0 0.0
      %2498 = vmatpush1.msra.mxu0 0.0
      %2499 = vmatprep.subr.mxu0 0.0
      %2500 = vmatpush1.msra.mxu0 0.0
      %2501 = vmatprep.subr.mxu0 0.0
      %2502 = vmatpush1.msra.mxu0 0.0
      %2503 = vmatprep.subr.mxu0 0.0
      %2504 = vmatpush1.msra.mxu0 0.0
      %2505 = vmatprep.subr.mxu0 0.0
      %2506 = vmatpush1.msra.mxu0 0.0
      %2507 = vmatprep.subr.mxu0 0.0
      %2508 = vmatpush1.msra.mxu0 0.0
      %2509 = vmatprep.subr.mxu0 0.0
      %2510 = vmatpush1.msra.mxu0 0.0
      %2511 = vmatprep.subr.mxu0 0.0
      %2512 = vmatpush1.msra.mxu0 0.0
      %2513 = vmatprep.subr.mxu0 0.0
      %2514 = vmatpush1.msra.mxu0 0.0
      %2515 = vmatprep.subr.mxu0 0.0
      %2516 = vmatpush1.msra.mxu0 0.0
      %2517 = vmatprep.subr.mxu0 0.0
      %2518 = vmatpush1.msra.mxu0 0.0
      %2519 = vmatprep.subr.mxu0 0.0
      %2520 = vmatpush1.msra.mxu0 0.0
      %2521 = vmatprep.subr.mxu0 0.0
      %2522 = vmatpush1.msra.mxu0 0.0
      %2523 = vmatprep.subr.mxu0 0.0
      %2524 = vmatpush1.msra.mxu0 0.0
      %2525 = vmatprep.subr.mxu0 0.0
      %2526 = vmatpush1.msra.mxu0 0.0
      %2527 = vmatprep.subr.mxu0 0.0
      %2528 = vmatpush1.msra.mxu0 0.0
      %2529 = vmatprep.subr.mxu0 0.0
      %2530 = vmatpush1.msra.mxu0 0.0
      %2531 = vmatprep.subr.mxu0 0.0
      %2532 = vmatpush1.msra.mxu0 0.0
      %2533 = vmatprep.subr.mxu0 0.0
      %2534 = vmatpush1.msra.mxu0 0.0
      %2535 = vmatprep.subr.mxu0 0.0
      %2536 = vmatpush1.msra.mxu0 0.0
      %2537 = vmatprep.subr.mxu0 0.0
      %2538 = vmatpush1.msra.mxu0 0.0
      %2539 = vmatprep.subr.mxu0 0.0
      %2540 = vmatpush1.msra.mxu0 0.0
      %2541 = vmatprep.subr.mxu0 0.0
      %2542 = vmatpush1.msra.mxu0 0.0
      %2543 = vmatprep.subr.mxu0 0.0
      %2544 = vmatpush1.msra.mxu0 0.0
      %2545 = vmatprep.subr.mxu0 0.0
      %2546 = vmatpush1.msra.mxu0 0.0
      %2547 = vmatprep.subr.mxu0 0.0
      %2548 = vmatpush1.msra.mxu0 0.0
      %2549 = vmatprep.mubr.f32.mxu0 0.0
      %2550 = vmatmul.mubr.f32.gmra.mrb[0].mxu0 %v2458
      %v2551 = vpop.f32.mrb[0].mxu0
      %v2552 = vadd.f32 %v2417, %v2551
      %v2553 = vpop.f32.mrb[0].mxu0
      %v2554 = vadd.f32 %v2417, %v2553
      %2555 = vmatprep.mubr.f32.mxu0 0.0
      %2556 = vmatmul.mubr.f32.gmra.mrb[0].mxu0 %v2461
      %v2557 = vpop.f32.mrb[0].mxu0
      %v2558 = vadd.f32 %v2422, %v2557
      %v2559 = vpop.f32.mrb[0].mxu0
      %v2560 = vadd.f32 %v2422, %v2559
      %2561 = vmatprep.mubr.f32.mxu0 0.0
      %2562 = vmatmul.mubr.f32.gmra.mrb[0].mxu0 %v2464
      %v2563 = vpop.f32.mrb[0].mxu0
      %v2564 = vadd.f32 %v2427, %v2563
      %v2565 = vpop.f32.mrb[0].mxu0
      %v2566 = vadd.f32 %v2427, %v2565
      %2567 = vmatprep.mubr.f32.mxu0 0.0
      %2568 = vmatmul.mubr.f32.gmra.mrb[0].mxu0 %v2467
      %v2569 = vpop.f32.mrb[0].mxu0
      %v2570 = vadd.f32 %v2432, %v2569
      %v2571 = vpop.f32.mrb[0].mxu0
      %v2572 = vadd.f32 %v2432, %v2571
      %2573 = vmatprep.mubr.f32.mxu0 0.0
      %2574 = vmatmul.mubr.f32.gmra.mrb[0].mxu0 %v2470
      %v2575 = vpop.f32.mrb[0].mxu0
      %v2576 = vadd.f32 %v2437, %v2575
      %v2577 = vpop.f32.mrb[0].mxu0
      %v2578 = vadd.f32 %v2437, %v2577
      %2579 = vmatprep.mubr.f32.mxu0 0.0
      %2580 = vmatmul.mubr.f32.gmra.mrb[0].mxu0 %v2473
      %v2581 = vpop.f32.mrb[0].mxu0
      %v2582 = vadd.f32 %v2442, %v2581
      %v2583 = vpop.f32.mrb[0].mxu0
      %v2584 = vadd.f32 %v2442, %v2583
      %2585 = vmatprep.mubr.f32.mxu0 0.0
      %2586 = vmatmul.mubr.f32.gmra.mrb[0].mxu0 %v2476
      %v2587 = vpop.f32.mrb[0].mxu0
      %v2588 = vadd.f32 %v2447, %v2587
      %v2589 = vpop.f32.mrb[0].mxu0
      %v2590 = vadd.f32 %v2447, %v2589
      %2591 = vmatprep.mubr.f32.mxu0 0.0
      %2592 = vmatmul.mubr.f32.gmra.mrb[0].mxu0 %v2479
      %v2593 = vpop.f32.mrb[0].mxu0
      %v2594 = vadd.f32 %v2452, %v2593
      %v2595 = vpop.f32.mrb[0].mxu0
      %v2596 = vadd.f32 %v2452, %v2595
      %2597 = vdwg.mxu0
      %v2598 = vld [vmem:[%s13] sm:$0xff]
      %v2599 = vld [vmem:[%s13 + $0x8] sm:$0xff]
      %v2600 = vld [vmem:[%s13 + $0x10] sm:$0xff]
      %v2601 = vld [vmem:[%s13 + $0x18] sm:$0xff]
      %v2602 = vld [vmem:[%s13 + $0x20] sm:$0xff]
      %v2603 = vld [vmem:[%s13 + $0x28] sm:$0xff]
      %v2604 = vld [vmem:[%s13 + $0x30] sm:$0xff]
      %v2605 = vld [vmem:[%s13 + $0x38] sm:$0xff]
      %2607 = vset.pattern.permute.xlu0 0
      %2608 = vperm.xlu0 %2607, %v2598
      %v2609 = vpop.permute.xlu0 %2608
      %2612 = vset.pattern.permute.xlu0 0
      %2613 = vperm.xlu0 %2612, %v2599
      %v2614 = vpop.permute.xlu0 %2613
      %2617 = vset.pattern.permute.xlu0 0
      %2618 = vperm.xlu0 %2617, %v2600
      %v2619 = vpop.permute.xlu0 %2618
      %2622 = vset.pattern.permute.xlu0 0
      %2623 = vperm.xlu0 %2622, %v2601
      %v2624 = vpop.permute.xlu0 %2623
      %2627 = vset.pattern.permute.xlu0 0
      %2628 = vperm.xlu0 %2627, %v2602
      %v2629 = vpop.permute.xlu0 %2628
      %2632 = vset.pattern.permute.xlu0 0
      %2633 = vperm.xlu0 %2632, %v2603
      %v2634 = vpop.permute.xlu0 %2633
      %2637 = vset.pattern.permute.xlu0 0
      %2638 = vperm.xlu0 %2637, %v2604
      %v2639 = vpop.permute.xlu0 %2638
      %2642 = vset.pattern.permute.xlu0 0
      %2643 = vperm.xlu0 %2642, %v2605
      %v2644 = vpop.permute.xlu0 %2643
      %v2646 = vadd.f32 %v2552, %v2609
      %v2647 = vadd.f32 %v2554, %v2609
      %v2648 = vadd.f32 %v2558, %v2614
      %v2649 = vadd.f32 %v2560, %v2614
      %v2650 = vadd.f32 %v2564, %v2619
      %v2651 = vadd.f32 %v2566, %v2619
      %v2652 = vadd.f32 %v2570, %v2624
      %v2653 = vadd.f32 %v2572, %v2624
      %v2654 = vadd.f32 %v2576, %v2629
      %v2655 = vadd.f32 %v2578, %v2629
      %v2656 = vadd.f32 %v2582, %v2634
      %v2657 = vadd.f32 %v2584, %v2634
      %v2658 = vadd.f32 %v2588, %v2639
      %v2659 = vadd.f32 %v2590, %v2639
      %v2660 = vadd.f32 %v2594, %v2644
      %v2661 = vadd.f32 %v2596, %v2644
      %v2662 = vmax.f32 %v2646, 0.0
      %v2663 = vmax.f32 %v2647, 0.0
      %v2664 = vmax.f32 %v2648, 0.0
      %v2665 = vmax.f32 %v2649, 0.0
      %v2666 = vmax.f32 %v2650, 0.0
      %v2667 = vmax.f32 %v2651, 0.0
      %v2668 = vmax.f32 %v2652, 0.0
      %v2669 = vmax.f32 %v2653, 0.0
      %v2670 = vmax.f32 %v2654, 0.0
      %v2671 = vmax.f32 %v2655, 0.0
      %v2672 = vmax.f32 %v2656, 0.0
      %v2673 = vmax.f32 %v2657, 0.0
      %v2674 = vmax.f32 %v2658, 0.0
      %v2675 = vmax.f32 %v2659, 0.0
      %v2676 = vmax.f32 %v2660, 0.0
      %v2677 = vmax.f32 %v2661, 0.0
      %v2678 = vld [vmem:[%s14] sm:$0xff]
      %v2679 = vld [vmem:[%s14 + $0x8] sm:$0xff]
      %v2680 = vld [vmem:[%s14 + $0x10] sm:$0xff]
      %v2681 = vld [vmem:[%s14 + $0x18] sm:$0xff]
      %v2682 = vld [vmem:[%s14 + $0x20] sm:$0xff]
      %v2683 = vld [vmem:[%s14 + $0x28] sm:$0xff]
      %v2684 = vld [vmem:[%s14 + $0x30] sm:$0xff]
      %v2685 = vld [vmem:[%s14 + $0x38] sm:$0xff]
      %v2686 = vld [vmem:[%s15] sm:$0xff]
      %v2687 = vld [vmem:[%s15 + $0x8] sm:$0xff]
      %v2688 = vld [vmem:[%s15 + $0x10] sm:$0xff]
      %v2689 = vld [vmem:[%s15 + $0x18] sm:$0xff]
      %v2690 = vld [vmem:[%s15 + $0x20] sm:$0xff]
      %v2691 = vld [vmem:[%s15 + $0x28] sm:$0xff]
      %v2692 = vld [vmem:[%s15 + $0x30] sm:$0xff]
      %v2693 = vld [vmem:[%s15 + $0x38] sm:$0xff]
      %2695 = vset.pattern.permute.xlu0 0
      %2696 = vperm.xlu0 %2695, %v2686
      %v2697 = vpop.permute.xlu0 %2696
      %2700 = vset.pattern.permute.xlu0 0
      %2701 = vperm.xlu0 %2700, %v2687
      %v2702 = vpop.permute.xlu0 %2701
      %2705 = vset.pattern.permute.xlu0 0
      %2706 = vperm.xlu0 %2705, %v2688
      %v2707 = vpop.permute.xlu0 %2706
      %2710 = vset.pattern.permute.xlu0 0
      %2711 = vperm.xlu0 %2710, %v2689
      %v2712 = vpop.permute.xlu0 %2711
      %2715 = vset.pattern.permute.xlu0 0
      %2716 = vperm.xlu0 %2715, %v2690
      %v2717 = vpop.permute.xlu0 %2716
      %2720 = vset.pattern.permute.xlu0 0
      %2721 = vperm.xlu0 %2720, %v2691
      %v2722 = vpop.permute.xlu0 %2721
      %2725 = vset.pattern.permute.xlu0 0
      %2726 = vperm.xlu0 %2725, %v2692
      %v2727 = vpop.permute.xlu0 %2726
      %2730 = vset.pattern.permute.xlu0 0
      %2731 = vperm.xlu0 %2730, %v2693
      %v2732 = vpop.permute.xlu0 %2731
      %vm2734 = vcmask 523264
      %v2736 = vsel %vm2734, %v2678, 0
      %v2739 = vsel %vm2734, %v2679, 0
      %v2742 = vsel %vm2734, %v2680, 0
      %v2745 = vsel %vm2734, %v2681, 0
      %v2748 = vsel %vm2734, %v2682, 0
      %v2751 = vsel %vm2734, %v2683, 0
      %v2754 = vsel %vm2734, %v2684, 0
      %v2757 = vsel %vm2734, %v2685, 0
      %2759 = vmatprep.subr.mxu0 %v2663
      %2760 = vmatpush1.msra.mxu0 %v2662
      %2761 = vmatprep.subr.mxu0 %v2665
      %2762 = vmatpush1.msra.mxu0 %v2664
      %2763 = vmatprep.subr.mxu0 %v2667
      %2764 = vmatpush1.msra.mxu0 %v2666
      %2765 = vmatprep.subr.mxu0 %v2669
      %2766 = vmatpush1.msra.mxu0 %v2668
      %2767 = vmatprep.subr.mxu0 %v2671
      %2768 = vmatpush1.msra.mxu0 %v2670
      %2769 = vmatprep.subr.mxu0 %v2673
      %2770 = vmatpush1.msra.mxu0 %v2672
      %2771 = vmatprep.subr.mxu0 %v2675
      %2772 = vmatpush1.msra.mxu0 %v2674
      %2773 = vmatprep.subr.mxu0 %v2677
      %2774 = vmatpush1.msra.mxu0 %v2676
      %2775 = vmatprep.subr.mxu0 0.0
      %2776 = vmatpush1.msra.mxu0 0.0
      %2777 = vmatprep.subr.mxu0 0.0
      %2778 = vmatpush1.msra.mxu0 0.0
      %2779 = vmatprep.subr.mxu0 0.0
      %2780 = vmatpush1.msra.mxu0 0.0
      %2781 = vmatprep.subr.mxu0 0.0
      %2782 = vmatpush1.msra.mxu0 0.0
      %2783 = vmatprep.subr.mxu0 0.0
      %2784 = vmatpush1.msra.mxu0 0.0
      %2785 = vmatprep.subr.mxu0 0.0
      %2786 = vmatpush1.msra.mxu0 0.0
      %2787 = vmatprep.subr.mxu0 0.0
      %2788 = vmatpush1.msra.mxu0 0.0
      %2789 = vmatprep.subr.mxu0 0.0
      %2790 = vmatpush1.msra.mxu0 0.0
      %2791 = vmatprep.subr.mxu0 0.0
      %2792 = vmatpush1.msra.mxu0 0.0
      %2793 = vmatprep.subr.mxu0 0.0
      %2794 = vmatpush1.msra.mxu0 0.0
      %2795 = vmatprep.subr.mxu0 0.0
      %2796 = vmatpush1.msra.mxu0 0.0
      %2797 = vmatprep.subr.mxu0 0.0
      %2798 = vmatpush1.msra.mxu0 0.0
      %2799 = vmatprep.subr.mxu0 0.0
      %2800 = vmatpush1.msra.mxu0 0.0
      %2801 = vmatprep.subr.mxu0 0.0
      %2802 = vmatpush1.msra.mxu0 0.0
      %2803 = vmatprep.subr.mxu0 0.0
      %2804 = vmatpush1.msra.mxu0 0.0
      %2805 = vmatprep.subr.mxu0 0.0
      %2806 = vmatpush1.msra.mxu0 0.0
      %2807 = vmatprep.subr.mxu0 0.0
      %2808 = vmatpush1.msra.mxu0 0.0
      %2809 = vmatprep.subr.mxu0 0.0
      %2810 = vmatpush1.msra.mxu0 0.0
      %2811 = vmatprep.subr.mxu0 0.0
      %2812 = vmatpush1.msra.mxu0 0.0
      %2813 = vmatprep.subr.mxu0 0.0
      %2814 = vmatpush1.msra.mxu0 0.0
      %2815 = vmatprep.subr.mxu0 0.0
      %2816 = vmatpush1.msra.mxu0 0.0
      %2817 = vmatprep.subr.mxu0 0.0
      %2818 = vmatpush1.msra.mxu0 0.0
      %2819 = vmatprep.subr.mxu0 0.0
      %2820 = vmatpush1.msra.mxu0 0.0
      %2821 = vmatprep.subr.mxu0 0.0
      %2822 = vmatpush1.msra.mxu0 0.0
      %2823 = vmatprep.mubr.f32.mxu0 0.0
      %2824 = vmatmul.mubr.f32.gmra.mrb[0].mxu0 %v2736
      %v2825 = vpop.f32.mrb[0].mxu0
      %v2826 = vadd.f32 %v2697, %v2825
      %v2827 = vpop.f32.mrb[0].mxu0
      %v2828 = vadd.f32 %v2697, %v2827
      %2829 = vmatprep.mubr.f32.mxu0 0.0
      %2830 = vmatmul.mubr.f32.gmra.mrb[0].mxu0 %v2739
      %v2831 = vpop.f32.mrb[0].mxu0
      %v2832 = vadd.f32 %v2702, %v2831
      %v2833 = vpop.f32.mrb[0].mxu0
      %v2834 = vadd.f32 %v2702, %v2833
      %2835 = vmatprep.mubr.f32.mxu0 0.0
      %2836 = vmatmul.mubr.f32.gmra.mrb[0].mxu0 %v2742
      %v2837 = vpop.f32.mrb[0].mxu0
      %v2838 = vadd.f32 %v2707, %v2837
      %v2839 = vpop.f32.mrb[0].mxu0
      %v2840 = vadd.f32 %v2707, %v2839
      %2841 = vmatprep.mubr.f32.mxu0 0.0
      %2842 = vmatmul.mubr.f32.gmra.mrb[0].mxu0 %v2745
      %v2843 = vpop.f32.mrb[0].mxu0
      %v2844 = vadd.f32 %v2712, %v2843
      %v2845 = vpop.f32.mrb[0].mxu0
      %v2846 = vadd.f32 %v2712, %v2845
      %2847 = vmatprep.mubr.f32.mxu0 0.0
      %2848 = vmatmul.mubr.f32.gmra.mrb[0].mxu0 %v2748
      %v2849 = vpop.f32.mrb[0].mxu0
      %v2850 = vadd.f32 %v2717, %v2849
      %v2851 = vpop.f32.mrb[0].mxu0
      %v2852 = vadd.f32 %v2717, %v2851
      %2853 = vmatprep.mubr.f32.mxu0 0.0
      %2854 = vmatmul.mubr.f32.gmra.mrb[0].mxu0 %v2751
      %v2855 = vpop.f32.mrb[0].mxu0
      %v2856 = vadd.f32 %v2722, %v2855
      %v2857 = vpop.f32.mrb[0].mxu0
      %v2858 = vadd.f32 %v2722, %v2857
      %2859 = vmatprep.mubr.f32.mxu0 0.0
      %2860 = vmatmul.mubr.f32.gmra.mrb[0].mxu0 %v2754
      %v2861 = vpop.f32.mrb[0].mxu0
      %v2862 = vadd.f32 %v2727, %v2861
      %v2863 = vpop.f32.mrb[0].mxu0
      %v2864 = vadd.f32 %v2727, %v2863
      %2865 = vmatprep.mubr.f32.mxu0 0.0
      %2866 = vmatmul.mubr.f32.gmra.mrb[0].mxu0 %v2757
      %v2867 = vpop.f32.mrb[0].mxu0
      %v2868 = vadd.f32 %v2732, %v2867
      %v2869 = vpop.f32.mrb[0].mxu0
      %v2870 = vadd.f32 %v2732, %v2869
      %2871 = vdwg.mxu0
      %v2872 = vmax.f32 %v2826, 0.0
      %v2873 = vmax.f32 %v2828, 0.0
      %v2874 = vmax.f32 %v2832, 0.0
      %v2875 = vmax.f32 %v2834, 0.0
      %v2876 = vmax.f32 %v2838, 0.0
      %v2877 = vmax.f32 %v2840, 0.0
      %v2878 = vmax.f32 %v2844, 0.0
      %v2879 = vmax.f32 %v2846, 0.0
      %v2880 = vmax.f32 %v2850, 0.0
      %v2881 = vmax.f32 %v2852, 0.0
      %v2882 = vmax.f32 %v2856, 0.0
      %v2883 = vmax.f32 %v2858, 0.0
      %v2884 = vmax.f32 %v2862, 0.0
      %v2885 = vmax.f32 %v2864, 0.0
      %v2886 = vmax.f32 %v2868, 0.0
      %v2887 = vmax.f32 %v2870, 0.0
      %v2888 = vld [vmem:[%s16] sm:$0x7]
      %v2889 = vld [vmem:[%s17] sm:$0x7]
      %2891 = vset.pattern.permute.xlu0 0
      %2892 = vperm.xlu0 %2891, %v2889
      %v2893 = vpop.permute.xlu0 %2892
      %v2896 = vsel %vm2734, %v2888, 0
      %2898 = vmatprep.subr.mxu0 %v2873
      %2899 = vmatpush1.msra.mxu0 %v2872
      %2900 = vmatprep.subr.mxu0 %v2875
      %2901 = vmatpush1.msra.mxu0 %v2874
      %2902 = vmatprep.subr.mxu0 %v2877
      %2903 = vmatpush1.msra.mxu0 %v2876
      %2904 = vmatprep.subr.mxu0 %v2879
      %2905 = vmatpush1.msra.mxu0 %v2878
      %2906 = vmatprep.subr.mxu0 %v2881
      %2907 = vmatpush1.msra.mxu0 %v2880
      %2908 = vmatprep.subr.mxu0 %v2883
      %2909 = vmatpush1.msra.mxu0 %v2882
      %2910 = vmatprep.subr.mxu0 %v2885
      %2911 = vmatpush1.msra.mxu0 %v2884
      %2912 = vmatprep.subr.mxu0 %v2887
      %2913 = vmatpush1.msra.mxu0 %v2886
      %2914 = vmatprep.subr.mxu0 0.0
      %2915 = vmatpush1.msra.mxu0 0.0
      %2916 = vmatprep.subr.mxu0 0.0
      %2917 = vmatpush1.msra.mxu0 0.0
      %2918 = vmatprep.subr.mxu0 0.0
      %2919 = vmatpush1.msra.mxu0 0.0
      %2920 = vmatprep.subr.mxu0 0.0
      %2921 = vmatpush1.msra.mxu0 0.0
      %2922 = vmatprep.subr.mxu0 0.0
      %2923 = vmatpush1.msra.mxu0 0.0
      %2924 = vmatprep.subr.mxu0 0.0
      %2925 = vmatpush1.msra.mxu0 0.0
      %2926 = vmatprep.subr.mxu0 0.0
      %2927 = vmatpush1.msra.mxu0 0.0
      %2928 = vmatprep.subr.mxu0 0.0
      %2929 = vmatpush1.msra.mxu0 0.0
      %2930 = vmatprep.subr.mxu0 0.0
      %2931 = vmatpush1.msra.mxu0 0.0
      %2932 = vmatprep.subr.mxu0 0.0
      %2933 = vmatpush1.msra.mxu0 0.0
      %2934 = vmatprep.subr.mxu0 0.0
      %2935 = vmatpush1.msra.mxu0 0.0
      %2936 = vmatprep.subr.mxu0 0.0
      %2937 = vmatpush1.msra.mxu0 0.0
      %2938 = vmatprep.subr.mxu0 0.0
      %2939 = vmatpush1.msra.mxu0 0.0
      %2940 = vmatprep.subr.mxu0 0.0
      %2941 = vmatpush1.msra.mxu0 0.0
      %2942 = vmatprep.subr.mxu0 0.0
      %2943 = vmatpush1.msra.mxu0 0.0
      %2944 = vmatprep.subr.mxu0 0.0
      %2945 = vmatpush1.msra.mxu0 0.0
      %2946 = vmatprep.subr.mxu0 0.0
      %2947 = vmatpush1.msra.mxu0 0.0
      %2948 = vmatprep.subr.mxu0 0.0
      %2949 = vmatpush1.msra.mxu0 0.0
      %2950 = vmatprep.subr.mxu0 0.0
      %2951 = vmatpush1.msra.mxu0 0.0
      %2952 = vmatprep.subr.mxu0 0.0
      %2953 = vmatpush1.msra.mxu0 0.0
      %2954 = vmatprep.subr.mxu0 0.0
      %2955 = vmatpush1.msra.mxu0 0.0
      %2956 = vmatprep.subr.mxu0 0.0
      %2957 = vmatpush1.msra.mxu0 0.0
      %2958 = vmatprep.subr.mxu0 0.0
      %2959 = vmatpush1.msra.mxu0 0.0
      %2960 = vmatprep.subr.mxu0 0.0
      %2961 = vmatpush1.msra.mxu0 0.0
      %2962 = vmatprep.mubr.f32.mxu0 0.0
      %2963 = vmatmul.mubr.f32.gmra.mrb[0].mxu0 %v2896
      %v2964 = vpop.f32.mrb[0].mxu0
      %v2965 = vadd.f32 %v2893, %v2964
      %v2966 = vpop.f32.mrb[0].mxu0
      %v2967 = vadd.f32 %v2893, %v2966
      %2968 = vdwg.mxu0
      %v2969 = vtanh.pop %v2965
      %v2970 = vtanh.pop %v2967
      %2972 = vset.pattern.permute.xlu0 0
      %2973 = vperm.xlu0 %2972, %v1926
      %v2974 = vpop.permute.xlu0 %2973
      %v2976 = vmul.f32 %v2974, %v2969
      %v2977 = vmul.f32 %v2974, %v2970
      %v2978 = vsel %vm696, %v2976, 0.0
      %v2979 = vrot.slane %v2978, 4
      %v2980 = vadd.f32 %v2978, %v2979
      %v2981 = vrot.slane %v2980, 2
      %v2982 = vadd.f32 %v2980, %v2981
      %v2983 = vrot.slane %v2982, 1
      %v2984 = vadd.f32 %v2982, %v2983
      %v2985 = vsel %vm696, %v2977, 0.0
      %v2986 = vrot.slane %v2985, 4
      %v2987 = vadd.f32 %v2985, %v2986
      %v2988 = vrot.slane %v2987, 2
      %v2989 = vadd.f32 %v2987, %v2988
      %v2990 = vrot.slane %v2989, 1
      %v2991 = vadd.f32 %v2989, %v2990
      %2992 = vset.pattern.permute.xlu0 0
      %2993 = vperm.xlu0 %2992, %v1963
      %v2994 = vpop.permute.xlu0 %2993
      %v2998 = vrot.slane %v2969, 5
      %v2999 = vrot.slane %v2970, 5
      %v3002 = vmul.f32 %v2994, %v2998
      %v3003 = vmul.f32 %v2994, %v2999
      %v3006 = vrot.slane %v3002, 3
      %v3007 = vrot.slane %v3003, 3
      %v3010 = vsel %vm696, %v3006, 0.0
      %v3011 = vrot.slane %v3010, 4
      %v3012 = vadd.f32 %v3010, %v3011
      %v3013 = vrot.slane %v3012, 2
      %v3014 = vadd.f32 %v3012, %v3013
      %v3015 = vrot.slane %v3014, 1
      %v3016 = vadd.f32 %v3014, %v3015
      %v3017 = vsel %vm696, %v3007, 0.0
      %v3018 = vrot.slane %v3017, 4
      %v3019 = vadd.f32 %v3017, %v3018
      %v3020 = vrot.slane %v3019, 2
      %v3021 = vadd.f32 %v3019, %v3020
      %v3022 = vrot.slane %v3021, 1
      %v3023 = vadd.f32 %v3021, %v3022
      %3024 = vset.pattern.permute.xlu0 0
      %3025 = vperm.xlu0 %3024, %v1994
      %v3026 = vpop.permute.xlu0 %3025
      %v3028 = vmul.f32 %v3026, %v2969
      %v3029 = vmul.f32 %v3026, %v2970
      %v3030 = vsel %vm696, %v3028, 0.0
      %v3031 = vrot.slane %v3030, 4
      %v3032 = vadd.f32 %v3030, %v3031
      %v3033 = vrot.slane %v3032, 2
      %v3034 = vadd.f32 %v3032, %v3033
      %v3035 = vrot.slane %v3034, 1
      %v3036 = vadd.f32 %v3034, %v3035
      %v3037 = vsel %vm696, %v3029, 0.0
      %v3038 = vrot.slane %v3037, 4
      %v3039 = vadd.f32 %v3037, %v3038
      %v3040 = vrot.slane %v3039, 2
      %v3041 = vadd.f32 %v3039, %v3040
      %v3042 = vrot.slane %v3041, 1
      %v3043 = vadd.f32 %v3041, %v3042
      %v3044 = vsel %vm774, %v2984, %v3016
      %v3045 = vsel %vm774, %v2991, %v3023
      %v3046 = vsel %vm777, %v3044, %v3036
      %v3047 = vsel %vm777, %v3045, %v3043
      %v3048 = vadd.f32 %v3046, %v703
      %v3049 = vadd.f32 %v3047, %v703
      %v3052 = vcombine.low %v3048, %v3049
      %3054 = vst [vmem:[%s677] sm:$0x77] %v3052
      %v3056 = vsel %vm2456, %v2006, 0
      %v3058 = vsel %vm696, %v713, 0
      %v3060 = vsel %vm696, %v715, 0
      %3062 = vmatprep.subr.mxu0 %v3060
      %3063 = vmatpush1.msra.mxu0 %v3058
      %3064 = vmatprep.subr.mxu0 0.0
      %3065 = vmatpush1.msra.mxu0 0.0
      %3066 = vmatprep.subr.mxu0 0.0
      %3067 = vmatpush1.msra.mxu0 0.0
      %3068 = vmatprep.subr.mxu0 0.0
      %3069 = vmatpush1.msra.mxu0 0.0
      %3070 = vmatprep.subr.mxu0 0.0
      %3071 = vmatpush1.msra.mxu0 0.0
      %3072 = vmatprep.subr.mxu0 0.0
      %3073 = vmatpush1.msra.mxu0 0.0
      %3074 = vmatprep.subr.mxu0 0.0
      %3075 = vmatpush1.msra.mxu0 0.0
      %3076 = vmatprep.subr.mxu0 0.0
      %3077 = vmatpush1.msra.mxu0 0.0
      %3078 = vmatprep.subr.mxu0 0.0
      %3079 = vmatpush1.msra.mxu0 0.0
      %3080 = vmatprep.subr.mxu0 0.0
      %3081 = vmatpush1.msra.mxu0 0.0
      %3082 = vmatprep.subr.mxu0 0.0
      %3083 = vmatpush1.msra.mxu0 0.0
      %3084 = vmatprep.subr.mxu0 0.0
      %3085 = vmatpush1.msra.mxu0 0.0
      %3086 = vmatprep.subr.mxu0 0.0
      %3087 = vmatpush1.msra.mxu0 0.0
      %3088 = vmatprep.subr.mxu0 0.0
      %3089 = vmatpush1.msra.mxu0 0.0
      %3090 = vmatprep.subr.mxu0 0.0
      %3091 = vmatpush1.msra.mxu0 0.0
      %3092 = vmatprep.subr.mxu0 0.0
      %3093 = vmatpush1.msra.mxu0 0.0
      %3094 = vmatprep.subr.mxu0 0.0
      %3095 = vmatpush1.msra.mxu0 0.0
      %3096 = vmatprep.subr.mxu0 0.0
      %3097 = vmatpush1.msra.mxu0 0.0
      %3098 = vmatprep.subr.mxu0 0.0
      %3099 = vmatpush1.msra.mxu0 0.0
      %3100 = vmatprep.subr.mxu0 0.0
      %3101 = vmatpush1.msra.mxu0 0.0
      %3102 = vmatprep.subr.mxu0 0.0
      %3103 = vmatpush1.msra.mxu0 0.0
      %3104 = vmatprep.subr.mxu0 0.0
      %3105 = vmatpush1.msra.mxu0 0.0
      %3106 = vmatprep.subr.mxu0 0.0
      %3107 = vmatpush1.msra.mxu0 0.0
      %3108 = vmatprep.subr.mxu0 0.0
      %3109 = vmatpush1.msra.mxu0 0.0
      %3110 = vmatprep.subr.mxu0 0.0
      %3111 = vmatpush1.msra.mxu0 0.0
      %3112 = vmatprep.subr.mxu0 0.0
      %3113 = vmatpush1.msra.mxu0 0.0
      %3114 = vmatprep.subr.mxu0 0.0
      %3115 = vmatpush1.msra.mxu0 0.0
      %3116 = vmatprep.subr.mxu0 0.0
      %3117 = vmatpush1.msra.mxu0 0.0
      %3118 = vmatprep.subr.mxu0 0.0
      %3119 = vmatpush1.msra.mxu0 0.0
      %3120 = vmatprep.subr.mxu0 0.0
      %3121 = vmatpush1.msra.mxu0 0.0
      %3122 = vmatprep.subr.mxu0 0.0
      %3123 = vmatpush1.msra.mxu0 0.0
      %3124 = vmatprep.subr.mxu0 0.0
      %3125 = vmatpush1.msra.mxu0 0.0
      %3126 = vmatprep.mubr.f32.mxu0 0.0
      %3127 = vmatmul.mubr.f32.gmra.mrb[0].mxu0 %v3056
      %v3128 = vpop.f32.mrb[0].mxu0
      %v3129 = vadd.f32 0.0, %v3128
      %v3130 = vpop.f32.mrb[0].mxu0
      %v3131 = vadd.f32 0.0, %v3130
      %3132 = vdwg.mxu0
      %v3135 = vcombine.low %v3129, %v3131
      %3137 = vst [vmem:[%s682] sm:$0x77] %v3135
      %v3138 = vcombine.low %v2969, %v2970
      %3140 = vst [vmem:[%s687] sm:$0x77] %v3138
      %vm3141 = vcmask 18432
      %3142 = vst.msk [vmem:[%s691] sm:$0x7] %vm3141, %v2006
      %p3143 = scmp.lt.s32.totalorder %s33, 1
      %s3144 = scalar_select %p3143, %s33, 1
      %s3145 = smul.addr %s3144, 2
      %s3146 = smul.addr %s3145, 4
      %s3147 = scalar_lea.vmem %s18, %s3146
      %p3148 = scmp.lt.s32.totalorder %s33, 1
      %s3149 = scalar_select %p3148, %s33, 1
      %s3150 = smul.addr %s3149, 2
      %s3151 = smul.addr %s3150, 4
      %s3152 = scalar_lea.vmem %s19, %s3151
      %p3153 = scmp.lt.s32.totalorder %s33, 1
      %s3154 = scalar_select %p3153, %s33, 1
      %s3155 = smul.addr %s3154, 2
      %s3156 = smul.addr %s3155, 4
      %s3157 = scalar_lea.vmem %s20, %s3156
      %p3158 = scmp.lt.s32.totalorder %s33, 1
      %s3159 = scalar_select %p3158, %s33, 1
      %s3160 = smul.addr %s3159, 4
      %s3161 = scalar_lea.vmem %s21, %s3160
      // Predicated region
      $region93: #{_lambda_.1} parent=91 // pred_check
        %p3162 = pneg %p434
      $region94: #{_lambda_.1} parent=91 // pred_check_branch
        %3164 = sbr.rel (%p3162) target = $region96
      $region95: #{_lambda_.1} parent=91 // pred_region
        _
      $region96: #{_lambda_.1} parent=91 // pred_fallthru
        _
      // Predicated region
      $region97: #{_lambda_.1} parent=91 // pred_check
        %p3165 = pneg %p460
      $region98: #{_lambda_.1} parent=91 // pred_check_branch
        %3167 = sbr.rel (%p3165) target = $region100
      $region99: #{_lambda_.1} parent=91 // pred_region
        _
      $region100: #{_lambda_.1} parent=91 // pred_fallthru
        _
      // Predicated region
      $region101: #{_lambda_.1} parent=91 // pred_check
        %p3168 = pneg %p486
      $region102: #{_lambda_.1} parent=91 // pred_check_branch
        %3170 = sbr.rel (%p3168) target = $region104
      $region103: #{_lambda_.1} parent=91 // pred_region
        _
      $region104: #{_lambda_.1} parent=91 // pred_fallthru
        _
      // Predicated region
      $region105: #{_lambda_.1} parent=91 // pred_check
        %p3171 = pneg %p512
      $region106: #{_lambda_.1} parent=91 // pred_check_branch
        %3173 = sbr.rel (%p3171) target = $region108
      $region107: #{_lambda_.1} parent=91 // pred_region
        _
      $region108: #{_lambda_.1} parent=91 // pred_fallthru
        _
    $region92: #{_lambda_.1} parent=5 // pred_fallthru
      _
    %p3174 = scmp.le.s32.totalorder 2, %s28
    // Predicated region
    $region109: #{_lambda_.1} parent=5 // pred_check
      %p3175 = pneg %p3174
    $region110: #{_lambda_.1} parent=5 // pred_check_branch
      %3177 = sbr.rel (%p3175) target = $region112
    $region111: #{_lambda_.1} parent=5 // pred_region
      %s3178 = ssub.s32 %s28, 2
      // Predicated region
      $region113: #{_lambda_.1} parent=111 // pred_check
        %p3179 = pneg %p440
      $region114: #{_lambda_.1} parent=111 // pred_check_branch
        %3181 = sbr.rel (%p3179) target = $region116
      $region115: #{_lambda_.1} parent=111 // pred_region
        %p3182 = scmp.lt.s32.totalorder %s34, 1
        %s3183 = scalar_select %p3182, %s34, 1
        %s3184 = smul.addr %s3183, 2
        %s3185 = smul.addr %s3184, 4
        %s3186 = scalar_lea.vmem %s18, %s3185
      $region116: #{_lambda_.1} parent=111 // pred_fallthru
        _
      // Predicated region
      $region117: #{_lambda_.1} parent=111 // pred_check
        %p3187 = pneg %p466
      $region118: #{_lambda_.1} parent=111 // pred_check_branch
        %3189 = sbr.rel (%p3187) target = $region120
      $region119: #{_lambda_.1} parent=111 // pred_region
        %p3190 = scmp.lt.s32.totalorder %s34, 1
        %s3191 = scalar_select %p3190, %s34, 1
        %s3192 = smul.addr %s3191, 2
        %s3193 = smul.addr %s3192, 4
        %s3194 = scalar_lea.vmem %s19, %s3193
      $region120: #{_lambda_.1} parent=111 // pred_fallthru
        _
      // Predicated region
      $region121: #{_lambda_.1} parent=111 // pred_check
        %p3195 = pneg %p492
      $region122: #{_lambda_.1} parent=111 // pred_check_branch
        %3197 = sbr.rel (%p3195) target = $region124
      $region123: #{_lambda_.1} parent=111 // pred_region
        %p3198 = scmp.lt.s32.totalorder %s34, 1
        %s3199 = scalar_select %p3198, %s34, 1
        %s3200 = smul.addr %s3199, 2
        %s3201 = smul.addr %s3200, 4
        %s3202 = scalar_lea.vmem %s20, %s3201
      $region124: #{_lambda_.1} parent=111 // pred_fallthru
        _
      // Predicated region
      $region125: #{_lambda_.1} parent=111 // pred_check
        %p3203 = pneg %p518
      $region126: #{_lambda_.1} parent=111 // pred_check_branch
        %3205 = sbr.rel (%p3203) target = $region128
      $region127: #{_lambda_.1} parent=111 // pred_region
        %p3206 = scmp.lt.s32.totalorder %s34, 1
        %s3207 = scalar_select %p3206, %s34, 1
        %s3208 = smul.addr %s3207, 4
        %s3209 = scalar_lea.vmem %s21, %s3208
      $region128: #{_lambda_.1} parent=111 // pred_fallthru
        _
    $region112: #{_lambda_.1} parent=5 // pred_fallthru
      _
  $region6: #{_lambda_.1} parent=0 // loop_footer
    %s32 = sadd.s32 1, %s28
  $region7: #{_lambda_.1} parent=0 // loop_footer_branch
    %27 = sbr.rel target = $region3
  $region8: #{_lambda_.1} parent=0 // loop_exit
    _

</llo_original>
